<compile_context>
chip_gen: v7x
topology: tpu7x:2x2x1
jax: 0.10.0
libtpu: 0.0.40
codegen_flags: <defaults>
</compile_context>

<pallas_src>
import functools

import jax
import jax.numpy as jnp
from jax import lax
from jax.experimental import pallas as pl
from jax.experimental.pallas import tpu as pltpu

_VMEM_LIMIT = 32 * 1024 * 1024   # safe scoped-VMEM request on v5e/v6e/v7x


def _pick_tile(n, candidates=(256, 512, 128, 64, 32, 16, 8, 4, 2, 1)):
    """Largest token-tile (preferring 256) that evenly divides n."""
    for t in candidates:
        if n % t == 0:
            return t
    return n


# ----------------------------------------------------------------------------
# Kernel 1: fused projections  (shortcut conv + net[0:3] + Attention.to_qkv)
# ----------------------------------------------------------------------------

def _proj_kernel(x_ref, wsc_ref, bsc_ref, w1_ref, b1_ref, wqkv_ref,
                 sc_ref, qkv_ref):
    """shortcut = ReLU(x @ Wsc_fold + bsc)          (conv1x1 + BN + ReLU)
       h1       = ReLU(x @ W1_fold  + b1)           (conv1x1 + BN + ReLU)
       qkv      = h1 @ Wqkv                         (to_qkv conv1x1, no bias)
       All matmuls in bf16 with f32 accumulation; h1 stays in VMEM."""
    x = x_ref[...].astype(jnp.bfloat16)
    sc = jnp.dot(x, wsc_ref[...], preferred_element_type=jnp.float32)
    sc_ref[...] = jnp.maximum(sc + bsc_ref[...], 0.0)
    h1 = jnp.dot(x, w1_ref[...], preferred_element_type=jnp.float32)
    h1 = jnp.maximum(h1 + b1_ref[...], 0.0).astype(jnp.bfloat16)
    qkv_ref[...] = jnp.dot(
        h1, wqkv_ref[...], preferred_element_type=jnp.float32
    ).astype(qkv_ref.dtype)


def fused_projections(x_tok, w_sc, b_sc, w1, b1, w_qkv, *, tm=None):
    N, dim = x_tok.shape
    dim_out = w_sc.shape[1]
    adim = w1.shape[1]
    qkv_dim = w_qkv.shape[1]
    if tm is None:
        tm = _pick_tile(N)
    assert N % tm == 0
    return pl.pallas_call(
        _proj_kernel,
        out_shape=(jax.ShapeDtypeStruct((N, dim_out), jnp.float32),
                   jax.ShapeDtypeStruct((N, qkv_dim), jnp.bfloat16)),
        grid=(N // tm,),
        in_specs=[
            pl.BlockSpec((tm, dim), lambda i: (i, 0)),
            pl.BlockSpec((dim, dim_out), lambda i: (0, 0)),
            pl.BlockSpec((1, dim_out), lambda i: (0, 0)),
            pl.BlockSpec((dim, adim), lambda i: (0, 0)),
            pl.BlockSpec((1, adim), lambda i: (0, 0)),
            pl.BlockSpec((adim, qkv_dim), lambda i: (0, 0)),
        ],
        out_specs=(pl.BlockSpec((tm, dim_out), lambda i: (i, 0)),
                   pl.BlockSpec((tm, qkv_dim), lambda i: (i, 0))),
        compiler_params=pltpu.CompilerParams(
            dimension_semantics=("parallel",),
            vmem_limit_bytes=_VMEM_LIMIT),
    )(x_tok, w_sc, b_sc, w1, b1, w_qkv)


# ----------------------------------------------------------------------------
# Kernel 2: attention (one batch element per grid step, heads unrolled)
# ----------------------------------------------------------------------------

def _make_attention_kernel(heads, dim_head, scale):
    inner = heads * dim_head
    dims = (((1,), (1,)), ((), ()))   # contract over d, no batch dims

    def kernel(qkv_ref, emb_ref, o_ref):
        qkv = qkv_ref[...]                          # (L, 3*inner) bf16
        emb = emb_ref[...].astype(jnp.float32)      # (L, d)
        outs = []
        for h in range(heads):                      # static unroll over heads
            lo = h * dim_head
            q = qkv[:, lo:lo + dim_head].astype(jnp.float32) * scale
            k = qkv[:, inner + lo:inner + lo + dim_head].astype(jnp.float32)
            v = qkv[:, 2 * inner + lo:2 * inner + lo + dim_head]
            # q@k^T + q@emb^T == q@(k+emb)^T  -> single score matmul
            kk = (k + emb).astype(jnp.bfloat16)
            sim = lax.dot_general(q.astype(jnp.bfloat16), kk, dims,
                                  preferred_element_type=jnp.float32)
            m = jnp.max(sim, axis=-1, keepdims=True)
            e = jnp.exp(sim - m)
            attn = e * pl.reciprocal(jnp.sum(e, axis=-1, keepdims=True),
                                     approx=True)
            outs.append(jnp.dot(attn.astype(jnp.bfloat16), v,
                                preferred_element_type=jnp.float32))
        # single lane-dense store of all heads: (L, heads*dim_head)
        o_ref[...] = jnp.concatenate(outs, axis=-1).astype(o_ref.dtype)

    return kernel


def attention_pallas(qkv, emb, *, heads, dim_head, scale):
    # TODO(synk): for large L (>=2048) switch to flash-style kv tiling
    # (kv grid axis marked "arbitrary" with m/l/acc VMEM scratch) so the (L,L)
    # score tile fits the 64 MiB v7x VMEM; small demo L keeps the simple form.
    B, L, qkv_dim = qkv.shape
    inner = heads * dim_head
    return pl.pallas_call(
        _make_attention_kernel(heads, dim_head, scale),
        out_shape=jax.ShapeDtypeStruct((B, L, inner), jnp.bfloat16),
        grid=(B,),
        in_specs=[
            pl.BlockSpec((None, L, qkv_dim), lambda b: (b, 0, 0)),
            pl.BlockSpec((L, dim_head), lambda b: (0, 0)),
        ],
        out_specs=pl.BlockSpec((None, L, inner), lambda b: (b, 0, 0)),
        compiler_params=pltpu.CompilerParams(
            dimension_semantics=("parallel",),
            vmem_limit_bytes=_VMEM_LIMIT),
    )(qkv, emb)


# ----------------------------------------------------------------------------
# Kernel 3: BN2 + ReLU + final 1x1 conv (BN3 folded) + residual + final ReLU
# ----------------------------------------------------------------------------

def _out_kernel(y_ref, s2_ref, b2_ref, w3_ref, b3_ref, res_ref, o_ref):
    y = y_ref[...].astype(jnp.float32) * s2_ref[...] + b2_ref[...]   # BN2
    y = jnp.maximum(y, 0.0).astype(jnp.bfloat16)                     # ReLU
    z = jnp.dot(y, w3_ref[...], preferred_element_type=jnp.float32)  # conv1x1
    z = z + b3_ref[...] + res_ref[...]                               # BN3 + shortcut
    o_ref[...] = jnp.maximum(z, 0.0)                                 # final ReLU


def fused_output(y_tok, s2, b2, w3, b3, residual, *, tm=None):
    N, cin = y_tok.shape
    cout = w3.shape[1]
    if tm is None:
        tm = _pick_tile(N)
    assert N % tm == 0
    return pl.pallas_call(
        _out_kernel,
        out_shape=jax.ShapeDtypeStruct((N, cout), jnp.float32),
        grid=(N // tm,),
        in_specs=[
            pl.BlockSpec((tm, cin), lambda i: (i, 0)),
            pl.BlockSpec((1, cin), lambda i: (0, 0)),
            pl.BlockSpec((1, cin), lambda i: (0, 0)),
            pl.BlockSpec((cin, cout), lambda i: (0, 0)),
            pl.BlockSpec((1, cout), lambda i: (0, 0)),
            pl.BlockSpec((tm, cout), lambda i: (i, 0)),
        ],
        out_specs=pl.BlockSpec((tm, cout), lambda i: (i, 0)),
        compiler_params=pltpu.CompilerParams(
            dimension_semantics=("parallel",),
            vmem_limit_bytes=_VMEM_LIMIT),
    )(y_tok, s2, b2, w3, b3, residual)


# ----------------------------------------------------------------------------
# Parameter init (deterministic, shapes from BottleBlock.__init__)
# ----------------------------------------------------------------------------

def _bn_fold(key, c, eps=1e-5):
    k1, k2, k3, k4 = jax.random.split(key, 4)
    gamma = 1.0 + 0.1 * jax.random.normal(k1, (c,), jnp.float32)
    beta = 0.1 * jax.random.normal(k2, (c,), jnp.float32)
    mean = 0.1 * jax.random.normal(k3, (c,), jnp.float32)
    var = 1.0 + 0.1 * jnp.abs(jax.random.normal(k4, (c,), jnp.float32))
    scale = gamma / jnp.sqrt(var + eps)
    shift = beta - mean * scale
    return scale.reshape(1, c), shift.reshape(1, c)


def init_params(key, *, dim, dim_out, proj_factor, heads, dim_head, fmap_size):
    attn_dim_in = dim_out // proj_factor
    inner_dim = heads * dim_head
    attn_dim_out = inner_dim
    fh = fw = fmap_size
    ks = jax.random.split(key, 9)
    pe_scale = dim_head ** (-0.5)
    return {
        # shortcut: Conv2d(dim, dim_out, 1, bias=False) + BN + ReLU
        "w_sc": 0.1 * jax.random.normal(ks[0], (dim, dim_out), jnp.float32),
        "bn_sc": _bn_fold(ks[1], dim_out),
        # net[0:3]: Conv2d(dim, attn_dim_in, 1) + BN + ReLU
        "w1": 0.1 * jax.random.normal(ks[2], (dim, attn_dim_in), jnp.float32),
        "bn1": _bn_fold(ks[3], attn_dim_in),
        # Attention.to_qkv: Conv2d(attn_dim_in, 3*inner_dim, 1, bias=False)
        "w_qkv": 0.1 * jax.random.normal(ks[4], (attn_dim_in, 3 * inner_dim),
                                         jnp.float32),
        # AbsPosEmb parameters
        "pos_h": pe_scale * jax.random.normal(ks[5], (fh, dim_head), jnp.float32),
        "pos_w": pe_scale * jax.random.normal(ks[6], (fw, dim_head), jnp.float32),
        # net[5:]: BN(attn_dim_out) + ReLU + Conv2d(attn_dim_out, dim_out, 1) + BN
        "bn2": _bn_fold(ks[7], attn_dim_out),
        # nn.init.zeros_(self.net[-1].weight) in the reference __init__
        "w3": jnp.zeros((attn_dim_out, dim_out), jnp.float32),
        "bn3": _bn_fold(ks[8], dim_out),
    }


# ----------------------------------------------------------------------------
# BottleBlock forward
# ----------------------------------------------------------------------------

def bottle_block_forward(x_nchw, params, *, heads, dim_head):
    B, C, H, W = x_nchw.shape
    L = H * W
    inner = heads * dim_head
    attn_scale = dim_head ** (-0.5)

    # NCHW -> token-major (B*H*W, C)
    x_tok = jnp.transpose(x_nchw, (0, 2, 3, 1)).reshape(B * L, C)

    # Fold inference BatchNorm into the 1x1-conv weight columns + bias row;
    # cast matmul weights to bf16 (kernels accumulate in f32 on the MXU).
    sc_s, sc_b = params["bn_sc"]
    bn1_s, bn1_b = params["bn1"]
    bn2_s, bn2_b = params["bn2"]
    bn3_s, bn3_b = params["bn3"]
    w_sc = (params["w_sc"] * sc_s).astype(jnp.bfloat16)
    w1 = (params["w1"] * bn1_s).astype(jnp.bfloat16)
    w_qkv = params["w_qkv"].astype(jnp.bfloat16)
    w3 = (params["w3"] * bn3_s).astype(jnp.bfloat16)

    # Fused: shortcut branch + net[0:3] + Attention.to_qkv (x read once).
    shortcut, qkv = fused_projections(x_tok, w_sc, sc_b, w1, bn1_b, w_qkv)
    qkv = qkv.reshape(B, L, 3 * inner)          # pure reshape, no transpose

    # AbsPosEmb: emb[(x,y), d] = height[x, d] + width[y, d]
    emb = (params["pos_h"][:, None, :] + params["pos_w"][None, :, :]
           ).reshape(L, dim_head)

    attn = attention_pallas(qkv, emb, heads=heads, dim_head=dim_head,
                            scale=attn_scale)   # (B, L, heads*dim_head)
    attn_tok = attn.reshape(B * L, inner)       # pure reshape, no transpose

    # TODO(synk): downsample=True branch (3x3 stride-2 shortcut conv +
    # AvgPool2d) and rel_pos_emb=True (RelPosEmb) branch not implemented
    # (module defaults used).

    # net[5:]: BN + ReLU + 1x1 conv (BN3 folded), residual add, final ReLU.
    y_tok = fused_output(attn_tok, bn2_s, bn2_b, w3, bn3_b, shortcut)

    dim_out = params["w3"].shape[1]
    return jnp.transpose(y_tok.reshape(B, H, W, dim_out), (0, 3, 1, 2))


# ----------------------------------------------------------------------------

if __name__ == "__main__":
    B, dim, fmap = 2, 4, 16
    dim_out, proj_factor, heads, dim_head = 8, 2, 2, 16

    key = jax.random.PRNGKey(0)
    kx, kp = jax.random.split(key)
    x = jax.random.normal(kx, (B, dim, fmap, fmap), jnp.float32)
    params = init_params(kp, dim=dim, dim_out=dim_out, proj_factor=proj_factor,
                         heads=heads, dim_head=dim_head, fmap_size=fmap)

    fwd = jax.jit(functools.partial(bottle_block_forward,
                                    heads=heads, dim_head=dim_head))
    out = fwd(x, params)
    jax.block_until_ready(out)
    assert out.shape == (B, dim_out, fmap, fmap)
    assert bool(jnp.all(jnp.isfinite(out)))
    print("KERNEL_OK")
</pallas_src>

<mosaic_0001>
module attributes {stable_mosaic.version = 11 : i64} {
  func.func @_proj_kernel(%arg0: i32, %arg1: memref<256x4xf32, #tpu.memory_space<vmem>>, %arg2: memref<4x8xbf16, #tpu.memory_space<vmem>>, %arg3: memref<1x8xf32, #tpu.memory_space<vmem>>, %arg4: memref<4x4xbf16, #tpu.memory_space<vmem>>, %arg5: memref<1x4xf32, #tpu.memory_space<vmem>>, %arg6: memref<4x96xbf16, #tpu.memory_space<vmem>>, %arg7: memref<256x8xf32, #tpu.memory_space<vmem>>, %arg8: memref<256x96xbf16, #tpu.memory_space<vmem>>) attributes {dimension_semantics = [#tpu.dimension_semantics<parallel>], iteration_bounds = array<i64: 2>, scalar_prefetch = 0 : i64, scratch_operands = 0 : i64, tpu.core_type = #tpu.core_type<tc>, window_params = [{transform_indices = @transform_0, window_bounds = array<i64: 256, 4>}, {pipeline_mode = #tpu.pipeline_mode<synchronous>, transform_indices = @transform_1, window_bounds = array<i64: 4, 8>}, {pipeline_mode = #tpu.pipeline_mode<synchronous>, transform_indices = @transform_2, window_bounds = array<i64: 1, 8>}, {pipeline_mode = #tpu.pipeline_mode<synchronous>, transform_indices = @transform_3, window_bounds = array<i64: 4, 4>}, {pipeline_mode = #tpu.pipeline_mode<synchronous>, transform_indices = @transform_4, window_bounds = array<i64: 1, 4>}, {pipeline_mode = #tpu.pipeline_mode<synchronous>, transform_indices = @transform_5, window_bounds = array<i64: 4, 96>}, {transform_indices = @transform_6, window_bounds = array<i64: 256, 8>}, {transform_indices = @transform_7, window_bounds = array<i64: 256, 96>}]} {
    %c0 = arith.constant 0 : index
    %c0_0 = arith.constant 0 : index
    %0 = vector.load %arg1[%c0, %c0_0] : memref<256x4xf32, #tpu.memory_space<vmem>>, vector<256x4xf32>
    %1 = arith.truncf %0 : vector<256x4xf32> to vector<256x4xbf16>
    %c0_1 = arith.constant 0 : index
    %c0_2 = arith.constant 0 : index
    %2 = vector.load %arg2[%c0_1, %c0_2] : memref<4x8xbf16, #tpu.memory_space<vmem>>, vector<4x8xbf16>
    %cst = arith.constant dense<0.000000e+00> : vector<256x8xf32>
    %3 = tpu.matmul %1, %2, %cst {dimension_numbers = #tpu.dot_dimension_numbers<[1], [0], [0], [1], [0, 0, 1, 1], [], []>} : vector<256x4xbf16>, vector<4x8xbf16>, vector<256x8xf32> -> vector<256x8xf32>
    %c0_3 = arith.constant 0 : index
    %c0_4 = arith.constant 0 : index
    %4 = vector.load %arg3[%c0_3, %c0_4] : memref<1x8xf32, #tpu.memory_space<vmem>>, vector<1x8xf32>
    %5 = vector.broadcast %4 : vector<1x8xf32> to vector<256x8xf32>
    %6 = arith.addf %3, %5 : vector<256x8xf32>
    %cst_5 = arith.constant 0.000000e+00 : f32
    %7 = vector.broadcast %cst_5 : f32 to vector<256x8xf32>
    %8 = arith.maximumf %6, %7 : vector<256x8xf32>
    %c0_6 = arith.constant 0 : index
    %c0_7 = arith.constant 0 : index
    %9 = vector.load %arg7[%c0_6, %c0_7] : memref<256x8xf32, #tpu.memory_space<vmem>>, vector<256x8xf32>
    tpu.vector_store %arg7[%c0_6, %c0_7], %8 {strides = array<i32>} : memref<256x8xf32, #tpu.memory_space<vmem>>, vector<256x8xf32>,
    %c0_8 = arith.constant 0 : index
    %c0_9 = arith.constant 0 : index
    %10 = vector.load %arg4[%c0_8, %c0_9] : memref<4x4xbf16, #tpu.memory_space<vmem>>, vector<4x4xbf16>
    %cst_10 = arith.constant dense<0.000000e+00> : vector<256x4xf32>
    %11 = tpu.matmul %1, %10, %cst_10 {dimension_numbers = #tpu.dot_dimension_numbers<[1], [0], [0], [1], [0, 0, 1, 1], [], []>} : vector<256x4xbf16>, vector<4x4xbf16>, vector<256x4xf32> -> vector<256x4xf32>
    %c0_11 = arith.constant 0 : index
    %c0_12 = arith.constant 0 : index
    %12 = vector.load %arg5[%c0_11, %c0_12] : memref<1x4xf32, #tpu.memory_space<vmem>>, vector<1x4xf32>
    %13 = vector.broadcast %12 : vector<1x4xf32> to vector<256x4xf32>
    %14 = arith.addf %11, %13 : vector<256x4xf32>
    %cst_13 = arith.constant 0.000000e+00 : f32
    %15 = vector.broadcast %cst_13 : f32 to vector<256x4xf32>
    %16 = arith.maximumf %14, %15 : vector<256x4xf32>
    %17 = arith.truncf %16 : vector<256x4xf32> to vector<256x4xbf16>
    %c0_14 = arith.constant 0 : index
    %c0_15 = arith.constant 0 : index
    %18 = vector.load %arg6[%c0_14, %c0_15] : memref<4x96xbf16, #tpu.memory_space<vmem>>, vector<4x96xbf16>
    %cst_16 = arith.constant dense<0.000000e+00> : vector<256x96xf32>
    %19 = tpu.matmul %17, %18, %cst_16 {dimension_numbers = #tpu.dot_dimension_numbers<[1], [0], [0], [1], [0, 0, 1, 1], [], []>} : vector<256x4xbf16>, vector<4x96xbf16>, vector<256x96xf32> -> vector<256x96xf32>
    %20 = arith.truncf %19 : vector<256x96xf32> to vector<256x96xbf16>
    %c0_17 = arith.constant 0 : index
    %c0_18 = arith.constant 0 : index
    %21 = vector.load %arg8[%c0_17, %c0_18] : memref<256x96xbf16, #tpu.memory_space<vmem>>, vector<256x96xbf16>
    tpu.vector_store %arg8[%c0_17, %c0_18], %20 {strides = array<i32>} : memref<256x96xbf16, #tpu.memory_space<vmem>>, vector<256x96xbf16>,
    return
  }
  func.func @transform_0(%arg0: i32) -> (i32, i32) {
    %c0_i32 = arith.constant 0 : i32
    %c0_i32_0 = arith.constant 0 : i32
    return %arg0, %c0_i32 : i32, i32
  }
  func.func @transform_1(%arg0: i32) -> (i32, i32) {
    %c0_i32 = arith.constant 0 : i32
    %c0_i32_0 = arith.constant 0 : i32
    %c0_i32_1 = arith.constant 0 : i32
    return %c0_i32, %c0_i32_0 : i32, i32
  }
  func.func @transform_2(%arg0: i32) -> (i32, i32) {
    %c0_i32 = arith.constant 0 : i32
    %c0_i32_0 = arith.constant 0 : i32
    %c0_i32_1 = arith.constant 0 : i32
    return %c0_i32, %c0_i32_0 : i32, i32
  }
  func.func @transform_3(%arg0: i32) -> (i32, i32) {
    %c0_i32 = arith.constant 0 : i32
    %c0_i32_0 = arith.constant 0 : i32
    %c0_i32_1 = arith.constant 0 : i32
    return %c0_i32, %c0_i32_0 : i32, i32
  }
  func.func @transform_4(%arg0: i32) -> (i32, i32) {
    %c0_i32 = arith.constant 0 : i32
    %c0_i32_0 = arith.constant 0 : i32
    %c0_i32_1 = arith.constant 0 : i32
    return %c0_i32, %c0_i32_0 : i32, i32
  }
  func.func @transform_5(%arg0: i32) -> (i32, i32) {
    %c0_i32 = arith.constant 0 : i32
    %c0_i32_0 = arith.constant 0 : i32
    %c0_i32_1 = arith.constant 0 : i32
    return %c0_i32, %c0_i32_0 : i32, i32
  }
  func.func @transform_6(%arg0: i32) -> (i32, i32) {
    %c0_i32 = arith.constant 0 : i32
    %c0_i32_0 = arith.constant 0 : i32
    return %arg0, %c0_i32 : i32, i32
  }
  func.func @transform_7(%arg0: i32) -> (i32, i32) {
    %c0_i32 = arith.constant 0 : i32
    %c0_i32_0 = arith.constant 0 : i32
    return %arg0, %c0_i32 : i32, i32
  }
}

module attributes {stable_mosaic.version = 11 : i64} {
  func.func @kernel(%arg0: i32, %arg1: memref<1x256x96xbf16, #tpu.memory_space<vmem>>, %arg2: memref<256x16xf32, #tpu.memory_space<vmem>>, %arg3: memref<1x256x32xbf16, #tpu.memory_space<vmem>>) attributes {dimension_semantics = [#tpu.dimension_semantics<parallel>], iteration_bounds = array<i64: 2>, scalar_prefetch = 0 : i64, scratch_operands = 0 : i64, tpu.core_type = #tpu.core_type<tc>, window_params = [{transform_indices = @transform_0, window_bounds = array<i64: 1, 256, 96>}, {pipeline_mode = #tpu.pipeline_mode<synchronous>, transform_indices = @transform_1, window_bounds = array<i64: 256, 16>}, {transform_indices = @transform_2, window_bounds = array<i64: 1, 256, 32>}]} {
    %c0 = arith.constant 0 : index
    %c0_0 = arith.constant 0 : index
    %c0_1 = arith.constant 0 : index
    %0 = vector.load %arg1[%c0, %c0_0, %c0_1] : memref<1x256x96xbf16, #tpu.memory_space<vmem>>, vector<1x256x96xbf16>
    %1 = vector.shape_cast %0 : vector<1x256x96xbf16> to vector<256x96xbf16>
    %c0_2 = arith.constant 0 : index
    %c0_3 = arith.constant 0 : index
    %2 = vector.load %arg2[%c0_2, %c0_3] : memref<256x16xf32, #tpu.memory_space<vmem>>, vector<256x16xf32>
    %3 = vector.extract_strided_slice %1 {offsets = [0, 0], sizes = [256, 16], strides = [1, 1]} : vector<256x96xbf16> to vector<256x16xbf16>
    %4 = arith.extf %3 : vector<256x16xbf16> to vector<256x16xf32>
    %cst = arith.constant 2.500000e-01 : f32
    %5 = vector.broadcast %cst : f32 to vector<256x16xf32>
    %6 = arith.mulf %4, %5 : vector<256x16xf32>
    %7 = vector.extract_strided_slice %1 {offsets = [0, 32], sizes = [256, 16], strides = [1, 1]} : vector<256x96xbf16> to vector<256x16xbf16>
    %8 = arith.extf %7 : vector<256x16xbf16> to vector<256x16xf32>
    %9 = vector.extract_strided_slice %1 {offsets = [0, 64], sizes = [256, 16], strides = [1, 1]} : vector<256x96xbf16> to vector<256x16xbf16>
    %10 = arith.addf %8, %2 : vector<256x16xf32>
    %11 = arith.truncf %10 : vector<256x16xf32> to vector<256x16xbf16>
    %12 = arith.truncf %6 : vector<256x16xf32> to vector<256x16xbf16>
    %cst_4 = arith.constant dense<0.000000e+00> : vector<256x256xf32>
    %13 = tpu.matmul %12, %11, %cst_4 {dimension_numbers = #tpu.dot_dimension_numbers<[1], [1], [0], [0], [0, 0, 1, 0], [], []>} : vector<256x16xbf16>, vector<256x16xbf16>, vector<256x256xf32> -> vector<256x256xf32>
    %cst_5 = arith.constant dense<0xFF800000> : vector<256xf32>
    %14 = vector.multi_reduction <maximumf>, %13, %cst_5 [1] : vector<256x256xf32> to vector<256xf32>
    %15 = vector.shape_cast %14 : vector<256xf32> to vector<256x1xf32>
    %16 = vector.broadcast %15 : vector<256x1xf32> to vector<256x256xf32>
    %17 = arith.subf %13, %16 : vector<256x256xf32>
    %18 = math.exp %17 : vector<256x256xf32>
    %cst_6 = arith.constant dense<0.000000e+00> : vector<256xf32>
    %19 = vector.multi_reduction <add>, %18, %cst_6 [1] : vector<256x256xf32> to vector<256xf32>
    %20 = vector.shape_cast %19 : vector<256xf32> to vector<256x1xf32>
    %21 = tpu.reciprocal %20 {approx = true} : vector<256x1xf32> -> vector<256x1xf32>
    %22 = vector.broadcast %21 : vector<256x1xf32> to vector<256x256xf32>
    %23 = arith.mulf %18, %22 : vector<256x256xf32>
    %24 = arith.truncf %23 : vector<256x256xf32> to vector<256x256xbf16>
    %cst_7 = arith.constant dense<0.000000e+00> : vector<256x16xf32>
    %25 = tpu.matmul %24, %9, %cst_7 {dimension_numbers = #tpu.dot_dimension_numbers<[1], [0], [0], [1], [0, 0, 1, 1], [], []>} : vector<256x256xbf16>, vector<256x16xbf16>, vector<256x16xf32> -> vector<256x16xf32>
    %26 = vector.extract_strided_slice %1 {offsets = [0, 16], sizes = [256, 16], strides = [1, 1]} : vector<256x96xbf16> to vector<256x16xbf16>
    %27 = arith.extf %26 : vector<256x16xbf16> to vector<256x16xf32>
    %cst_8 = arith.constant 2.500000e-01 : f32
    %28 = vector.broadcast %cst_8 : f32 to vector<256x16xf32>
    %29 = arith.mulf %27, %28 : vector<256x16xf32>
    %30 = vector.extract_strided_slice %1 {offsets = [0, 48], sizes = [256, 16], strides = [1, 1]} : vector<256x96xbf16> to vector<256x16xbf16>
    %31 = arith.extf %30 : vector<256x16xbf16> to vector<256x16xf32>
    %32 = vector.extract_strided_slice %1 {offsets = [0, 80], sizes = [256, 16], strides = [1, 1]} : vector<256x96xbf16> to vector<256x16xbf16>
    %33 = arith.addf %31, %2 : vector<256x16xf32>
    %34 = arith.truncf %33 : vector<256x16xf32> to vector<256x16xbf16>
    %35 = arith.truncf %29 : vector<256x16xf32> to vector<256x16xbf16>
    %cst_9 = arith.constant dense<0.000000e+00> : vector<256x256xf32>
    %36 = tpu.matmul %35, %34, %cst_9 {dimension_numbers = #tpu.dot_dimension_numbers<[1], [1], [0], [0], [0, 0, 1, 0], [], []>} : vector<256x16xbf16>, vector<256x16xbf16>, vector<256x256xf32> -> vector<256x256xf32>
    %cst_10 = arith.constant dense<0xFF800000> : vector<256xf32>
    %37 = vector.multi_reduction <maximumf>, %36, %cst_10 [1] : vector<256x256xf32> to vector<256xf32>
    %38 = vector.shape_cast %37 : vector<256xf32> to vector<256x1xf32>
    %39 = vector.broadcast %38 : vector<256x1xf32> to vector<256x256xf32>
    %40 = arith.subf %36, %39 : vector<256x256xf32>
    %41 = math.exp %40 : vector<256x256xf32>
    %cst_11 = arith.constant dense<0.000000e+00> : vector<256xf32>
    %42 = vector.multi_reduction <add>, %41, %cst_11 [1] : vector<256x256xf32> to vector<256xf32>
    %43 = vector.shape_cast %42 : vector<256xf32> to vector<256x1xf32>
    %44 = tpu.reciprocal %43 {approx = true} : vector<256x1xf32> -> vector<256x1xf32>
    %45 = vector.broadcast %44 : vector<256x1xf32> to vector<256x256xf32>
    %46 = arith.mulf %41, %45 : vector<256x256xf32>
    %47 = arith.truncf %46 : vector<256x256xf32> to vector<256x256xbf16>
    %cst_12 = arith.constant dense<0.000000e+00> : vector<256x16xf32>
    %48 = tpu.matmul %47, %32, %cst_12 {dimension_numbers = #tpu.dot_dimension_numbers<[1], [0], [0], [1], [0, 0, 1, 1], [], []>} : vector<256x256xbf16>, vector<256x16xbf16>, vector<256x16xf32> -> vector<256x16xf32>
    %49 = tpu.concatenate %25, %48 in 1 : vector<256x16xf32>, vector<256x16xf32> -> vector<256x32xf32>
    %50 = arith.truncf %49 : vector<256x32xf32> to vector<256x32xbf16>
    %c0_13 = arith.constant 0 : index
    %c0_14 = arith.constant 0 : index
    %c0_15 = arith.constant 0 : index
    %51 = vector.load %arg3[%c0_13, %c0_14, %c0_15] : memref<1x256x32xbf16, #tpu.memory_space<vmem>>, vector<1x256x32xbf16>
    %52 = vector.shape_cast %51 : vector<1x256x32xbf16> to vector<256x32xbf16>
    %53 = vector.shape_cast %50 : vector<256x32xbf16> to vector<1x256x32xbf16>
    tpu.vector_store %arg3[%c0_13, %c0_14, %c0_15], %53 {strides = array<i32>} : memref<1x256x32xbf16, #tpu.memory_space<vmem>>, vector<1x256x32xbf16>,
    return
  }
  func.func @transform_0(%arg0: i32) -> (i32, i32, i32) {
    %c0_i32 = arith.constant 0 : i32
    %c0_i32_0 = arith.constant 0 : i32
    %c0_i32_1 = arith.constant 0 : i32
    return %arg0, %c0_i32, %c0_i32_0 : i32, i32, i32
  }
  func.func @transform_1(%arg0: i32) -> (i32, i32) {
    %c0_i32 = arith.constant 0 : i32
    %c0_i32_0 = arith.constant 0 : i32
    %c0_i32_1 = arith.constant 0 : i32
    return %c0_i32, %c0_i32_0 : i32, i32
  }
  func.func @transform_2(%arg0: i32) -> (i32, i32, i32) {
    %c0_i32 = arith.constant 0 : i32
    %c0_i32_0 = arith.constant 0 : i32
    %c0_i32_1 = arith.constant 0 : i32
    return %arg0, %c0_i32, %c0_i32_0 : i32, i32, i32
  }
}

module attributes {stable_mosaic.version = 11 : i64} {
  func.func @_out_kernel(%arg0: i32, %arg1: memref<256x32xbf16, #tpu.memory_space<vmem>>, %arg2: memref<1x32xf32, #tpu.memory_space<vmem>>, %arg3: memref<1x32xf32, #tpu.memory_space<vmem>>, %arg4: memref<32x8xbf16, #tpu.memory_space<vmem>>, %arg5: memref<1x8xf32, #tpu.memory_space<vmem>>, %arg6: memref<256x8xf32, #tpu.memory_space<vmem>>, %arg7: memref<256x8xf32, #tpu.memory_space<vmem>>) attributes {dimension_semantics = [#tpu.dimension_semantics<parallel>], iteration_bounds = array<i64: 2>, scalar_prefetch = 0 : i64, scratch_operands = 0 : i64, tpu.core_type = #tpu.core_type<tc>, window_params = [{transform_indices = @transform_0, window_bounds = array<i64: 256, 32>}, {pipeline_mode = #tpu.pipeline_mode<synchronous>, transform_indices = @transform_1, window_bounds = array<i64: 1, 32>}, {pipeline_mode = #tpu.pipeline_mode<synchronous>, transform_indices = @transform_2, window_bounds = array<i64: 1, 32>}, {pipeline_mode = #tpu.pipeline_mode<synchronous>, transform_indices = @transform_3, window_bounds = array<i64: 32, 8>}, {pipeline_mode = #tpu.pipeline_mode<synchronous>, transform_indices = @transform_4, window_bounds = array<i64: 1, 8>}, {transform_indices = @transform_5, window_bounds = array<i64: 256, 8>}, {transform_indices = @transform_6, window_bounds = array<i64: 256, 8>}]} {
    %c0 = arith.constant 0 : index
    %c0_0 = arith.constant 0 : index
    %0 = vector.load %arg1[%c0, %c0_0] : memref<256x32xbf16, #tpu.memory_space<vmem>>, vector<256x32xbf16>
    %1 = arith.extf %0 : vector<256x32xbf16> to vector<256x32xf32>
    %c0_1 = arith.constant 0 : index
    %c0_2 = arith.constant 0 : index
    %2 = vector.load %arg2[%c0_1, %c0_2] : memref<1x32xf32, #tpu.memory_space<vmem>>, vector<1x32xf32>
    %3 = vector.broadcast %2 : vector<1x32xf32> to vector<256x32xf32>
    %4 = arith.mulf %1, %3 : vector<256x32xf32>
    %c0_3 = arith.constant 0 : index
    %c0_4 = arith.constant 0 : index
    %5 = vector.load %arg3[%c0_3, %c0_4] : memref<1x32xf32, #tpu.memory_space<vmem>>, vector<1x32xf32>
    %6 = vector.broadcast %5 : vector<1x32xf32> to vector<256x32xf32>
    %7 = arith.addf %4, %6 : vector<256x32xf32>
    %cst = arith.constant 0.000000e+00 : f32
    %8 = vector.broadcast %cst : f32 to vector<256x32xf32>
    %9 = arith.maximumf %7, %8 : vector<256x32xf32>
    %10 = arith.truncf %9 : vector<256x32xf32> to vector<256x32xbf16>
    %c0_5 = arith.constant 0 : index
    %c0_6 = arith.constant 0 : index
    %11 = vector.load %arg4[%c0_5, %c0_6] : memref<32x8xbf16, #tpu.memory_space<vmem>>, vector<32x8xbf16>
    %cst_7 = arith.constant dense<0.000000e+00> : vector<256x8xf32>
    %12 = tpu.matmul %10, %11, %cst_7 {dimension_numbers = #tpu.dot_dimension_numbers<[1], [0], [0], [1], [0, 0, 1, 1], [], []>} : vector<256x32xbf16>, vector<32x8xbf16>, vector<256x8xf32> -> vector<256x8xf32>
    %c0_8 = arith.constant 0 : index
    %c0_9 = arith.constant 0 : index
    %13 = vector.load %arg5[%c0_8, %c0_9] : memref<1x8xf32, #tpu.memory_space<vmem>>, vector<1x8xf32>
    %14 = vector.broadcast %13 : vector<1x8xf32> to vector<256x8xf32>
    %15 = arith.addf %12, %14 : vector<256x8xf32>
    %c0_10 = arith.constant 0 : index
    %c0_11 = arith.constant 0 : index
    %16 = vector.load %arg6[%c0_10, %c0_11] : memref<256x8xf32, #tpu.memory_space<vmem>>, vector<256x8xf32>
    %17 = arith.addf %15, %16 : vector<256x8xf32>
    %cst_12 = arith.constant 0.000000e+00 : f32
    %18 = vector.broadcast %cst_12 : f32 to vector<256x8xf32>
    %19 = arith.maximumf %17, %18 : vector<256x8xf32>
    %c0_13 = arith.constant 0 : index
    %c0_14 = arith.constant 0 : index
    %20 = vector.load %arg7[%c0_13, %c0_14] : memref<256x8xf32, #tpu.memory_space<vmem>>, vector<256x8xf32>
    tpu.vector_store %arg7[%c0_13, %c0_14], %19 {strides = array<i32>} : memref<256x8xf32, #tpu.memory_space<vmem>>, vector<256x8xf32>,
    return
  }
  func.func @transform_0(%arg0: i32) -> (i32, i32) {
    %c0_i32 = arith.constant 0 : i32
    %c0_i32_0 = arith.constant 0 : i32
    return %arg0, %c0_i32 : i32, i32
  }
  func.func @transform_1(%arg0: i32) -> (i32, i32) {
    %c0_i32 = arith.constant 0 : i32
    %c0_i32_0 = arith.constant 0 : i32
    %c0_i32_1 = arith.constant 0 : i32
    return %c0_i32, %c0_i32_0 : i32, i32
  }
  func.func @transform_2(%arg0: i32) -> (i32, i32) {
    %c0_i32 = arith.constant 0 : i32
    %c0_i32_0 = arith.constant 0 : i32
    %c0_i32_1 = arith.constant 0 : i32
    return %c0_i32, %c0_i32_0 : i32, i32
  }
  func.func @transform_3(%arg0: i32) -> (i32, i32) {
    %c0_i32 = arith.constant 0 : i32
    %c0_i32_0 = arith.constant 0 : i32
    %c0_i32_1 = arith.constant 0 : i32
    return %c0_i32, %c0_i32_0 : i32, i32
  }
  func.func @transform_4(%arg0: i32) -> (i32, i32) {
    %c0_i32 = arith.constant 0 : i32
    %c0_i32_0 = arith.constant 0 : i32
    %c0_i32_1 = arith.constant 0 : i32
    return %c0_i32, %c0_i32_0 : i32, i32
  }
  func.func @transform_5(%arg0: i32) -> (i32, i32) {
    %c0_i32 = arith.constant 0 : i32
    %c0_i32_0 = arith.constant 0 : i32
    return %arg0, %c0_i32 : i32, i32
  }
  func.func @transform_6(%arg0: i32) -> (i32, i32) {
    %c0_i32 = arith.constant 0 : i32
    %c0_i32_0 = arith.constant 0 : i32
    return %arg0, %c0_i32 : i32, i32
  }
}

</mosaic_0001>

<llo_original>
// kernel: bottle_block_forward.5
$region0: #{bottle_block_forward.5}
  #allocation0 [shape = 'u32[]', space=smem, size = 0x4, offset = 0x4, fixed_abs, tag = 'smem constant byte address 0x4 - core index']
  #allocation1 [shape = 'u32[144,128]{1,0:T(1,128)}', space=vmem, size = 0x12000, scoped, tag = 'internal scratch']
  %s0 = inlined_call_operand.vmem [shape: bf16[512,32], index: 0, kind: input, shape index: {}]
  %s1 = inlined_call_operand.vmem [shape: f32[1,32], index: 1, kind: input, shape index: {}]
  %s2 = inlined_call_operand.vmem [shape: f32[1,32], index: 2, kind: input, shape index: {}]
  %s3 = inlined_call_operand.vmem [shape: bf16[32,8], index: 3, kind: input, shape index: {}]
  %s4 = inlined_call_operand.vmem [shape: f32[1,8], index: 4, kind: input, shape index: {}]
  %s5 = inlined_call_operand.vmem [shape: f32[512,8], index: 5, kind: input, shape index: {}]
  %s6 = inlined_call_operand.vmem [shape: f32[512,8], index: 6, kind: output, shape index: {}]
  %s7 = sld [smem:[#allocation0]]
  $region57: #{bottle_block_forward.5} parent=0
    _
  %s9 = ssub.s32 1, %s7
  %s10 = scalar_select 0, %s9, %s7
  loop: start=0, step=1, limit=4
  $region2: #{bottle_block_forward.5} parent=0 // loop_pre_header
    _
  $region3: #{bottle_block_forward.5} parent=0 // loop_header
    %s12 = sphi 0, %s16
    %p13 = scmp.ge.s32.totalorder %s12, 4
    %s22 = sphi 0, %s24
    %s25 = sphi 0, %s22
    %s26 = sphi 0, %s25
    %s42 = sphi 0, %s26
    %s46 = sphi 0, %s46
    %s48 = sphi 0, %s46
    %s49 = sphi 0, %s48
    %s63 = sphi 0, %s49
    %s67 = sphi 0, %s67
    %s69 = sphi 0, %s67
    %s70 = sphi 0, %s69
    %s84 = sphi 0, %s70
    %s88 = sphi 0, %s88
    %s90 = sphi 0, %s88
    %s91 = sphi 0, %s90
    %s105 = sphi 0, %s91
    %s109 = sphi 0, %s109
    %s111 = sphi 0, %s109
    %s112 = sphi 0, %s111
    %s126 = sphi 0, %s112
    %s132 = sphi 0, %s134
    %s135 = sphi 0, %s132
    %s136 = sphi 0, %s135
    %s152 = sphi 0, %s136
    %s158 = sphi 0, %s160
    %s161 = sphi 0, %s158
    %s162 = sphi 0, %s161
    %s178 = sphi 0, %s162
  $region4: #{bottle_block_forward.5} parent=0 // loop_header_branch
    %15 = sbr.rel (%p13) target = $region8
  $region5: #{bottle_block_forward.5} parent=0 // loop_body
    %s17 = ssub.s32 %s12, 1
    %s18 = ssub.s32 %s12, 2
    %s19 = sadd.s32 %s12, 1
    %s20 = ssub.s32 %s12, %s19
    %p21 = scmp.eq.s32.totalorder %s20, 0
    %s23 = sadd.s32 %s22, 1
    %s24 = scalar_select %p21, %s22, %s23
    %p27 = pneg %p21
    %p28 = scmp.eq.s32.totalorder %s12, 1
    %p29 = por %p27, %p28
    %p30 = scmp.ne.s32.totalorder %s22, %s25
    %p31 = scmp.eq.s32.totalorder %s12, 0
    %p32 = por %p30, %p31
    %p33 = scmp.ne.s32.totalorder %s22, %s25
    %p34 = scmp.eq.s32.totalorder %s17, 1
    %p35 = por %p33, %p34
    %p36 = scmp.ne.s32.totalorder %s25, %s26
    %p37 = scmp.eq.s32.totalorder %s17, 0
    %p38 = por %p36, %p37
    %p39 = scmp.ne.s32.totalorder %s25, %s26
    %p40 = scmp.eq.s32.totalorder %s18, 1
    %p41 = por %p39, %p40
    %p43 = scmp.ne.s32.totalorder %s26, %s42
    %p44 = scmp.eq.s32.totalorder %s18, 0
    %p45 = por %p43, %p44
    %s47 = sadd.s32 %s46, 1
    %p50 = scmp.eq.s32.totalorder %s12, 1
    %p51 = scmp.ne.s32.totalorder %s46, %s48
    %p52 = scmp.eq.s32.totalorder %s12, 0
    %p53 = por %p51, %p52
    %p54 = scmp.ne.s32.totalorder %s46, %s48
    %p55 = scmp.eq.s32.totalorder %s17, 1
    %p56 = por %p54, %p55
    %p57 = scmp.ne.s32.totalorder %s48, %s49
    %p58 = scmp.eq.s32.totalorder %s17, 0
    %p59 = por %p57, %p58
    %p60 = scmp.ne.s32.totalorder %s48, %s49
    %p61 = scmp.eq.s32.totalorder %s18, 1
    %p62 = por %p60, %p61
    %p64 = scmp.ne.s32.totalorder %s49, %s63
    %p65 = scmp.eq.s32.totalorder %s18, 0
    %p66 = por %p64, %p65
    %s68 = sadd.s32 %s67, 1
    %p71 = scmp.eq.s32.totalorder %s12, 1
    %p72 = scmp.ne.s32.totalorder %s67, %s69
    %p73 = scmp.eq.s32.totalorder %s12, 0
    %p74 = por %p72, %p73
    %p75 = scmp.ne.s32.totalorder %s67, %s69
    %p76 = scmp.eq.s32.totalorder %s17, 1
    %p77 = por %p75, %p76
    %p78 = scmp.ne.s32.totalorder %s69, %s70
    %p79 = scmp.eq.s32.totalorder %s17, 0
    %p80 = por %p78, %p79
    %p81 = scmp.ne.s32.totalorder %s69, %s70
    %p82 = scmp.eq.s32.totalorder %s18, 1
    %p83 = por %p81, %p82
    %p85 = scmp.ne.s32.totalorder %s70, %s84
    %p86 = scmp.eq.s32.totalorder %s18, 0
    %p87 = por %p85, %p86
    %s89 = sadd.s32 %s88, 1
    %p92 = scmp.eq.s32.totalorder %s12, 1
    %p93 = scmp.ne.s32.totalorder %s88, %s90
    %p94 = scmp.eq.s32.totalorder %s12, 0
    %p95 = por %p93, %p94
    %p96 = scmp.ne.s32.totalorder %s88, %s90
    %p97 = scmp.eq.s32.totalorder %s17, 1
    %p98 = por %p96, %p97
    %p99 = scmp.ne.s32.totalorder %s90, %s91
    %p100 = scmp.eq.s32.totalorder %s17, 0
    %p101 = por %p99, %p100
    %p102 = scmp.ne.s32.totalorder %s90, %s91
    %p103 = scmp.eq.s32.totalorder %s18, 1
    %p104 = por %p102, %p103
    %p106 = scmp.ne.s32.totalorder %s91, %s105
    %p107 = scmp.eq.s32.totalorder %s18, 0
    %p108 = por %p106, %p107
    %s110 = sadd.s32 %s109, 1
    %p113 = scmp.eq.s32.totalorder %s12, 1
    %p114 = scmp.ne.s32.totalorder %s109, %s111
    %p115 = scmp.eq.s32.totalorder %s12, 0
    %p116 = por %p114, %p115
    %p117 = scmp.ne.s32.totalorder %s109, %s111
    %p118 = scmp.eq.s32.totalorder %s17, 1
    %p119 = por %p117, %p118
    %p120 = scmp.ne.s32.totalorder %s111, %s112
    %p121 = scmp.eq.s32.totalorder %s17, 0
    %p122 = por %p120, %p121
    %p123 = scmp.ne.s32.totalorder %s111, %s112
    %p124 = scmp.eq.s32.totalorder %s18, 1
    %p125 = por %p123, %p124
    %p127 = scmp.ne.s32.totalorder %s112, %s126
    %p128 = scmp.eq.s32.totalorder %s18, 0
    %p129 = por %p127, %p128
    %s130 = ssub.s32 %s12, %s19
    %p131 = scmp.eq.s32.totalorder %s130, 0
    %s133 = sadd.s32 %s132, 1
    %s134 = scalar_select %p131, %s132, %s133
    %p137 = pneg %p131
    %p138 = scmp.eq.s32.totalorder %s12, 1
    %p139 = por %p137, %p138
    %p140 = scmp.ne.s32.totalorder %s132, %s135
    %p141 = scmp.eq.s32.totalorder %s12, 0
    %p142 = por %p140, %p141
    %p143 = scmp.ne.s32.totalorder %s132, %s135
    %p144 = scmp.eq.s32.totalorder %s17, 1
    %p145 = por %p143, %p144
    %p146 = scmp.ne.s32.totalorder %s135, %s136
    %p147 = scmp.eq.s32.totalorder %s17, 0
    %p148 = por %p146, %p147
    %p149 = scmp.ne.s32.totalorder %s135, %s136
    %p150 = scmp.eq.s32.totalorder %s18, 1
    %p151 = por %p149, %p150
    %p153 = scmp.ne.s32.totalorder %s136, %s152
    %p154 = scmp.eq.s32.totalorder %s18, 0
    %p155 = por %p153, %p154
    %s156 = ssub.s32 %s12, %s19
    %p157 = scmp.eq.s32.totalorder %s156, 0
    %s159 = sadd.s32 %s158, 1
    %s160 = scalar_select %p157, %s158, %s159
    %p163 = pneg %p157
    %p164 = scmp.eq.s32.totalorder %s12, 1
    %p165 = por %p163, %p164
    %p166 = scmp.ne.s32.totalorder %s158, %s161
    %p167 = scmp.eq.s32.totalorder %s12, 0
    %p168 = por %p166, %p167
    %p169 = scmp.ne.s32.totalorder %s158, %s161
    %p170 = scmp.eq.s32.totalorder %s17, 1
    %p171 = por %p169, %p170
    %p172 = scmp.ne.s32.totalorder %s161, %s162
    %p173 = scmp.eq.s32.totalorder %s17, 0
    %p174 = por %p172, %p173
    %p175 = scmp.ne.s32.totalorder %s161, %s162
    %p176 = scmp.eq.s32.totalorder %s18, 1
    %p177 = por %p175, %p176
    %p179 = scmp.ne.s32.totalorder %s162, %s178
    %p180 = scmp.eq.s32.totalorder %s18, 0
    %p181 = por %p179, %p180
    %p182 = scmp.le.s32.totalorder 1, %s12
    %p183 = scmp.lt.s32.totalorder %s12, 3
    %p184 = pnand %p182, %p183
    %p185 = pneg %p184
    // Predicated region
    $region9: #{bottle_block_forward.5} parent=5 // pred_check
      _
    $region10: #{bottle_block_forward.5} parent=5 // pred_check_branch
      %187 = sbr.rel (%p184) target = $region12
    $region11: #{bottle_block_forward.5} parent=5 // pred_region
      %s188 = ssub.s32 %s12, 1
      // Predicated region
      $region13: #{bottle_block_forward.5} parent=11 // pred_check
        %p189 = pneg %p59
      $region14: #{bottle_block_forward.5} parent=11 // pred_check_branch
        %191 = sbr.rel (%p189) target = $region16
      $region15: #{bottle_block_forward.5} parent=11 // pred_region
        _
      $region16: #{bottle_block_forward.5} parent=11 // pred_fallthru
        _
      // Predicated region
      $region17: #{bottle_block_forward.5} parent=11 // pred_check
        %p192 = pneg %p80
      $region18: #{bottle_block_forward.5} parent=11 // pred_check_branch
        %194 = sbr.rel (%p192) target = $region20
      $region19: #{bottle_block_forward.5} parent=11 // pred_region
        _
      $region20: #{bottle_block_forward.5} parent=11 // pred_fallthru
        _
      // Predicated region
      $region21: #{bottle_block_forward.5} parent=11 // pred_check
        %p195 = pneg %p101
      $region22: #{bottle_block_forward.5} parent=11 // pred_check_branch
        %197 = sbr.rel (%p195) target = $region24
      $region23: #{bottle_block_forward.5} parent=11 // pred_region
        _
      $region24: #{bottle_block_forward.5} parent=11 // pred_fallthru
        _
      // Predicated region
      $region25: #{bottle_block_forward.5} parent=11 // pred_check
        %p198 = pneg %p122
      $region26: #{bottle_block_forward.5} parent=11 // pred_check_branch
        %200 = sbr.rel (%p198) target = $region28
      $region27: #{bottle_block_forward.5} parent=11 // pred_region
        _
      $region28: #{bottle_block_forward.5} parent=11 // pred_fallthru
        _
    $region12: #{bottle_block_forward.5} parent=5 // pred_fallthru
      _
    %p201 = scmp.lt.s32.totalorder %s12, 2
    // Predicated region
    $region29: #{bottle_block_forward.5} parent=5 // pred_check
      %p202 = pneg %p201
    $region30: #{bottle_block_forward.5} parent=5 // pred_check_branch
      %204 = sbr.rel (%p202) target = $region32
    $region31: #{bottle_block_forward.5} parent=5 // pred_region
      // Predicated region
      $region33: #{bottle_block_forward.5} parent=31 // pred_check
        %p205 = pneg %p32
      $region34: #{bottle_block_forward.5} parent=31 // pred_check_branch
        %207 = sbr.rel (%p205) target = $region36
      $region35: #{bottle_block_forward.5} parent=31 // pred_region
        %s208 = smul.u32 32, %s12
        %p209 = scmp.lt.s32.totalorder %s208, 63
        %s210 = scalar_select %p209, %s208, 63
        %s211 = smul.addr %s210, 4
        %s212 = scalar_lea.vmem %s0, %s211
        %s213 = smul.u32 32, %s12
      $region36: #{bottle_block_forward.5} parent=31 // pred_fallthru
        _
      // Predicated region
      $region37: #{bottle_block_forward.5} parent=31 // pred_check
        %p214 = pneg %p142
      $region38: #{bottle_block_forward.5} parent=31 // pred_check_branch
        %216 = sbr.rel (%p214) target = $region40
      $region39: #{bottle_block_forward.5} parent=31 // pred_region
        %s217 = smul.u32 32, %s12
        %p218 = scmp.lt.s32.totalorder %s217, 63
        %s219 = scalar_select %p218, %s217, 63
        %s220 = smul.addr %s219, 8
        %s221 = scalar_lea.vmem %s5, %s220
        %s222 = smul.u32 32, %s12
      $region40: #{bottle_block_forward.5} parent=31 // pred_fallthru
        _
    $region32: #{bottle_block_forward.5} parent=5 // pred_fallthru
      _
    %p223 = scmp.le.s32.totalorder 1, %s12
    %p224 = scmp.lt.s32.totalorder %s12, 3
    %p225 = pnand %p223, %p224
    %p226 = pneg %p225
    // Predicated region
    $region41: #{bottle_block_forward.5} parent=5 // pred_check
      _
    $region42: #{bottle_block_forward.5} parent=5 // pred_check_branch
      %228 = sbr.rel (%p225) target = $region44
    $region43: #{bottle_block_forward.5} parent=5 // pred_region
      %s229 = ssub.s32 %s12, 1
      %s230 = smul.u32 32, %s17
      %p231 = scmp.lt.s32.totalorder %s230, 63
      %s232 = scalar_select %p231, %s230, 63
      %s233 = smul.addr %s232, 4
      %s234 = scalar_lea.vmem %s0, %s233
      %p235 = pneg %p38
      %p236 = pneg %p35
      %p237 = pneg %p59
      %p238 = pneg %p56
      %p239 = pneg %p80
      %p240 = pneg %p77
      %p241 = pneg %p101
      %p242 = pneg %p98
      %p243 = pneg %p122
      %p244 = pneg %p119
      %s245 = smul.u32 32, %s17
      %p246 = scmp.lt.s32.totalorder %s245, 63
      %s247 = scalar_select %p246, %s245, 63
      %s248 = smul.addr %s247, 8
      %s249 = scalar_lea.vmem %s5, %s248
      %p250 = pneg %p148
      %p251 = pneg %p145
      %p252 = pneg %p174
      %p253 = pneg %p171
      %s254 = smul.u32 32, %s17
      %p255 = scmp.lt.s32.totalorder %s254, 63
      %s256 = scalar_select %p255, %s254, 63
      %s257 = smul.addr %s256, 8
      %s258 = scalar_lea.vmem %s6, %s257
      %s259 = smul.u32 32, %s17
      %p260 = scmp.lt.s32.totalorder %s259, 63
      %s261 = scalar_select %p260, %s259, 63
      %s262 = smul.addr %s261, 4
      %s263 = scalar_lea.vmem %s0, %s262
      %s264 = smul.u32 32, %s17
      %s265 = smul.u32 32, %s17
      %p266 = scmp.lt.s32.totalorder %s265, 63
      %s267 = scalar_select %p266, %s265, 63
      %s268 = smul.addr %s267, 8
      %s269 = scalar_lea.vmem %s5, %s268
      %s270 = smul.u32 32, %s17
      %s271 = smul.u32 32, %s17
      %p272 = scmp.lt.s32.totalorder %s271, 63
      %s273 = scalar_select %p272, %s271, 63
      %s274 = smul.addr %s273, 8
      %s275 = scalar_lea.vmem %s6, %s274
      %s276 = smul.u32 32, %s17
      %v278 = vld [vmem:[%s263] sm:$0xf]
      %v279 = vld [vmem:[%s263 + $0x4] sm:$0xf]
      %v280 = vld [vmem:[%s263 + $0x8] sm:$0xf]
      %v281 = vld [vmem:[%s263 + $0xc] sm:$0xf]
      %v282 = vld [vmem:[%s263 + $0x10] sm:$0xf]
      %v283 = vld [vmem:[%s263 + $0x14] sm:$0xf]
      %v284 = vld [vmem:[%s263 + $0x18] sm:$0xf]
      %v285 = vld [vmem:[%s263 + $0x1c] sm:$0xf]
      %v286 = vld [vmem:[%s263 + $0x20] sm:$0xf]
      %v287 = vld [vmem:[%s263 + $0x24] sm:$0xf]
      %v288 = vld [vmem:[%s263 + $0x28] sm:$0xf]
      %v289 = vld [vmem:[%s263 + $0x2c] sm:$0xf]
      %v290 = vld [vmem:[%s263 + $0x30] sm:$0xf]
      %v291 = vld [vmem:[%s263 + $0x34] sm:$0xf]
      %v292 = vld [vmem:[%s263 + $0x38] sm:$0xf]
      %v293 = vld [vmem:[%s263 + $0x3c] sm:$0xf]
      %v294 = vld [vmem:[%s263 + $0x40] sm:$0xf]
      %v295 = vld [vmem:[%s263 + $0x44] sm:$0xf]
      %v296 = vld [vmem:[%s263 + $0x48] sm:$0xf]
      %v297 = vld [vmem:[%s263 + $0x4c] sm:$0xf]
      %v298 = vld [vmem:[%s263 + $0x50] sm:$0xf]
      %v299 = vld [vmem:[%s263 + $0x54] sm:$0xf]
      %v300 = vld [vmem:[%s263 + $0x58] sm:$0xf]
      %v301 = vld [vmem:[%s263 + $0x5c] sm:$0xf]
      %v302 = vld [vmem:[%s263 + $0x60] sm:$0xf]
      %v303 = vld [vmem:[%s263 + $0x64] sm:$0xf]
      %v304 = vld [vmem:[%s263 + $0x68] sm:$0xf]
      %v305 = vld [vmem:[%s263 + $0x6c] sm:$0xf]
      %v306 = vld [vmem:[%s263 + $0x70] sm:$0xf]
      %v307 = vld [vmem:[%s263 + $0x74] sm:$0xf]
      %v308 = vld [vmem:[%s263 + $0x78] sm:$0xf]
      %v309 = vld [vmem:[%s263 + $0x7c] sm:$0xf]
      %v310 = vunpack.c.l.bf16 %v278
      %v311 = vunpack.c.l.bf16 %v279
      %v312 = vunpack.c.l.bf16 %v280
      %v313 = vunpack.c.l.bf16 %v281
      %v314 = vunpack.c.l.bf16 %v282
      %v315 = vunpack.c.l.bf16 %v283
      %v316 = vunpack.c.l.bf16 %v284
      %v317 = vunpack.c.l.bf16 %v285
      %v318 = vunpack.c.l.bf16 %v286
      %v319 = vunpack.c.l.bf16 %v287
      %v320 = vunpack.c.l.bf16 %v288
      %v321 = vunpack.c.l.bf16 %v289
      %v322 = vunpack.c.l.bf16 %v290
      %v323 = vunpack.c.l.bf16 %v291
      %v324 = vunpack.c.l.bf16 %v292
      %v325 = vunpack.c.l.bf16 %v293
      %v326 = vunpack.c.l.bf16 %v294
      %v327 = vunpack.c.l.bf16 %v295
      %v328 = vunpack.c.l.bf16 %v296
      %v329 = vunpack.c.l.bf16 %v297
      %v330 = vunpack.c.l.bf16 %v298
      %v331 = vunpack.c.l.bf16 %v299
      %v332 = vunpack.c.l.bf16 %v300
      %v333 = vunpack.c.l.bf16 %v301
      %v334 = vunpack.c.l.bf16 %v302
      %v335 = vunpack.c.l.bf16 %v303
      %v336 = vunpack.c.l.bf16 %v304
      %v337 = vunpack.c.l.bf16 %v305
      %v338 = vunpack.c.l.bf16 %v306
      %v339 = vunpack.c.l.bf16 %v307
      %v340 = vunpack.c.l.bf16 %v308
      %v341 = vunpack.c.l.bf16 %v309
      %v342 = vld [vmem:[%s1] sm:$0x1]
      %v344 = vlaneseq
      %v345 = vshrl.u32 %v344, 7
      %v346 = vsub.s32 0, %v345
      %v347 = vrot.slane %v342, %v346
      %v349 = vmul.f32 %v310, %v347
      %v350 = vmul.f32 %v311, %v347
      %v351 = vmul.f32 %v312, %v347
      %v352 = vmul.f32 %v313, %v347
      %v353 = vmul.f32 %v314, %v347
      %v354 = vmul.f32 %v315, %v347
      %v355 = vmul.f32 %v316, %v347
      %v356 = vmul.f32 %v317, %v347
      %v357 = vmul.f32 %v318, %v347
      %v358 = vmul.f32 %v319, %v347
      %v359 = vmul.f32 %v320, %v347
      %v360 = vmul.f32 %v321, %v347
      %v361 = vmul.f32 %v322, %v347
      %v362 = vmul.f32 %v323, %v347
      %v363 = vmul.f32 %v324, %v347
      %v364 = vmul.f32 %v325, %v347
      %v365 = vmul.f32 %v326, %v347
      %v366 = vmul.f32 %v327, %v347
      %v367 = vmul.f32 %v328, %v347
      %v368 = vmul.f32 %v329, %v347
      %v369 = vmul.f32 %v330, %v347
      %v370 = vmul.f32 %v331, %v347
      %v371 = vmul.f32 %v332, %v347
      %v372 = vmul.f32 %v333, %v347
      %v373 = vmul.f32 %v334, %v347
      %v374 = vmul.f32 %v335, %v347
      %v375 = vmul.f32 %v336, %v347
      %v376 = vmul.f32 %v337, %v347
      %v377 = vmul.f32 %v338, %v347
      %v378 = vmul.f32 %v339, %v347
      %v379 = vmul.f32 %v340, %v347
      %v380 = vmul.f32 %v341, %v347
      %v381 = vld [vmem:[%s2] sm:$0x1]
      %v383 = vlaneseq
      %v384 = vshrl.u32 %v383, 7
      %v385 = vsub.s32 0, %v384
      %v386 = vrot.slane %v381, %v385
      %v388 = vadd.f32 %v349, %v386
      %v389 = vadd.f32 %v350, %v386
      %v390 = vadd.f32 %v351, %v386
      %v391 = vadd.f32 %v352, %v386
      %v392 = vadd.f32 %v353, %v386
      %v393 = vadd.f32 %v354, %v386
      %v394 = vadd.f32 %v355, %v386
      %v395 = vadd.f32 %v356, %v386
      %v396 = vadd.f32 %v357, %v386
      %v397 = vadd.f32 %v358, %v386
      %v398 = vadd.f32 %v359, %v386
      %v399 = vadd.f32 %v360, %v386
      %v400 = vadd.f32 %v361, %v386
      %v401 = vadd.f32 %v362, %v386
      %v402 = vadd.f32 %v363, %v386
      %v403 = vadd.f32 %v364, %v386
      %v404 = vadd.f32 %v365, %v386
      %v405 = vadd.f32 %v366, %v386
      %v406 = vadd.f32 %v367, %v386
      %v407 = vadd.f32 %v368, %v386
      %v408 = vadd.f32 %v369, %v386
      %v409 = vadd.f32 %v370, %v386
      %v410 = vadd.f32 %v371, %v386
      %v411 = vadd.f32 %v372, %v386
      %v412 = vadd.f32 %v373, %v386
      %v413 = vadd.f32 %v374, %v386
      %v414 = vadd.f32 %v375, %v386
      %v415 = vadd.f32 %v376, %v386
      %v416 = vadd.f32 %v377, %v386
      %v417 = vadd.f32 %v378, %v386
      %v418 = vadd.f32 %v379, %v386
      %v419 = vadd.f32 %v380, %v386
      %v420 = vmax.f32 %v388, 0.0
      %v421 = vmax.f32 %v389, 0.0
      %v422 = vmax.f32 %v390, 0.0
      %v423 = vmax.f32 %v391, 0.0
      %v424 = vmax.f32 %v392, 0.0
      %v425 = vmax.f32 %v393, 0.0
      %v426 = vmax.f32 %v394, 0.0
      %v427 = vmax.f32 %v395, 0.0
      %v428 = vmax.f32 %v396, 0.0
      %v429 = vmax.f32 %v397, 0.0
      %v430 = vmax.f32 %v398, 0.0
      %v431 = vmax.f32 %v399, 0.0
      %v432 = vmax.f32 %v400, 0.0
      %v433 = vmax.f32 %v401, 0.0
      %v434 = vmax.f32 %v402, 0.0
      %v435 = vmax.f32 %v403, 0.0
      %v436 = vmax.f32 %v404, 0.0
      %v437 = vmax.f32 %v405, 0.0
      %v438 = vmax.f32 %v406, 0.0
      %v439 = vmax.f32 %v407, 0.0
      %v440 = vmax.f32 %v408, 0.0
      %v441 = vmax.f32 %v409, 0.0
      %v442 = vmax.f32 %v410, 0.0
      %v443 = vmax.f32 %v411, 0.0
      %v444 = vmax.f32 %v412, 0.0
      %v445 = vmax.f32 %v413, 0.0
      %v446 = vmax.f32 %v414, 0.0
      %v447 = vmax.f32 %v415, 0.0
      %v448 = vmax.f32 %v416, 0.0
      %v449 = vmax.f32 %v417, 0.0
      %v450 = vmax.f32 %v418, 0.0
      %v451 = vmax.f32 %v419, 0.0
      %v452 = vpack.c.bf16 %v421, %v420
      %v453 = vpack.c.bf16 %v423, %v422
      %v454 = vpack.c.bf16 %v425, %v424
      %v455 = vpack.c.bf16 %v427, %v426
      %v456 = vpack.c.bf16 %v429, %v428
      %v457 = vpack.c.bf16 %v431, %v430
      %v458 = vpack.c.bf16 %v433, %v432
      %v459 = vpack.c.bf16 %v435, %v434
      %v460 = vpack.c.bf16 %v437, %v436
      %v461 = vpack.c.bf16 %v439, %v438
      %v462 = vpack.c.bf16 %v441, %v440
      %v463 = vpack.c.bf16 %v443, %v442
      %v464 = vpack.c.bf16 %v445, %v444
      %v465 = vpack.c.bf16 %v447, %v446
      %v466 = vpack.c.bf16 %v449, %v448
      %v467 = vpack.c.bf16 %v451, %v450
      %v468 = vld [vmem:[%s3] sm:$0xf]
      %v469 = vld [vmem:[%s3 + $0x4] sm:$0xf]
      %v470 = vld [vmem:[%s3 + $0x8] sm:$0xf]
      %v471 = vld [vmem:[%s3 + $0xc] sm:$0xf]
      %v472 = vld [vmem:[%s4] sm:$0x1]
      %v474 = vlaneseq
      %v475 = vshrl.u32 %v474, 7
      %v476 = vsub.s32 0, %v475
      %v477 = vrot.slane %v472, %v476
      %v483 = vunpack.c.l.b16 %v468
      %v484 = vunpack.c.l.b16 %v469
      %v485 = vunpack.c.l.b16 %v470
      %v486 = vunpack.c.l.b16 %v471
      %v487 = vpack.c.b16 %v484, %v483
      %v488 = vpack.c.b16 %v486, %v485
      %vm491 = vcmask 261120
      %v493 = vsel %vm491, %v452, 0
      %v496 = vsel %vm491, %v453, 0
      %v499 = vsel %vm491, %v454, 0
      %v502 = vsel %vm491, %v455, 0
      %v505 = vsel %vm491, %v456, 0
      %v508 = vsel %vm491, %v457, 0
      %v511 = vsel %vm491, %v458, 0
      %v514 = vsel %vm491, %v459, 0
      %v517 = vsel %vm491, %v460, 0
      %v520 = vsel %vm491, %v461, 0
      %v523 = vsel %vm491, %v462, 0
      %v526 = vsel %vm491, %v463, 0
      %v529 = vsel %vm491, %v464, 0
      %v532 = vsel %vm491, %v465, 0
      %v535 = vsel %vm491, %v466, 0
      %v538 = vsel %vm491, %v467, 0
      %540 = vmatprep.subr.bf16.mxu0 0
      %541 = vmatpush1.bf16.msra.mxu0 %v487
      %542 = vmatprep.subr.bf16.mxu0 0
      %543 = vmatpush1.bf16.msra.mxu0 %v488
      %544 = vmatprep.subr.bf16.mxu0 0
      %545 = vmatpush1.bf16.msra.mxu0 0
      %546 = vmatprep.subr.bf16.mxu0 0
      %547 = vmatpush1.bf16.msra.mxu0 0
      %548 = vmatprep.subr.bf16.mxu0 0
      %549 = vmatpush1.bf16.msra.mxu0 0
      %550 = vmatprep.subr.bf16.mxu0 0
      %551 = vmatpush1.bf16.msra.mxu0 0
      %552 = vmatprep.subr.bf16.mxu0 0
      %553 = vmatpush1.bf16.msra.mxu0 0
      %554 = vmatprep.subr.bf16.mxu0 0
      %555 = vmatpush1.bf16.msra.mxu0 0
      %556 = vmatprep.subr.bf16.mxu0 0
      %557 = vmatpush1.bf16.msra.mxu0 0
      %558 = vmatprep.subr.bf16.mxu0 0
      %559 = vmatpush1.bf16.msra.mxu0 0
      %560 = vmatprep.subr.bf16.mxu0 0
      %561 = vmatpush1.bf16.msra.mxu0 0
      %562 = vmatprep.subr.bf16.mxu0 0
      %563 = vmatpush1.bf16.msra.mxu0 0
      %564 = vmatprep.subr.bf16.mxu0 0
      %565 = vmatpush1.bf16.msra.mxu0 0
      %566 = vmatprep.subr.bf16.mxu0 0
      %567 = vmatpush1.bf16.msra.mxu0 0
      %568 = vmatprep.subr.bf16.mxu0 0
      %569 = vmatpush1.bf16.msra.mxu0 0
      %570 = vmatprep.subr.bf16.mxu0 0
      %571 = vmatpush1.bf16.msra.mxu0 0
      %572 = vmatprep.mubr.bf16.mxu0 0
      %573 = vmatmul.mubr.bf16.gmra.mrb[0].mxu0 %v493
      %v574 = vpop.f32.mrb[0].mxu0
      %v575 = vadd.f32 %v477, %v574
      %v576 = vpop.f32.mrb[0].mxu0
      %v577 = vpop.f32.mrb[0].mxu0
      %v578 = vadd.f32 %v477, %v577
      %v579 = vpop.f32.mrb[0].mxu0
      %580 = vmatprep.mubr.bf16.mxu0 0
      %581 = vmatmul.mubr.bf16.gmra.mrb[0].mxu0 %v496
      %v582 = vpop.f32.mrb[0].mxu0
      %v583 = vadd.f32 %v477, %v582
      %v584 = vpop.f32.mrb[0].mxu0
      %v585 = vpop.f32.mrb[0].mxu0
      %v586 = vadd.f32 %v477, %v585
      %v587 = vpop.f32.mrb[0].mxu0
      %588 = vmatprep.mubr.bf16.mxu0 0
      %589 = vmatmul.mubr.bf16.gmra.mrb[0].mxu0 %v499
      %v590 = vpop.f32.mrb[0].mxu0
      %v591 = vadd.f32 %v477, %v590
      %v592 = vpop.f32.mrb[0].mxu0
      %v593 = vpop.f32.mrb[0].mxu0
      %v594 = vadd.f32 %v477, %v593
      %v595 = vpop.f32.mrb[0].mxu0
      %596 = vmatprep.mubr.bf16.mxu0 0
      %597 = vmatmul.mubr.bf16.gmra.mrb[0].mxu0 %v502
      %v598 = vpop.f32.mrb[0].mxu0
      %v599 = vadd.f32 %v477, %v598
      %v600 = vpop.f32.mrb[0].mxu0
      %v601 = vpop.f32.mrb[0].mxu0
      %v602 = vadd.f32 %v477, %v601
      %v603 = vpop.f32.mrb[0].mxu0
      %604 = vmatprep.mubr.bf16.mxu0 0
      %605 = vmatmul.mubr.bf16.gmra.mrb[0].mxu0 %v505
      %v606 = vpop.f32.mrb[0].mxu0
      %v607 = vadd.f32 %v477, %v606
      %v608 = vpop.f32.mrb[0].mxu0
      %v609 = vpop.f32.mrb[0].mxu0
      %v610 = vadd.f32 %v477, %v609
      %v611 = vpop.f32.mrb[0].mxu0
      %612 = vmatprep.mubr.bf16.mxu0 0
      %613 = vmatmul.mubr.bf16.gmra.mrb[0].mxu0 %v508
      %v614 = vpop.f32.mrb[0].mxu0
      %v615 = vadd.f32 %v477, %v614
      %v616 = vpop.f32.mrb[0].mxu0
      %v617 = vpop.f32.mrb[0].mxu0
      %v618 = vadd.f32 %v477, %v617
      %v619 = vpop.f32.mrb[0].mxu0
      %620 = vmatprep.mubr.bf16.mxu0 0
      %621 = vmatmul.mubr.bf16.gmra.mrb[0].mxu0 %v511
      %v622 = vpop.f32.mrb[0].mxu0
      %v623 = vadd.f32 %v477, %v622
      %v624 = vpop.f32.mrb[0].mxu0
      %v625 = vpop.f32.mrb[0].mxu0
      %v626 = vadd.f32 %v477, %v625
      %v627 = vpop.f32.mrb[0].mxu0
      %628 = vmatprep.mubr.bf16.mxu0 0
      %629 = vmatmul.mubr.bf16.gmra.mrb[0].mxu0 %v514
      %v630 = vpop.f32.mrb[0].mxu0
      %v631 = vadd.f32 %v477, %v630
      %v632 = vpop.f32.mrb[0].mxu0
      %v633 = vpop.f32.mrb[0].mxu0
      %v634 = vadd.f32 %v477, %v633
      %v635 = vpop.f32.mrb[0].mxu0
      %636 = vmatprep.mubr.bf16.mxu0 0
      %637 = vmatmul.mubr.bf16.gmra.mrb[0].mxu0 %v517
      %v638 = vpop.f32.mrb[0].mxu0
      %v639 = vadd.f32 %v477, %v638
      %v640 = vpop.f32.mrb[0].mxu0
      %v641 = vpop.f32.mrb[0].mxu0
      %v642 = vadd.f32 %v477, %v641
      %v643 = vpop.f32.mrb[0].mxu0
      %644 = vmatprep.mubr.bf16.mxu0 0
      %645 = vmatmul.mubr.bf16.gmra.mrb[0].mxu0 %v520
      %v646 = vpop.f32.mrb[0].mxu0
      %v647 = vadd.f32 %v477, %v646
      %v648 = vpop.f32.mrb[0].mxu0
      %v649 = vpop.f32.mrb[0].mxu0
      %v650 = vadd.f32 %v477, %v649
      %v651 = vpop.f32.mrb[0].mxu0
      %652 = vmatprep.mubr.bf16.mxu0 0
      %653 = vmatmul.mubr.bf16.gmra.mrb[0].mxu0 %v523
      %v654 = vpop.f32.mrb[0].mxu0
      %v655 = vadd.f32 %v477, %v654
      %v656 = vpop.f32.mrb[0].mxu0
      %v657 = vpop.f32.mrb[0].mxu0
      %v658 = vadd.f32 %v477, %v657
      %v659 = vpop.f32.mrb[0].mxu0
      %660 = vmatprep.mubr.bf16.mxu0 0
      %661 = vmatmul.mubr.bf16.gmra.mrb[0].mxu0 %v526
      %v662 = vpop.f32.mrb[0].mxu0
      %v663 = vadd.f32 %v477, %v662
      %v664 = vpop.f32.mrb[0].mxu0
      %v665 = vpop.f32.mrb[0].mxu0
      %v666 = vadd.f32 %v477, %v665
      %v667 = vpop.f32.mrb[0].mxu0
      %668 = vmatprep.mubr.bf16.mxu0 0
      %669 = vmatmul.mubr.bf16.gmra.mrb[0].mxu0 %v529
      %v670 = vpop.f32.mrb[0].mxu0
      %v671 = vadd.f32 %v477, %v670
      %v672 = vpop.f32.mrb[0].mxu0
      %v673 = vpop.f32.mrb[0].mxu0
      %v674 = vadd.f32 %v477, %v673
      %v675 = vpop.f32.mrb[0].mxu0
      %676 = vmatprep.mubr.bf16.mxu0 0
      %677 = vmatmul.mubr.bf16.gmra.mrb[0].mxu0 %v532
      %v678 = vpop.f32.mrb[0].mxu0
      %v679 = vadd.f32 %v477, %v678
      %v680 = vpop.f32.mrb[0].mxu0
      %v681 = vpop.f32.mrb[0].mxu0
      %v682 = vadd.f32 %v477, %v681
      %v683 = vpop.f32.mrb[0].mxu0
      %684 = vmatprep.mubr.bf16.mxu0 0
      %685 = vmatmul.mubr.bf16.gmra.mrb[0].mxu0 %v535
      %v686 = vpop.f32.mrb[0].mxu0
      %v687 = vadd.f32 %v477, %v686
      %v688 = vpop.f32.mrb[0].mxu0
      %v689 = vpop.f32.mrb[0].mxu0
      %v690 = vadd.f32 %v477, %v689
      %v691 = vpop.f32.mrb[0].mxu0
      %692 = vmatprep.mubr.bf16.mxu0 0
      %693 = vmatmul.mubr.bf16.gmra.mrb[0].mxu0 %v538
      %v694 = vpop.f32.mrb[0].mxu0
      %v695 = vadd.f32 %v477, %v694
      %v696 = vpop.f32.mrb[0].mxu0
      %v697 = vpop.f32.mrb[0].mxu0
      %v698 = vadd.f32 %v477, %v697
      %v699 = vpop.f32.mrb[0].mxu0
      %700 = vdwg.mxu0
      %v701 = vld [vmem:[%s269] sm:$0xff]
      %v702 = vld [vmem:[%s269 + $0x8] sm:$0xff]
      %v703 = vld [vmem:[%s269 + $0x10] sm:$0xff]
      %v704 = vld [vmem:[%s269 + $0x18] sm:$0xff]
      %v705 = vld [vmem:[%s269 + $0x20] sm:$0xff]
      %v706 = vld [vmem:[%s269 + $0x28] sm:$0xff]
      %v707 = vld [vmem:[%s269 + $0x30] sm:$0xff]
      %v708 = vld [vmem:[%s269 + $0x38] sm:$0xff]
      %v709 = vld [vmem:[%s269 + $0x40] sm:$0xff]
      %v710 = vld [vmem:[%s269 + $0x48] sm:$0xff]
      %v711 = vld [vmem:[%s269 + $0x50] sm:$0xff]
      %v712 = vld [vmem:[%s269 + $0x58] sm:$0xff]
      %v713 = vld [vmem:[%s269 + $0x60] sm:$0xff]
      %v714 = vld [vmem:[%s269 + $0x68] sm:$0xff]
      %v715 = vld [vmem:[%s269 + $0x70] sm:$0xff]
      %v716 = vld [vmem:[%s269 + $0x78] sm:$0xff]
      %v717 = vld [vmem:[%s269 + $0x80] sm:$0xff]
      %v718 = vld [vmem:[%s269 + $0x88] sm:$0xff]
      %v719 = vld [vmem:[%s269 + $0x90] sm:$0xff]
      %v720 = vld [vmem:[%s269 + $0x98] sm:$0xff]
      %v721 = vld [vmem:[%s269 + $0xa0] sm:$0xff]
      %v722 = vld [vmem:[%s269 + $0xa8] sm:$0xff]
      %v723 = vld [vmem:[%s269 + $0xb0] sm:$0xff]
      %v724 = vld [vmem:[%s269 + $0xb8] sm:$0xff]
      %v725 = vld [vmem:[%s269 + $0xc0] sm:$0xff]
      %v726 = vld [vmem:[%s269 + $0xc8] sm:$0xff]
      %v727 = vld [vmem:[%s269 + $0xd0] sm:$0xff]
      %v728 = vld [vmem:[%s269 + $0xd8] sm:$0xff]
      %v729 = vld [vmem:[%s269 + $0xe0] sm:$0xff]
      %v730 = vld [vmem:[%s269 + $0xe8] sm:$0xff]
      %v731 = vld [vmem:[%s269 + $0xf0] sm:$0xff]
      %v732 = vld [vmem:[%s269 + $0xf8] sm:$0xff]
      %v733 = vadd.f32 %v575, %v701
      %v734 = vadd.f32 %v578, %v702
      %v735 = vadd.f32 %v583, %v703
      %v736 = vadd.f32 %v586, %v704
      %v737 = vadd.f32 %v591, %v705
      %v738 = vadd.f32 %v594, %v706
      %v739 = vadd.f32 %v599, %v707
      %v740 = vadd.f32 %v602, %v708
      %v741 = vadd.f32 %v607, %v709
      %v742 = vadd.f32 %v610, %v710
      %v743 = vadd.f32 %v615, %v711
      %v744 = vadd.f32 %v618, %v712
      %v745 = vadd.f32 %v623, %v713
      %v746 = vadd.f32 %v626, %v714
      %v747 = vadd.f32 %v631, %v715
      %v748 = vadd.f32 %v634, %v716
      %v749 = vadd.f32 %v639, %v717
      %v750 = vadd.f32 %v642, %v718
      %v751 = vadd.f32 %v647, %v719
      %v752 = vadd.f32 %v650, %v720
      %v753 = vadd.f32 %v655, %v721
      %v754 = vadd.f32 %v658, %v722
      %v755 = vadd.f32 %v663, %v723
      %v756 = vadd.f32 %v666, %v724
      %v757 = vadd.f32 %v671, %v725
      %v758 = vadd.f32 %v674, %v726
      %v759 = vadd.f32 %v679, %v727
      %v760 = vadd.f32 %v682, %v728
      %v761 = vadd.f32 %v687, %v729
      %v762 = vadd.f32 %v690, %v730
      %v763 = vadd.f32 %v695, %v731
      %v764 = vadd.f32 %v698, %v732
      %v765 = vmax.f32 %v733, 0.0
      %v766 = vmax.f32 %v734, 0.0
      %v767 = vmax.f32 %v735, 0.0
      %v768 = vmax.f32 %v736, 0.0
      %v769 = vmax.f32 %v737, 0.0
      %v770 = vmax.f32 %v738, 0.0
      %v771 = vmax.f32 %v739, 0.0
      %v772 = vmax.f32 %v740, 0.0
      %v773 = vmax.f32 %v741, 0.0
      %v774 = vmax.f32 %v742, 0.0
      %v775 = vmax.f32 %v743, 0.0
      %v776 = vmax.f32 %v744, 0.0
      %v777 = vmax.f32 %v745, 0.0
      %v778 = vmax.f32 %v746, 0.0
      %v779 = vmax.f32 %v747, 0.0
      %v780 = vmax.f32 %v748, 0.0
      %v781 = vmax.f32 %v749, 0.0
      %v782 = vmax.f32 %v750, 0.0
      %v783 = vmax.f32 %v751, 0.0
      %v784 = vmax.f32 %v752, 0.0
      %v785 = vmax.f32 %v753, 0.0
      %v786 = vmax.f32 %v754, 0.0
      %v787 = vmax.f32 %v755, 0.0
      %v788 = vmax.f32 %v756, 0.0
      %v789 = vmax.f32 %v757, 0.0
      %v790 = vmax.f32 %v758, 0.0
      %v791 = vmax.f32 %v759, 0.0
      %v792 = vmax.f32 %v760, 0.0
      %v793 = vmax.f32 %v761, 0.0
      %v794 = vmax.f32 %v762, 0.0
      %v795 = vmax.f32 %v763, 0.0
      %v796 = vmax.f32 %v764, 0.0
      %vm797 = vcmask 64512
      %798 = vst.msk [vmem:[%s275] sm:$0xff] %vm797, %v765
      %799 = vst.msk [vmem:[%s275 + $0x8] sm:$0xff] %vm797, %v766
      %800 = vst.msk [vmem:[%s275 + $0x10] sm:$0xff] %vm797, %v767
      %801 = vst.msk [vmem:[%s275 + $0x18] sm:$0xff] %vm797, %v768
      %802 = vst.msk [vmem:[%s275 + $0x20] sm:$0xff] %vm797, %v769
      %803 = vst.msk [vmem:[%s275 + $0x28] sm:$0xff] %vm797, %v770
      %804 = vst.msk [vmem:[%s275 + $0x30] sm:$0xff] %vm797, %v771
      %805 = vst.msk [vmem:[%s275 + $0x38] sm:$0xff] %vm797, %v772
      %806 = vst.msk [vmem:[%s275 + $0x40] sm:$0xff] %vm797, %v773
      %807 = vst.msk [vmem:[%s275 + $0x48] sm:$0xff] %vm797, %v774
      %808 = vst.msk [vmem:[%s275 + $0x50] sm:$0xff] %vm797, %v775
      %809 = vst.msk [vmem:[%s275 + $0x58] sm:$0xff] %vm797, %v776
      %810 = vst.msk [vmem:[%s275 + $0x60] sm:$0xff] %vm797, %v777
      %811 = vst.msk [vmem:[%s275 + $0x68] sm:$0xff] %vm797, %v778
      %812 = vst.msk [vmem:[%s275 + $0x70] sm:$0xff] %vm797, %v779
      %813 = vst.msk [vmem:[%s275 + $0x78] sm:$0xff] %vm797, %v780
      %814 = vst.msk [vmem:[%s275 + $0x80] sm:$0xff] %vm797, %v781
      %815 = vst.msk [vmem:[%s275 + $0x88] sm:$0xff] %vm797, %v782
      %816 = vst.msk [vmem:[%s275 + $0x90] sm:$0xff] %vm797, %v783
      %817 = vst.msk [vmem:[%s275 + $0x98] sm:$0xff] %vm797, %v784
      %818 = vst.msk [vmem:[%s275 + $0xa0] sm:$0xff] %vm797, %v785
      %819 = vst.msk [vmem:[%s275 + $0xa8] sm:$0xff] %vm797, %v786
      %820 = vst.msk [vmem:[%s275 + $0xb0] sm:$0xff] %vm797, %v787
      %821 = vst.msk [vmem:[%s275 + $0xb8] sm:$0xff] %vm797, %v788
      %822 = vst.msk [vmem:[%s275 + $0xc0] sm:$0xff] %vm797, %v789
      %823 = vst.msk [vmem:[%s275 + $0xc8] sm:$0xff] %vm797, %v790
      %824 = vst.msk [vmem:[%s275 + $0xd0] sm:$0xff] %vm797, %v791
      %825 = vst.msk [vmem:[%s275 + $0xd8] sm:$0xff] %vm797, %v792
      %826 = vst.msk [vmem:[%s275 + $0xe0] sm:$0xff] %vm797, %v793
      %827 = vst.msk [vmem:[%s275 + $0xe8] sm:$0xff] %vm797, %v794
      %828 = vst.msk [vmem:[%s275 + $0xf0] sm:$0xff] %vm797, %v795
      %829 = vst.msk [vmem:[%s275 + $0xf8] sm:$0xff] %vm797, %v796
      %s830 = smul.u32 32, %s17
      %p831 = scmp.lt.s32.totalorder %s830, 63
      %s832 = scalar_select %p831, %s830, 63
      %s833 = smul.addr %s832, 8
      %s834 = scalar_lea.vmem %s6, %s833
      // Predicated region
      $region45: #{bottle_block_forward.5} parent=43 // pred_check
        %p835 = pneg %p171
      $region46: #{bottle_block_forward.5} parent=43 // pred_check_branch
        %837 = sbr.rel (%p835) target = $region48
      $region47: #{bottle_block_forward.5} parent=43 // pred_region
        %s838 = smul.u32 32, %s17
      $region48: #{bottle_block_forward.5} parent=43 // pred_fallthru
        _
    $region44: #{bottle_block_forward.5} parent=5 // pred_fallthru
      _
    %p839 = scmp.le.s32.totalorder 2, %s12
    // Predicated region
    $region49: #{bottle_block_forward.5} parent=5 // pred_check
      %p840 = pneg %p839
    $region50: #{bottle_block_forward.5} parent=5 // pred_check_branch
      %842 = sbr.rel (%p840) target = $region52
    $region51: #{bottle_block_forward.5} parent=5 // pred_region
      %s843 = ssub.s32 %s12, 2
      // Predicated region
      $region53: #{bottle_block_forward.5} parent=51 // pred_check
        %p844 = pneg %p177
      $region54: #{bottle_block_forward.5} parent=51 // pred_check_branch
        %846 = sbr.rel (%p844) target = $region56
      $region55: #{bottle_block_forward.5} parent=51 // pred_region
        %s847 = smul.u32 32, %s18
        %p848 = scmp.lt.s32.totalorder %s847, 63
        %s849 = scalar_select %p848, %s847, 63
        %s850 = smul.addr %s849, 8
        %s851 = scalar_lea.vmem %s6, %s850
      $region56: #{bottle_block_forward.5} parent=51 // pred_fallthru
        _
    $region52: #{bottle_block_forward.5} parent=5 // pred_fallthru
      _
  $region6: #{bottle_block_forward.5} parent=0 // loop_footer
    %s16 = sadd.s32 1, %s12
  $region7: #{bottle_block_forward.5} parent=0 // loop_footer_branch
    %11 = sbr.rel target = $region3
  $region8: #{bottle_block_forward.5} parent=0 // loop_exit
    _

// kernel: bottle_block_forward.3
$region0: #{bottle_block_forward.3}
  #allocation0 [shape = 'u32[]', space=smem, size = 0x4, offset = 0x4, fixed_abs, tag = 'smem constant byte address 0x4 - core index']
  #allocation1 [shape = 'u32[144,128]{1,0:T(1,128)}', space=vmem, size = 0x12000, scoped, tag = 'internal scratch']
  %s0 = inlined_call_operand.vmem [shape: f32[512,4], index: 0, kind: input, shape index: {}]
  %s1 = inlined_call_operand.vmem [shape: bf16[4,8], index: 1, kind: input, shape index: {}]
  %s2 = inlined_call_operand.vmem [shape: f32[1,8], index: 2, kind: input, shape index: {}]
  %s3 = inlined_call_operand.vmem [shape: bf16[4,4], index: 3, kind: input, shape index: {}]
  %s4 = inlined_call_operand.vmem [shape: f32[1,4], index: 4, kind: input, shape index: {}]
  %s5 = inlined_call_operand.vmem [shape: bf16[4,96], index: 5, kind: input, shape index: {}]
  %s6 = inlined_call_operand.vmem [shape: f32[512,8], index: 6, kind: output, shape index: {0}]
  %s7 = inlined_call_operand.vmem [shape: bf16[512,96], index: 7, kind: output, shape index: {1}]
  %8 = xla_tuple %s6, %s7
  %s9 = sld [smem:[#allocation0]]
  $region65: #{bottle_block_forward.3} parent=0
    _
  %s11 = ssub.s32 1, %s9
  %s12 = scalar_select 0, %s11, %s9
  loop: start=0, step=1, limit=4
  $region2: #{bottle_block_forward.3} parent=0 // loop_pre_header
    _
  $region3: #{bottle_block_forward.3} parent=0 // loop_header
    %s14 = sphi 0, %s18
    %p15 = scmp.ge.s32.totalorder %s14, 4
    %s24 = sphi 0, %s26
    %s27 = sphi 0, %s24
    %s28 = sphi 0, %s27
    %s44 = sphi 0, %s28
    %s48 = sphi 0, %s48
    %s50 = sphi 0, %s48
    %s51 = sphi 0, %s50
    %s65 = sphi 0, %s51
    %s69 = sphi 0, %s69
    %s71 = sphi 0, %s69
    %s72 = sphi 0, %s71
    %s86 = sphi 0, %s72
    %s90 = sphi 0, %s90
    %s92 = sphi 0, %s90
    %s93 = sphi 0, %s92
    %s107 = sphi 0, %s93
    %s111 = sphi 0, %s111
    %s113 = sphi 0, %s111
    %s114 = sphi 0, %s113
    %s128 = sphi 0, %s114
    %s132 = sphi 0, %s132
    %s134 = sphi 0, %s132
    %s135 = sphi 0, %s134
    %s149 = sphi 0, %s135
    %s155 = sphi 0, %s157
    %s158 = sphi 0, %s155
    %s159 = sphi 0, %s158
    %s175 = sphi 0, %s159
    %s181 = sphi 0, %s183
    %s184 = sphi 0, %s181
    %s185 = sphi 0, %s184
    %s201 = sphi 0, %s185
  $region4: #{bottle_block_forward.3} parent=0 // loop_header_branch
    %17 = sbr.rel (%p15) target = $region8
  $region5: #{bottle_block_forward.3} parent=0 // loop_body
    %s19 = ssub.s32 %s14, 1
    %s20 = ssub.s32 %s14, 2
    %s21 = sadd.s32 %s14, 1
    %s22 = ssub.s32 %s14, %s21
    %p23 = scmp.eq.s32.totalorder %s22, 0
    %s25 = sadd.s32 %s24, 1
    %s26 = scalar_select %p23, %s24, %s25
    %p29 = pneg %p23
    %p30 = scmp.eq.s32.totalorder %s14, 1
    %p31 = por %p29, %p30
    %p32 = scmp.ne.s32.totalorder %s24, %s27
    %p33 = scmp.eq.s32.totalorder %s14, 0
    %p34 = por %p32, %p33
    %p35 = scmp.ne.s32.totalorder %s24, %s27
    %p36 = scmp.eq.s32.totalorder %s19, 1
    %p37 = por %p35, %p36
    %p38 = scmp.ne.s32.totalorder %s27, %s28
    %p39 = scmp.eq.s32.totalorder %s19, 0
    %p40 = por %p38, %p39
    %p41 = scmp.ne.s32.totalorder %s27, %s28
    %p42 = scmp.eq.s32.totalorder %s20, 1
    %p43 = por %p41, %p42
    %p45 = scmp.ne.s32.totalorder %s28, %s44
    %p46 = scmp.eq.s32.totalorder %s20, 0
    %p47 = por %p45, %p46
    %s49 = sadd.s32 %s48, 1
    %p52 = scmp.eq.s32.totalorder %s14, 1
    %p53 = scmp.ne.s32.totalorder %s48, %s50
    %p54 = scmp.eq.s32.totalorder %s14, 0
    %p55 = por %p53, %p54
    %p56 = scmp.ne.s32.totalorder %s48, %s50
    %p57 = scmp.eq.s32.totalorder %s19, 1
    %p58 = por %p56, %p57
    %p59 = scmp.ne.s32.totalorder %s50, %s51
    %p60 = scmp.eq.s32.totalorder %s19, 0
    %p61 = por %p59, %p60
    %p62 = scmp.ne.s32.totalorder %s50, %s51
    %p63 = scmp.eq.s32.totalorder %s20, 1
    %p64 = por %p62, %p63
    %p66 = scmp.ne.s32.totalorder %s51, %s65
    %p67 = scmp.eq.s32.totalorder %s20, 0
    %p68 = por %p66, %p67
    %s70 = sadd.s32 %s69, 1
    %p73 = scmp.eq.s32.totalorder %s14, 1
    %p74 = scmp.ne.s32.totalorder %s69, %s71
    %p75 = scmp.eq.s32.totalorder %s14, 0
    %p76 = por %p74, %p75
    %p77 = scmp.ne.s32.totalorder %s69, %s71
    %p78 = scmp.eq.s32.totalorder %s19, 1
    %p79 = por %p77, %p78
    %p80 = scmp.ne.s32.totalorder %s71, %s72
    %p81 = scmp.eq.s32.totalorder %s19, 0
    %p82 = por %p80, %p81
    %p83 = scmp.ne.s32.totalorder %s71, %s72
    %p84 = scmp.eq.s32.totalorder %s20, 1
    %p85 = por %p83, %p84
    %p87 = scmp.ne.s32.totalorder %s72, %s86
    %p88 = scmp.eq.s32.totalorder %s20, 0
    %p89 = por %p87, %p88
    %s91 = sadd.s32 %s90, 1
    %p94 = scmp.eq.s32.totalorder %s14, 1
    %p95 = scmp.ne.s32.totalorder %s90, %s92
    %p96 = scmp.eq.s32.totalorder %s14, 0
    %p97 = por %p95, %p96
    %p98 = scmp.ne.s32.totalorder %s90, %s92
    %p99 = scmp.eq.s32.totalorder %s19, 1
    %p100 = por %p98, %p99
    %p101 = scmp.ne.s32.totalorder %s92, %s93
    %p102 = scmp.eq.s32.totalorder %s19, 0
    %p103 = por %p101, %p102
    %p104 = scmp.ne.s32.totalorder %s92, %s93
    %p105 = scmp.eq.s32.totalorder %s20, 1
    %p106 = por %p104, %p105
    %p108 = scmp.ne.s32.totalorder %s93, %s107
    %p109 = scmp.eq.s32.totalorder %s20, 0
    %p110 = por %p108, %p109
    %s112 = sadd.s32 %s111, 1
    %p115 = scmp.eq.s32.totalorder %s14, 1
    %p116 = scmp.ne.s32.totalorder %s111, %s113
    %p117 = scmp.eq.s32.totalorder %s14, 0
    %p118 = por %p116, %p117
    %p119 = scmp.ne.s32.totalorder %s111, %s113
    %p120 = scmp.eq.s32.totalorder %s19, 1
    %p121 = por %p119, %p120
    %p122 = scmp.ne.s32.totalorder %s113, %s114
    %p123 = scmp.eq.s32.totalorder %s19, 0
    %p124 = por %p122, %p123
    %p125 = scmp.ne.s32.totalorder %s113, %s114
    %p126 = scmp.eq.s32.totalorder %s20, 1
    %p127 = por %p125, %p126
    %p129 = scmp.ne.s32.totalorder %s114, %s128
    %p130 = scmp.eq.s32.totalorder %s20, 0
    %p131 = por %p129, %p130
    %s133 = sadd.s32 %s132, 1
    %p136 = scmp.eq.s32.totalorder %s14, 1
    %p137 = scmp.ne.s32.totalorder %s132, %s134
    %p138 = scmp.eq.s32.totalorder %s14, 0
    %p139 = por %p137, %p138
    %p140 = scmp.ne.s32.totalorder %s132, %s134
    %p141 = scmp.eq.s32.totalorder %s19, 1
    %p142 = por %p140, %p141
    %p143 = scmp.ne.s32.totalorder %s134, %s135
    %p144 = scmp.eq.s32.totalorder %s19, 0
    %p145 = por %p143, %p144
    %p146 = scmp.ne.s32.totalorder %s134, %s135
    %p147 = scmp.eq.s32.totalorder %s20, 1
    %p148 = por %p146, %p147
    %p150 = scmp.ne.s32.totalorder %s135, %s149
    %p151 = scmp.eq.s32.totalorder %s20, 0
    %p152 = por %p150, %p151
    %s153 = ssub.s32 %s14, %s21
    %p154 = scmp.eq.s32.totalorder %s153, 0
    %s156 = sadd.s32 %s155, 1
    %s157 = scalar_select %p154, %s155, %s156
    %p160 = pneg %p154
    %p161 = scmp.eq.s32.totalorder %s14, 1
    %p162 = por %p160, %p161
    %p163 = scmp.ne.s32.totalorder %s155, %s158
    %p164 = scmp.eq.s32.totalorder %s14, 0
    %p165 = por %p163, %p164
    %p166 = scmp.ne.s32.totalorder %s155, %s158
    %p167 = scmp.eq.s32.totalorder %s19, 1
    %p168 = por %p166, %p167
    %p169 = scmp.ne.s32.totalorder %s158, %s159
    %p170 = scmp.eq.s32.totalorder %s19, 0
    %p171 = por %p169, %p170
    %p172 = scmp.ne.s32.totalorder %s158, %s159
    %p173 = scmp.eq.s32.totalorder %s20, 1
    %p174 = por %p172, %p173
    %p176 = scmp.ne.s32.totalorder %s159, %s175
    %p177 = scmp.eq.s32.totalorder %s20, 0
    %p178 = por %p176, %p177
    %s179 = ssub.s32 %s14, %s21
    %p180 = scmp.eq.s32.totalorder %s179, 0
    %s182 = sadd.s32 %s181, 1
    %s183 = scalar_select %p180, %s181, %s182
    %p186 = pneg %p180
    %p187 = scmp.eq.s32.totalorder %s14, 1
    %p188 = por %p186, %p187
    %p189 = scmp.ne.s32.totalorder %s181, %s184
    %p190 = scmp.eq.s32.totalorder %s14, 0
    %p191 = por %p189, %p190
    %p192 = scmp.ne.s32.totalorder %s181, %s184
    %p193 = scmp.eq.s32.totalorder %s19, 1
    %p194 = por %p192, %p193
    %p195 = scmp.ne.s32.totalorder %s184, %s185
    %p196 = scmp.eq.s32.totalorder %s19, 0
    %p197 = por %p195, %p196
    %p198 = scmp.ne.s32.totalorder %s184, %s185
    %p199 = scmp.eq.s32.totalorder %s20, 1
    %p200 = por %p198, %p199
    %p202 = scmp.ne.s32.totalorder %s185, %s201
    %p203 = scmp.eq.s32.totalorder %s20, 0
    %p204 = por %p202, %p203
    %p205 = scmp.le.s32.totalorder 1, %s14
    %p206 = scmp.lt.s32.totalorder %s14, 3
    %p207 = pnand %p205, %p206
    %p208 = pneg %p207
    // Predicated region
    $region9: #{bottle_block_forward.3} parent=5 // pred_check
      _
    $region10: #{bottle_block_forward.3} parent=5 // pred_check_branch
      %210 = sbr.rel (%p207) target = $region12
    $region11: #{bottle_block_forward.3} parent=5 // pred_region
      %s211 = ssub.s32 %s14, 1
      // Predicated region
      $region13: #{bottle_block_forward.3} parent=11 // pred_check
        %p212 = pneg %p61
      $region14: #{bottle_block_forward.3} parent=11 // pred_check_branch
        %214 = sbr.rel (%p212) target = $region16
      $region15: #{bottle_block_forward.3} parent=11 // pred_region
        _
      $region16: #{bottle_block_forward.3} parent=11 // pred_fallthru
        _
      // Predicated region
      $region17: #{bottle_block_forward.3} parent=11 // pred_check
        %p215 = pneg %p82
      $region18: #{bottle_block_forward.3} parent=11 // pred_check_branch
        %217 = sbr.rel (%p215) target = $region20
      $region19: #{bottle_block_forward.3} parent=11 // pred_region
        _
      $region20: #{bottle_block_forward.3} parent=11 // pred_fallthru
        _
      // Predicated region
      $region21: #{bottle_block_forward.3} parent=11 // pred_check
        %p218 = pneg %p103
      $region22: #{bottle_block_forward.3} parent=11 // pred_check_branch
        %220 = sbr.rel (%p218) target = $region24
      $region23: #{bottle_block_forward.3} parent=11 // pred_region
        _
      $region24: #{bottle_block_forward.3} parent=11 // pred_fallthru
        _
      // Predicated region
      $region25: #{bottle_block_forward.3} parent=11 // pred_check
        %p221 = pneg %p124
      $region26: #{bottle_block_forward.3} parent=11 // pred_check_branch
        %223 = sbr.rel (%p221) target = $region28
      $region27: #{bottle_block_forward.3} parent=11 // pred_region
        _
      $region28: #{bottle_block_forward.3} parent=11 // pred_fallthru
        _
      // Predicated region
      $region29: #{bottle_block_forward.3} parent=11 // pred_check
        %p224 = pneg %p145
      $region30: #{bottle_block_forward.3} parent=11 // pred_check_branch
        %226 = sbr.rel (%p224) target = $region32
      $region31: #{bottle_block_forward.3} parent=11 // pred_region
        _
      $region32: #{bottle_block_forward.3} parent=11 // pred_fallthru
        _
    $region12: #{bottle_block_forward.3} parent=5 // pred_fallthru
      _
    %p227 = scmp.lt.s32.totalorder %s14, 2
    // Predicated region
    $region33: #{bottle_block_forward.3} parent=5 // pred_check
      %p228 = pneg %p227
    $region34: #{bottle_block_forward.3} parent=5 // pred_check_branch
      %230 = sbr.rel (%p228) target = $region36
    $region35: #{bottle_block_forward.3} parent=5 // pred_region
      // Predicated region
      $region37: #{bottle_block_forward.3} parent=35 // pred_check
        %p231 = pneg %p34
      $region38: #{bottle_block_forward.3} parent=35 // pred_check_branch
        %233 = sbr.rel (%p231) target = $region40
      $region39: #{bottle_block_forward.3} parent=35 // pred_region
        %s234 = smul.u32 32, %s14
        %p235 = scmp.lt.s32.totalorder %s234, 63
        %s236 = scalar_select %p235, %s234, 63
        %s237 = smul.addr %s236, 8
        %s238 = scalar_lea.vmem %s0, %s237
        %s239 = smul.u32 32, %s14
      $region40: #{bottle_block_forward.3} parent=35 // pred_fallthru
        _
    $region36: #{bottle_block_forward.3} parent=5 // pred_fallthru
      _
    %p240 = scmp.le.s32.totalorder 1, %s14
    %p241 = scmp.lt.s32.totalorder %s14, 3
    %p242 = pnand %p240, %p241
    %p243 = pneg %p242
    // Predicated region
    $region41: #{bottle_block_forward.3} parent=5 // pred_check
      _
    $region42: #{bottle_block_forward.3} parent=5 // pred_check_branch
      %245 = sbr.rel (%p242) target = $region44
    $region43: #{bottle_block_forward.3} parent=5 // pred_region
      %s246 = ssub.s32 %s14, 1
      %s247 = smul.u32 32, %s19
      %p248 = scmp.lt.s32.totalorder %s247, 63
      %s249 = scalar_select %p248, %s247, 63
      %s250 = smul.addr %s249, 8
      %s251 = scalar_lea.vmem %s0, %s250
      %p252 = pneg %p40
      %p253 = pneg %p37
      %p254 = pneg %p61
      %p255 = pneg %p58
      %p256 = pneg %p82
      %p257 = pneg %p79
      %p258 = pneg %p103
      %p259 = pneg %p100
      %p260 = pneg %p124
      %p261 = pneg %p121
      %p262 = pneg %p145
      %p263 = pneg %p142
      %p264 = pneg %p171
      %p265 = pneg %p168
      %s266 = smul.u32 32, %s19
      %p267 = scmp.lt.s32.totalorder %s266, 63
      %s268 = scalar_select %p267, %s266, 63
      %s269 = smul.addr %s268, 8
      %s270 = scalar_lea.vmem %s6, %s269
      %p271 = pneg %p197
      %p272 = pneg %p194
      %s273 = smul.u32 32, %s19
      %p274 = scmp.lt.s32.totalorder %s273, 63
      %s275 = scalar_select %p274, %s273, 63
      %s276 = smul.addr %s275, 4
      %s277 = scalar_lea.vmem %s7, %s276
      %s278 = smul.u32 32, %s19
      %p279 = scmp.lt.s32.totalorder %s278, 63
      %s280 = scalar_select %p279, %s278, 63
      %s281 = smul.addr %s280, 8
      %s282 = scalar_lea.vmem %s0, %s281
      %s283 = smul.u32 32, %s19
      %s284 = smul.u32 32, %s19
      %p285 = scmp.lt.s32.totalorder %s284, 63
      %s286 = scalar_select %p285, %s284, 63
      %s287 = smul.addr %s286, 8
      %s288 = scalar_lea.vmem %s6, %s287
      %s289 = smul.u32 32, %s19
      %s290 = smul.u32 32, %s19
      %p291 = scmp.lt.s32.totalorder %s290, 63
      %s292 = scalar_select %p291, %s290, 63
      %s293 = smul.addr %s292, 4
      %s294 = scalar_lea.vmem %s7, %s293
      %s295 = smul.u32 32, %s19
      %v297 = vld [vmem:[%s282] sm:$0xff]
      %v298 = vld [vmem:[%s282 + $0x8] sm:$0xff]
      %v299 = vld [vmem:[%s282 + $0x10] sm:$0xff]
      %v300 = vld [vmem:[%s282 + $0x18] sm:$0xff]
      %v301 = vld [vmem:[%s282 + $0x20] sm:$0xff]
      %v302 = vld [vmem:[%s282 + $0x28] sm:$0xff]
      %v303 = vld [vmem:[%s282 + $0x30] sm:$0xff]
      %v304 = vld [vmem:[%s282 + $0x38] sm:$0xff]
      %v305 = vld [vmem:[%s282 + $0x40] sm:$0xff]
      %v306 = vld [vmem:[%s282 + $0x48] sm:$0xff]
      %v307 = vld [vmem:[%s282 + $0x50] sm:$0xff]
      %v308 = vld [vmem:[%s282 + $0x58] sm:$0xff]
      %v309 = vld [vmem:[%s282 + $0x60] sm:$0xff]
      %v310 = vld [vmem:[%s282 + $0x68] sm:$0xff]
      %v311 = vld [vmem:[%s282 + $0x70] sm:$0xff]
      %v312 = vld [vmem:[%s282 + $0x78] sm:$0xff]
      %v313 = vld [vmem:[%s282 + $0x80] sm:$0xff]
      %v314 = vld [vmem:[%s282 + $0x88] sm:$0xff]
      %v315 = vld [vmem:[%s282 + $0x90] sm:$0xff]
      %v316 = vld [vmem:[%s282 + $0x98] sm:$0xff]
      %v317 = vld [vmem:[%s282 + $0xa0] sm:$0xff]
      %v318 = vld [vmem:[%s282 + $0xa8] sm:$0xff]
      %v319 = vld [vmem:[%s282 + $0xb0] sm:$0xff]
      %v320 = vld [vmem:[%s282 + $0xb8] sm:$0xff]
      %v321 = vld [vmem:[%s282 + $0xc0] sm:$0xff]
      %v322 = vld [vmem:[%s282 + $0xc8] sm:$0xff]
      %v323 = vld [vmem:[%s282 + $0xd0] sm:$0xff]
      %v324 = vld [vmem:[%s282 + $0xd8] sm:$0xff]
      %v325 = vld [vmem:[%s282 + $0xe0] sm:$0xff]
      %v326 = vld [vmem:[%s282 + $0xe8] sm:$0xff]
      %v327 = vld [vmem:[%s282 + $0xf0] sm:$0xff]
      %v328 = vld [vmem:[%s282 + $0xf8] sm:$0xff]
      %v329 = vpack.c.bf16 %v298, %v297
      %v330 = vpack.c.bf16 %v300, %v299
      %v331 = vpack.c.bf16 %v302, %v301
      %v332 = vpack.c.bf16 %v304, %v303
      %v333 = vpack.c.bf16 %v306, %v305
      %v334 = vpack.c.bf16 %v308, %v307
      %v335 = vpack.c.bf16 %v310, %v309
      %v336 = vpack.c.bf16 %v312, %v311
      %v337 = vpack.c.bf16 %v314, %v313
      %v338 = vpack.c.bf16 %v316, %v315
      %v339 = vpack.c.bf16 %v318, %v317
      %v340 = vpack.c.bf16 %v320, %v319
      %v341 = vpack.c.bf16 %v322, %v321
      %v342 = vpack.c.bf16 %v324, %v323
      %v343 = vpack.c.bf16 %v326, %v325
      %v344 = vpack.c.bf16 %v328, %v327
      %v345 = vld [vmem:[%s1] sm:$0x3]
      %v346 = vld [vmem:[%s2] sm:$0x1]
      %v348 = vlaneseq
      %v349 = vshrl.u32 %v348, 7
      %v350 = vsub.s32 0, %v349
      %v351 = vrot.slane %v346, %v350
      %vm353 = vcmask 31744
      %v355 = vsel %vm353, %v329, 0
      %v358 = vsel %vm353, %v330, 0
      %v361 = vsel %vm353, %v331, 0
      %v364 = vsel %vm353, %v332, 0
      %v367 = vsel %vm353, %v333, 0
      %v370 = vsel %vm353, %v334, 0
      %v373 = vsel %vm353, %v335, 0
      %v376 = vsel %vm353, %v336, 0
      %v379 = vsel %vm353, %v337, 0
      %v382 = vsel %vm353, %v338, 0
      %v385 = vsel %vm353, %v339, 0
      %v388 = vsel %vm353, %v340, 0
      %v391 = vsel %vm353, %v341, 0
      %v394 = vsel %vm353, %v342, 0
      %v397 = vsel %vm353, %v343, 0
      %v400 = vsel %vm353, %v344, 0
      %vm402 = vcmask 1041408
      %v404 = vsel %vm402, %v345, 0
      %406 = vmatprep.subr.bf16.mxu0 0
      %407 = vmatpush1.bf16.msra.mxu0 %v404
      %408 = vmatprep.subr.bf16.mxu0 0
      %409 = vmatpush1.bf16.msra.mxu0 0
      %410 = vmatprep.subr.bf16.mxu0 0
      %411 = vmatpush1.bf16.msra.mxu0 0
      %412 = vmatprep.subr.bf16.mxu0 0
      %413 = vmatpush1.bf16.msra.mxu0 0
      %414 = vmatprep.subr.bf16.mxu0 0
      %415 = vmatpush1.bf16.msra.mxu0 0
      %416 = vmatprep.subr.bf16.mxu0 0
      %417 = vmatpush1.bf16.msra.mxu0 0
      %418 = vmatprep.subr.bf16.mxu0 0
      %419 = vmatpush1.bf16.msra.mxu0 0
      %420 = vmatprep.subr.bf16.mxu0 0
      %421 = vmatpush1.bf16.msra.mxu0 0
      %422 = vmatprep.subr.bf16.mxu0 0
      %423 = vmatpush1.bf16.msra.mxu0 0
      %424 = vmatprep.subr.bf16.mxu0 0
      %425 = vmatpush1.bf16.msra.mxu0 0
      %426 = vmatprep.subr.bf16.mxu0 0
      %427 = vmatpush1.bf16.msra.mxu0 0
      %428 = vmatprep.subr.bf16.mxu0 0
      %429 = vmatpush1.bf16.msra.mxu0 0
      %430 = vmatprep.subr.bf16.mxu0 0
      %431 = vmatpush1.bf16.msra.mxu0 0
      %432 = vmatprep.subr.bf16.mxu0 0
      %433 = vmatpush1.bf16.msra.mxu0 0
      %434 = vmatprep.subr.bf16.mxu0 0
      %435 = vmatpush1.bf16.msra.mxu0 0
      %436 = vmatprep.subr.bf16.mxu0 0
      %437 = vmatpush1.bf16.msra.mxu0 0
      %438 = vmatprep.mubr.bf16.mxu0 0
      %439 = vmatmul.mubr.bf16.gmra.mrb[0].mxu0 %v355
      %v440 = vpop.f32.mrb[0].mxu0
      %v441 = vadd.f32 %v351, %v440
      %v442 = vpop.f32.mrb[0].mxu0
      %v443 = vpop.f32.mrb[0].mxu0
      %v444 = vadd.f32 %v351, %v443
      %v445 = vpop.f32.mrb[0].mxu0
      %446 = vmatprep.mubr.bf16.mxu0 0
      %447 = vmatmul.mubr.bf16.gmra.mrb[0].mxu0 %v358
      %v448 = vpop.f32.mrb[0].mxu0
      %v449 = vadd.f32 %v351, %v448
      %v450 = vpop.f32.mrb[0].mxu0
      %v451 = vpop.f32.mrb[0].mxu0
      %v452 = vadd.f32 %v351, %v451
      %v453 = vpop.f32.mrb[0].mxu0
      %454 = vmatprep.mubr.bf16.mxu0 0
      %455 = vmatmul.mubr.bf16.gmra.mrb[0].mxu0 %v361
      %v456 = vpop.f32.mrb[0].mxu0
      %v457 = vadd.f32 %v351, %v456
      %v458 = vpop.f32.mrb[0].mxu0
      %v459 = vpop.f32.mrb[0].mxu0
      %v460 = vadd.f32 %v351, %v459
      %v461 = vpop.f32.mrb[0].mxu0
      %462 = vmatprep.mubr.bf16.mxu0 0
      %463 = vmatmul.mubr.bf16.gmra.mrb[0].mxu0 %v364
      %v464 = vpop.f32.mrb[0].mxu0
      %v465 = vadd.f32 %v351, %v464
      %v466 = vpop.f32.mrb[0].mxu0
      %v467 = vpop.f32.mrb[0].mxu0
      %v468 = vadd.f32 %v351, %v467
      %v469 = vpop.f32.mrb[0].mxu0
      %470 = vmatprep.mubr.bf16.mxu0 0
      %471 = vmatmul.mubr.bf16.gmra.mrb[0].mxu0 %v367
      %v472 = vpop.f32.mrb[0].mxu0
      %v473 = vadd.f32 %v351, %v472
      %v474 = vpop.f32.mrb[0].mxu0
      %v475 = vpop.f32.mrb[0].mxu0
      %v476 = vadd.f32 %v351, %v475
      %v477 = vpop.f32.mrb[0].mxu0
      %478 = vmatprep.mubr.bf16.mxu0 0
      %479 = vmatmul.mubr.bf16.gmra.mrb[0].mxu0 %v370
      %v480 = vpop.f32.mrb[0].mxu0
      %v481 = vadd.f32 %v351, %v480
      %v482 = vpop.f32.mrb[0].mxu0
      %v483 = vpop.f32.mrb[0].mxu0
      %v484 = vadd.f32 %v351, %v483
      %v485 = vpop.f32.mrb[0].mxu0
      %486 = vmatprep.mubr.bf16.mxu0 0
      %487 = vmatmul.mubr.bf16.gmra.mrb[0].mxu0 %v373
      %v488 = vpop.f32.mrb[0].mxu0
      %v489 = vadd.f32 %v351, %v488
      %v490 = vpop.f32.mrb[0].mxu0
      %v491 = vpop.f32.mrb[0].mxu0
      %v492 = vadd.f32 %v351, %v491
      %v493 = vpop.f32.mrb[0].mxu0
      %494 = vmatprep.mubr.bf16.mxu0 0
      %495 = vmatmul.mubr.bf16.gmra.mrb[0].mxu0 %v376
      %v496 = vpop.f32.mrb[0].mxu0
      %v497 = vadd.f32 %v351, %v496
      %v498 = vpop.f32.mrb[0].mxu0
      %v499 = vpop.f32.mrb[0].mxu0
      %v500 = vadd.f32 %v351, %v499
      %v501 = vpop.f32.mrb[0].mxu0
      %502 = vmatprep.mubr.bf16.mxu0 0
      %503 = vmatmul.mubr.bf16.gmra.mrb[0].mxu0 %v379
      %v504 = vpop.f32.mrb[0].mxu0
      %v505 = vadd.f32 %v351, %v504
      %v506 = vpop.f32.mrb[0].mxu0
      %v507 = vpop.f32.mrb[0].mxu0
      %v508 = vadd.f32 %v351, %v507
      %v509 = vpop.f32.mrb[0].mxu0
      %510 = vmatprep.mubr.bf16.mxu0 0
      %511 = vmatmul.mubr.bf16.gmra.mrb[0].mxu0 %v382
      %v512 = vpop.f32.mrb[0].mxu0
      %v513 = vadd.f32 %v351, %v512
      %v514 = vpop.f32.mrb[0].mxu0
      %v515 = vpop.f32.mrb[0].mxu0
      %v516 = vadd.f32 %v351, %v515
      %v517 = vpop.f32.mrb[0].mxu0
      %518 = vmatprep.mubr.bf16.mxu0 0
      %519 = vmatmul.mubr.bf16.gmra.mrb[0].mxu0 %v385
      %v520 = vpop.f32.mrb[0].mxu0
      %v521 = vadd.f32 %v351, %v520
      %v522 = vpop.f32.mrb[0].mxu0
      %v523 = vpop.f32.mrb[0].mxu0
      %v524 = vadd.f32 %v351, %v523
      %v525 = vpop.f32.mrb[0].mxu0
      %526 = vmatprep.mubr.bf16.mxu0 0
      %527 = vmatmul.mubr.bf16.gmra.mrb[0].mxu0 %v388
      %v528 = vpop.f32.mrb[0].mxu0
      %v529 = vadd.f32 %v351, %v528
      %v530 = vpop.f32.mrb[0].mxu0
      %v531 = vpop.f32.mrb[0].mxu0
      %v532 = vadd.f32 %v351, %v531
      %v533 = vpop.f32.mrb[0].mxu0
      %534 = vmatprep.mubr.bf16.mxu0 0
      %535 = vmatmul.mubr.bf16.gmra.mrb[0].mxu0 %v391
      %v536 = vpop.f32.mrb[0].mxu0
      %v537 = vadd.f32 %v351, %v536
      %v538 = vpop.f32.mrb[0].mxu0
      %v539 = vpop.f32.mrb[0].mxu0
      %v540 = vadd.f32 %v351, %v539
      %v541 = vpop.f32.mrb[0].mxu0
      %542 = vmatprep.mubr.bf16.mxu0 0
      %543 = vmatmul.mubr.bf16.gmra.mrb[0].mxu0 %v394
      %v544 = vpop.f32.mrb[0].mxu0
      %v545 = vadd.f32 %v351, %v544
      %v546 = vpop.f32.mrb[0].mxu0
      %v547 = vpop.f32.mrb[0].mxu0
      %v548 = vadd.f32 %v351, %v547
      %v549 = vpop.f32.mrb[0].mxu0
      %550 = vmatprep.mubr.bf16.mxu0 0
      %551 = vmatmul.mubr.bf16.gmra.mrb[0].mxu0 %v397
      %v552 = vpop.f32.mrb[0].mxu0
      %v553 = vadd.f32 %v351, %v552
      %v554 = vpop.f32.mrb[0].mxu0
      %v555 = vpop.f32.mrb[0].mxu0
      %v556 = vadd.f32 %v351, %v555
      %v557 = vpop.f32.mrb[0].mxu0
      %558 = vmatprep.mubr.bf16.mxu0 0
      %559 = vmatmul.mubr.bf16.gmra.mrb[0].mxu0 %v400
      %v560 = vpop.f32.mrb[0].mxu0
      %v561 = vadd.f32 %v351, %v560
      %v562 = vpop.f32.mrb[0].mxu0
      %v563 = vpop.f32.mrb[0].mxu0
      %v564 = vadd.f32 %v351, %v563
      %v565 = vpop.f32.mrb[0].mxu0
      %566 = vdwg.mxu0
      %v567 = vmax.f32 %v441, 0.0
      %v568 = vmax.f32 %v444, 0.0
      %v569 = vmax.f32 %v449, 0.0
      %v570 = vmax.f32 %v452, 0.0
      %v571 = vmax.f32 %v457, 0.0
      %v572 = vmax.f32 %v460, 0.0
      %v573 = vmax.f32 %v465, 0.0
      %v574 = vmax.f32 %v468, 0.0
      %v575 = vmax.f32 %v473, 0.0
      %v576 = vmax.f32 %v476, 0.0
      %v577 = vmax.f32 %v481, 0.0
      %v578 = vmax.f32 %v484, 0.0
      %v579 = vmax.f32 %v489, 0.0
      %v580 = vmax.f32 %v492, 0.0
      %v581 = vmax.f32 %v497, 0.0
      %v582 = vmax.f32 %v500, 0.0
      %v583 = vmax.f32 %v505, 0.0
      %v584 = vmax.f32 %v508, 0.0
      %v585 = vmax.f32 %v513, 0.0
      %v586 = vmax.f32 %v516, 0.0
      %v587 = vmax.f32 %v521, 0.0
      %v588 = vmax.f32 %v524, 0.0
      %v589 = vmax.f32 %v529, 0.0
      %v590 = vmax.f32 %v532, 0.0
      %v591 = vmax.f32 %v537, 0.0
      %v592 = vmax.f32 %v540, 0.0
      %v593 = vmax.f32 %v545, 0.0
      %v594 = vmax.f32 %v548, 0.0
      %v595 = vmax.f32 %v553, 0.0
      %v596 = vmax.f32 %v556, 0.0
      %v597 = vmax.f32 %v561, 0.0
      %v598 = vmax.f32 %v564, 0.0
      %vm599 = vcmask 64512
      %600 = vst.msk [vmem:[%s288] sm:$0xff] %vm599, %v567
      %601 = vst.msk [vmem:[%s288 + $0x8] sm:$0xff] %vm599, %v568
      %602 = vst.msk [vmem:[%s288 + $0x10] sm:$0xff] %vm599, %v569
      %603 = vst.msk [vmem:[%s288 + $0x18] sm:$0xff] %vm599, %v570
      %604 = vst.msk [vmem:[%s288 + $0x20] sm:$0xff] %vm599, %v571
      %605 = vst.msk [vmem:[%s288 + $0x28] sm:$0xff] %vm599, %v572
      %606 = vst.msk [vmem:[%s288 + $0x30] sm:$0xff] %vm599, %v573
      %607 = vst.msk [vmem:[%s288 + $0x38] sm:$0xff] %vm599, %v574
      %608 = vst.msk [vmem:[%s288 + $0x40] sm:$0xff] %vm599, %v575
      %609 = vst.msk [vmem:[%s288 + $0x48] sm:$0xff] %vm599, %v576
      %610 = vst.msk [vmem:[%s288 + $0x50] sm:$0xff] %vm599, %v577
      %611 = vst.msk [vmem:[%s288 + $0x58] sm:$0xff] %vm599, %v578
      %612 = vst.msk [vmem:[%s288 + $0x60] sm:$0xff] %vm599, %v579
      %613 = vst.msk [vmem:[%s288 + $0x68] sm:$0xff] %vm599, %v580
      %614 = vst.msk [vmem:[%s288 + $0x70] sm:$0xff] %vm599, %v581
      %615 = vst.msk [vmem:[%s288 + $0x78] sm:$0xff] %vm599, %v582
      %616 = vst.msk [vmem:[%s288 + $0x80] sm:$0xff] %vm599, %v583
      %617 = vst.msk [vmem:[%s288 + $0x88] sm:$0xff] %vm599, %v584
      %618 = vst.msk [vmem:[%s288 + $0x90] sm:$0xff] %vm599, %v585
      %619 = vst.msk [vmem:[%s288 + $0x98] sm:$0xff] %vm599, %v586
      %620 = vst.msk [vmem:[%s288 + $0xa0] sm:$0xff] %vm599, %v587
      %621 = vst.msk [vmem:[%s288 + $0xa8] sm:$0xff] %vm599, %v588
      %622 = vst.msk [vmem:[%s288 + $0xb0] sm:$0xff] %vm599, %v589
      %623 = vst.msk [vmem:[%s288 + $0xb8] sm:$0xff] %vm599, %v590
      %624 = vst.msk [vmem:[%s288 + $0xc0] sm:$0xff] %vm599, %v591
      %625 = vst.msk [vmem:[%s288 + $0xc8] sm:$0xff] %vm599, %v592
      %626 = vst.msk [vmem:[%s288 + $0xd0] sm:$0xff] %vm599, %v593
      %627 = vst.msk [vmem:[%s288 + $0xd8] sm:$0xff] %vm599, %v594
      %628 = vst.msk [vmem:[%s288 + $0xe0] sm:$0xff] %vm599, %v595
      %629 = vst.msk [vmem:[%s288 + $0xe8] sm:$0xff] %vm599, %v596
      %630 = vst.msk [vmem:[%s288 + $0xf0] sm:$0xff] %vm599, %v597
      %631 = vst.msk [vmem:[%s288 + $0xf8] sm:$0xff] %vm599, %v598
      %v632 = vld [vmem:[%s3] sm:$0x3]
      %v633 = vld [vmem:[%s4] sm:$0x1]
      %v635 = vlaneseq
      %v636 = vshrl.u32 %v635, 7
      %v637 = vsub.s32 0, %v636
      %v638 = vrot.slane %v633, %v637
      %v641 = vsel %vm402, %v632, 0
      %643 = vmatprep.subr.bf16.mxu0 0
      %644 = vmatpush1.bf16.msra.mxu0 %v641
      %645 = vmatprep.subr.bf16.mxu0 0
      %646 = vmatpush1.bf16.msra.mxu0 0
      %647 = vmatprep.subr.bf16.mxu0 0
      %648 = vmatpush1.bf16.msra.mxu0 0
      %649 = vmatprep.subr.bf16.mxu0 0
      %650 = vmatpush1.bf16.msra.mxu0 0
      %651 = vmatprep.subr.bf16.mxu0 0
      %652 = vmatpush1.bf16.msra.mxu0 0
      %653 = vmatprep.subr.bf16.mxu0 0
      %654 = vmatpush1.bf16.msra.mxu0 0
      %655 = vmatprep.subr.bf16.mxu0 0
      %656 = vmatpush1.bf16.msra.mxu0 0
      %657 = vmatprep.subr.bf16.mxu0 0
      %658 = vmatpush1.bf16.msra.mxu0 0
      %659 = vmatprep.subr.bf16.mxu0 0
      %660 = vmatpush1.bf16.msra.mxu0 0
      %661 = vmatprep.subr.bf16.mxu0 0
      %662 = vmatpush1.bf16.msra.mxu0 0
      %663 = vmatprep.subr.bf16.mxu0 0
      %664 = vmatpush1.bf16.msra.mxu0 0
      %665 = vmatprep.subr.bf16.mxu0 0
      %666 = vmatpush1.bf16.msra.mxu0 0
      %667 = vmatprep.subr.bf16.mxu0 0
      %668 = vmatpush1.bf16.msra.mxu0 0
      %669 = vmatprep.subr.bf16.mxu0 0
      %670 = vmatpush1.bf16.msra.mxu0 0
      %671 = vmatprep.subr.bf16.mxu0 0
      %672 = vmatpush1.bf16.msra.mxu0 0
      %673 = vmatprep.subr.bf16.mxu0 0
      %674 = vmatpush1.bf16.msra.mxu0 0
      %675 = vmatprep.mubr.bf16.mxu0 0
      %676 = vmatmul.mubr.bf16.gmra.mrb[0].mxu0 %v355
      %v677 = vpop.f32.mrb[0].mxu0
      %v678 = vadd.f32 %v638, %v677
      %v679 = vpop.f32.mrb[0].mxu0
      %v680 = vpop.f32.mrb[0].mxu0
      %v681 = vadd.f32 %v638, %v680
      %v682 = vpop.f32.mrb[0].mxu0
      %683 = vmatprep.mubr.bf16.mxu0 0
      %684 = vmatmul.mubr.bf16.gmra.mrb[0].mxu0 %v358
      %v685 = vpop.f32.mrb[0].mxu0
      %v686 = vadd.f32 %v638, %v685
      %v687 = vpop.f32.mrb[0].mxu0
      %v688 = vpop.f32.mrb[0].mxu0
      %v689 = vadd.f32 %v638, %v688
      %v690 = vpop.f32.mrb[0].mxu0
      %691 = vmatprep.mubr.bf16.mxu0 0
      %692 = vmatmul.mubr.bf16.gmra.mrb[0].mxu0 %v361
      %v693 = vpop.f32.mrb[0].mxu0
      %v694 = vadd.f32 %v638, %v693
      %v695 = vpop.f32.mrb[0].mxu0
      %v696 = vpop.f32.mrb[0].mxu0
      %v697 = vadd.f32 %v638, %v696
      %v698 = vpop.f32.mrb[0].mxu0
      %699 = vmatprep.mubr.bf16.mxu0 0
      %700 = vmatmul.mubr.bf16.gmra.mrb[0].mxu0 %v364
      %v701 = vpop.f32.mrb[0].mxu0
      %v702 = vadd.f32 %v638, %v701
      %v703 = vpop.f32.mrb[0].mxu0
      %v704 = vpop.f32.mrb[0].mxu0
      %v705 = vadd.f32 %v638, %v704
      %v706 = vpop.f32.mrb[0].mxu0
      %707 = vmatprep.mubr.bf16.mxu0 0
      %708 = vmatmul.mubr.bf16.gmra.mrb[0].mxu0 %v367
      %v709 = vpop.f32.mrb[0].mxu0
      %v710 = vadd.f32 %v638, %v709
      %v711 = vpop.f32.mrb[0].mxu0
      %v712 = vpop.f32.mrb[0].mxu0
      %v713 = vadd.f32 %v638, %v712
      %v714 = vpop.f32.mrb[0].mxu0
      %715 = vmatprep.mubr.bf16.mxu0 0
      %716 = vmatmul.mubr.bf16.gmra.mrb[0].mxu0 %v370
      %v717 = vpop.f32.mrb[0].mxu0
      %v718 = vadd.f32 %v638, %v717
      %v719 = vpop.f32.mrb[0].mxu0
      %v720 = vpop.f32.mrb[0].mxu0
      %v721 = vadd.f32 %v638, %v720
      %v722 = vpop.f32.mrb[0].mxu0
      %723 = vmatprep.mubr.bf16.mxu0 0
      %724 = vmatmul.mubr.bf16.gmra.mrb[0].mxu0 %v373
      %v725 = vpop.f32.mrb[0].mxu0
      %v726 = vadd.f32 %v638, %v725
      %v727 = vpop.f32.mrb[0].mxu0
      %v728 = vpop.f32.mrb[0].mxu0
      %v729 = vadd.f32 %v638, %v728
      %v730 = vpop.f32.mrb[0].mxu0
      %731 = vmatprep.mubr.bf16.mxu0 0
      %732 = vmatmul.mubr.bf16.gmra.mrb[0].mxu0 %v376
      %v733 = vpop.f32.mrb[0].mxu0
      %v734 = vadd.f32 %v638, %v733
      %v735 = vpop.f32.mrb[0].mxu0
      %v736 = vpop.f32.mrb[0].mxu0
      %v737 = vadd.f32 %v638, %v736
      %v738 = vpop.f32.mrb[0].mxu0
      %739 = vmatprep.mubr.bf16.mxu0 0
      %740 = vmatmul.mubr.bf16.gmra.mrb[0].mxu0 %v379
      %v741 = vpop.f32.mrb[0].mxu0
      %v742 = vadd.f32 %v638, %v741
      %v743 = vpop.f32.mrb[0].mxu0
      %v744 = vpop.f32.mrb[0].mxu0
      %v745 = vadd.f32 %v638, %v744
      %v746 = vpop.f32.mrb[0].mxu0
      %747 = vmatprep.mubr.bf16.mxu0 0
      %748 = vmatmul.mubr.bf16.gmra.mrb[0].mxu0 %v382
      %v749 = vpop.f32.mrb[0].mxu0
      %v750 = vadd.f32 %v638, %v749
      %v751 = vpop.f32.mrb[0].mxu0
      %v752 = vpop.f32.mrb[0].mxu0
      %v753 = vadd.f32 %v638, %v752
      %v754 = vpop.f32.mrb[0].mxu0
      %755 = vmatprep.mubr.bf16.mxu0 0
      %756 = vmatmul.mubr.bf16.gmra.mrb[0].mxu0 %v385
      %v757 = vpop.f32.mrb[0].mxu0
      %v758 = vadd.f32 %v638, %v757
      %v759 = vpop.f32.mrb[0].mxu0
      %v760 = vpop.f32.mrb[0].mxu0
      %v761 = vadd.f32 %v638, %v760
      %v762 = vpop.f32.mrb[0].mxu0
      %763 = vmatprep.mubr.bf16.mxu0 0
      %764 = vmatmul.mubr.bf16.gmra.mrb[0].mxu0 %v388
      %v765 = vpop.f32.mrb[0].mxu0
      %v766 = vadd.f32 %v638, %v765
      %v767 = vpop.f32.mrb[0].mxu0
      %v768 = vpop.f32.mrb[0].mxu0
      %v769 = vadd.f32 %v638, %v768
      %v770 = vpop.f32.mrb[0].mxu0
      %771 = vmatprep.mubr.bf16.mxu0 0
      %772 = vmatmul.mubr.bf16.gmra.mrb[0].mxu0 %v391
      %v773 = vpop.f32.mrb[0].mxu0
      %v774 = vadd.f32 %v638, %v773
      %v775 = vpop.f32.mrb[0].mxu0
      %v776 = vpop.f32.mrb[0].mxu0
      %v777 = vadd.f32 %v638, %v776
      %v778 = vpop.f32.mrb[0].mxu0
      %779 = vmatprep.mubr.bf16.mxu0 0
      %780 = vmatmul.mubr.bf16.gmra.mrb[0].mxu0 %v394
      %v781 = vpop.f32.mrb[0].mxu0
      %v782 = vadd.f32 %v638, %v781
      %v783 = vpop.f32.mrb[0].mxu0
      %v784 = vpop.f32.mrb[0].mxu0
      %v785 = vadd.f32 %v638, %v784
      %v786 = vpop.f32.mrb[0].mxu0
      %787 = vmatprep.mubr.bf16.mxu0 0
      %788 = vmatmul.mubr.bf16.gmra.mrb[0].mxu0 %v397
      %v789 = vpop.f32.mrb[0].mxu0
      %v790 = vadd.f32 %v638, %v789
      %v791 = vpop.f32.mrb[0].mxu0
      %v792 = vpop.f32.mrb[0].mxu0
      %v793 = vadd.f32 %v638, %v792
      %v794 = vpop.f32.mrb[0].mxu0
      %795 = vmatprep.mubr.bf16.mxu0 0
      %796 = vmatmul.mubr.bf16.gmra.mrb[0].mxu0 %v400
      %v797 = vpop.f32.mrb[0].mxu0
      %v798 = vadd.f32 %v638, %v797
      %v799 = vpop.f32.mrb[0].mxu0
      %v800 = vpop.f32.mrb[0].mxu0
      %v801 = vadd.f32 %v638, %v800
      %v802 = vpop.f32.mrb[0].mxu0
      %803 = vdwg.mxu0
      %v804 = vmax.f32 %v678, 0.0
      %v805 = vmax.f32 %v681, 0.0
      %v806 = vmax.f32 %v686, 0.0
      %v807 = vmax.f32 %v689, 0.0
      %v808 = vmax.f32 %v694, 0.0
      %v809 = vmax.f32 %v697, 0.0
      %v810 = vmax.f32 %v702, 0.0
      %v811 = vmax.f32 %v705, 0.0
      %v812 = vmax.f32 %v710, 0.0
      %v813 = vmax.f32 %v713, 0.0
      %v814 = vmax.f32 %v718, 0.0
      %v815 = vmax.f32 %v721, 0.0
      %v816 = vmax.f32 %v726, 0.0
      %v817 = vmax.f32 %v729, 0.0
      %v818 = vmax.f32 %v734, 0.0
      %v819 = vmax.f32 %v737, 0.0
      %v820 = vmax.f32 %v742, 0.0
      %v821 = vmax.f32 %v745, 0.0
      %v822 = vmax.f32 %v750, 0.0
      %v823 = vmax.f32 %v753, 0.0
      %v824 = vmax.f32 %v758, 0.0
      %v825 = vmax.f32 %v761, 0.0
      %v826 = vmax.f32 %v766, 0.0
      %v827 = vmax.f32 %v769, 0.0
      %v828 = vmax.f32 %v774, 0.0
      %v829 = vmax.f32 %v777, 0.0
      %v830 = vmax.f32 %v782, 0.0
      %v831 = vmax.f32 %v785, 0.0
      %v832 = vmax.f32 %v790, 0.0
      %v833 = vmax.f32 %v793, 0.0
      %v834 = vmax.f32 %v798, 0.0
      %v835 = vmax.f32 %v801, 0.0
      %v836 = vpack.c.bf16 %v805, %v804
      %v837 = vpack.c.bf16 %v807, %v806
      %v838 = vpack.c.bf16 %v809, %v808
      %v839 = vpack.c.bf16 %v811, %v810
      %v840 = vpack.c.bf16 %v813, %v812
      %v841 = vpack.c.bf16 %v815, %v814
      %v842 = vpack.c.bf16 %v817, %v816
      %v843 = vpack.c.bf16 %v819, %v818
      %v844 = vpack.c.bf16 %v821, %v820
      %v845 = vpack.c.bf16 %v823, %v822
      %v846 = vpack.c.bf16 %v825, %v824
      %v847 = vpack.c.bf16 %v827, %v826
      %v848 = vpack.c.bf16 %v829, %v828
      %v849 = vpack.c.bf16 %v831, %v830
      %v850 = vpack.c.bf16 %v833, %v832
      %v851 = vpack.c.bf16 %v835, %v834
      %v852 = vld [vmem:[%s5] sm:$0x3]
      %v854 = vsel %vm353, %v836, 0
      %v857 = vsel %vm353, %v837, 0
      %v860 = vsel %vm353, %v838, 0
      %v863 = vsel %vm353, %v839, 0
      %v866 = vsel %vm353, %v840, 0
      %v869 = vsel %vm353, %v841, 0
      %v872 = vsel %vm353, %v842, 0
      %v875 = vsel %vm353, %v843, 0
      %v878 = vsel %vm353, %v844, 0
      %v881 = vsel %vm353, %v845, 0
      %v884 = vsel %vm353, %v846, 0
      %v887 = vsel %vm353, %v847, 0
      %v890 = vsel %vm353, %v848, 0
      %v893 = vsel %vm353, %v849, 0
      %v896 = vsel %vm353, %v850, 0
      %v899 = vsel %vm353, %v851, 0
      %v902 = vsel %vm402, %v852, 0
      %904 = vmatprep.subr.bf16.mxu0 0
      %905 = vmatpush1.bf16.msra.mxu0 %v902
      %906 = vmatprep.subr.bf16.mxu0 0
      %907 = vmatpush1.bf16.msra.mxu0 0
      %908 = vmatprep.subr.bf16.mxu0 0
      %909 = vmatpush1.bf16.msra.mxu0 0
      %910 = vmatprep.subr.bf16.mxu0 0
      %911 = vmatpush1.bf16.msra.mxu0 0
      %912 = vmatprep.subr.bf16.mxu0 0
      %913 = vmatpush1.bf16.msra.mxu0 0
      %914 = vmatprep.subr.bf16.mxu0 0
      %915 = vmatpush1.bf16.msra.mxu0 0
      %916 = vmatprep.subr.bf16.mxu0 0
      %917 = vmatpush1.bf16.msra.mxu0 0
      %918 = vmatprep.subr.bf16.mxu0 0
      %919 = vmatpush1.bf16.msra.mxu0 0
      %920 = vmatprep.subr.bf16.mxu0 0
      %921 = vmatpush1.bf16.msra.mxu0 0
      %922 = vmatprep.subr.bf16.mxu0 0
      %923 = vmatpush1.bf16.msra.mxu0 0
      %924 = vmatprep.subr.bf16.mxu0 0
      %925 = vmatpush1.bf16.msra.mxu0 0
      %926 = vmatprep.subr.bf16.mxu0 0
      %927 = vmatpush1.bf16.msra.mxu0 0
      %928 = vmatprep.subr.bf16.mxu0 0
      %929 = vmatpush1.bf16.msra.mxu0 0
      %930 = vmatprep.subr.bf16.mxu0 0
      %931 = vmatpush1.bf16.msra.mxu0 0
      %932 = vmatprep.subr.bf16.mxu0 0
      %933 = vmatpush1.bf16.msra.mxu0 0
      %934 = vmatprep.subr.bf16.mxu0 0
      %935 = vmatpush1.bf16.msra.mxu0 0
      %936 = vmatprep.mubr.bf16.mxu0 0
      %937 = vmatmul.mubr.bf16.gmra.mrb[0].mxu0 %v854
      %v938 = vpop.f32.mrb[0].mxu0
      %v939 = vadd.f32 0.0, %v938
      %v940 = vpop.f32.mrb[0].mxu0
      %v941 = vpop.f32.mrb[0].mxu0
      %v942 = vadd.f32 0.0, %v941
      %v943 = vpop.f32.mrb[0].mxu0
      %944 = vmatprep.mubr.bf16.mxu0 0
      %945 = vmatmul.mubr.bf16.gmra.mrb[0].mxu0 %v857
      %v946 = vpop.f32.mrb[0].mxu0
      %v947 = vadd.f32 0.0, %v946
      %v948 = vpop.f32.mrb[0].mxu0
      %v949 = vpop.f32.mrb[0].mxu0
      %v950 = vadd.f32 0.0, %v949
      %v951 = vpop.f32.mrb[0].mxu0
      %952 = vmatprep.mubr.bf16.mxu0 0
      %953 = vmatmul.mubr.bf16.gmra.mrb[0].mxu0 %v860
      %v954 = vpop.f32.mrb[0].mxu0
      %v955 = vadd.f32 0.0, %v954
      %v956 = vpop.f32.mrb[0].mxu0
      %v957 = vpop.f32.mrb[0].mxu0
      %v958 = vadd.f32 0.0, %v957
      %v959 = vpop.f32.mrb[0].mxu0
      %960 = vmatprep.mubr.bf16.mxu0 0
      %961 = vmatmul.mubr.bf16.gmra.mrb[0].mxu0 %v863
      %v962 = vpop.f32.mrb[0].mxu0
      %v963 = vadd.f32 0.0, %v962
      %v964 = vpop.f32.mrb[0].mxu0
      %v965 = vpop.f32.mrb[0].mxu0
      %v966 = vadd.f32 0.0, %v965
      %v967 = vpop.f32.mrb[0].mxu0
      %968 = vmatprep.mubr.bf16.mxu0 0
      %969 = vmatmul.mubr.bf16.gmra.mrb[0].mxu0 %v866
      %v970 = vpop.f32.mrb[0].mxu0
      %v971 = vadd.f32 0.0, %v970
      %v972 = vpop.f32.mrb[0].mxu0
      %v973 = vpop.f32.mrb[0].mxu0
      %v974 = vadd.f32 0.0, %v973
      %v975 = vpop.f32.mrb[0].mxu0
      %976 = vmatprep.mubr.bf16.mxu0 0
      %977 = vmatmul.mubr.bf16.gmra.mrb[0].mxu0 %v869
      %v978 = vpop.f32.mrb[0].mxu0
      %v979 = vadd.f32 0.0, %v978
      %v980 = vpop.f32.mrb[0].mxu0
      %v981 = vpop.f32.mrb[0].mxu0
      %v982 = vadd.f32 0.0, %v981
      %v983 = vpop.f32.mrb[0].mxu0
      %984 = vmatprep.mubr.bf16.mxu0 0
      %985 = vmatmul.mubr.bf16.gmra.mrb[0].mxu0 %v872
      %v986 = vpop.f32.mrb[0].mxu0
      %v987 = vadd.f32 0.0, %v986
      %v988 = vpop.f32.mrb[0].mxu0
      %v989 = vpop.f32.mrb[0].mxu0
      %v990 = vadd.f32 0.0, %v989
      %v991 = vpop.f32.mrb[0].mxu0
      %992 = vmatprep.mubr.bf16.mxu0 0
      %993 = vmatmul.mubr.bf16.gmra.mrb[0].mxu0 %v875
      %v994 = vpop.f32.mrb[0].mxu0
      %v995 = vadd.f32 0.0, %v994
      %v996 = vpop.f32.mrb[0].mxu0
      %v997 = vpop.f32.mrb[0].mxu0
      %v998 = vadd.f32 0.0, %v997
      %v999 = vpop.f32.mrb[0].mxu0
      %1000 = vmatprep.mubr.bf16.mxu0 0
      %1001 = vmatmul.mubr.bf16.gmra.mrb[0].mxu0 %v878
      %v1002 = vpop.f32.mrb[0].mxu0
      %v1003 = vadd.f32 0.0, %v1002
      %v1004 = vpop.f32.mrb[0].mxu0
      %v1005 = vpop.f32.mrb[0].mxu0
      %v1006 = vadd.f32 0.0, %v1005
      %v1007 = vpop.f32.mrb[0].mxu0
      %1008 = vmatprep.mubr.bf16.mxu0 0
      %1009 = vmatmul.mubr.bf16.gmra.mrb[0].mxu0 %v881
      %v1010 = vpop.f32.mrb[0].mxu0
      %v1011 = vadd.f32 0.0, %v1010
      %v1012 = vpop.f32.mrb[0].mxu0
      %v1013 = vpop.f32.mrb[0].mxu0
      %v1014 = vadd.f32 0.0, %v1013
      %v1015 = vpop.f32.mrb[0].mxu0
      %1016 = vmatprep.mubr.bf16.mxu0 0
      %1017 = vmatmul.mubr.bf16.gmra.mrb[0].mxu0 %v884
      %v1018 = vpop.f32.mrb[0].mxu0
      %v1019 = vadd.f32 0.0, %v1018
      %v1020 = vpop.f32.mrb[0].mxu0
      %v1021 = vpop.f32.mrb[0].mxu0
      %v1022 = vadd.f32 0.0, %v1021
      %v1023 = vpop.f32.mrb[0].mxu0
      %1024 = vmatprep.mubr.bf16.mxu0 0
      %1025 = vmatmul.mubr.bf16.gmra.mrb[0].mxu0 %v887
      %v1026 = vpop.f32.mrb[0].mxu0
      %v1027 = vadd.f32 0.0, %v1026
      %v1028 = vpop.f32.mrb[0].mxu0
      %v1029 = vpop.f32.mrb[0].mxu0
      %v1030 = vadd.f32 0.0, %v1029
      %v1031 = vpop.f32.mrb[0].mxu0
      %1032 = vmatprep.mubr.bf16.mxu0 0
      %1033 = vmatmul.mubr.bf16.gmra.mrb[0].mxu0 %v890
      %v1034 = vpop.f32.mrb[0].mxu0
      %v1035 = vadd.f32 0.0, %v1034
      %v1036 = vpop.f32.mrb[0].mxu0
      %v1037 = vpop.f32.mrb[0].mxu0
      %v1038 = vadd.f32 0.0, %v1037
      %v1039 = vpop.f32.mrb[0].mxu0
      %1040 = vmatprep.mubr.bf16.mxu0 0
      %1041 = vmatmul.mubr.bf16.gmra.mrb[0].mxu0 %v893
      %v1042 = vpop.f32.mrb[0].mxu0
      %v1043 = vadd.f32 0.0, %v1042
      %v1044 = vpop.f32.mrb[0].mxu0
      %v1045 = vpop.f32.mrb[0].mxu0
      %v1046 = vadd.f32 0.0, %v1045
      %v1047 = vpop.f32.mrb[0].mxu0
      %1048 = vmatprep.mubr.bf16.mxu0 0
      %1049 = vmatmul.mubr.bf16.gmra.mrb[0].mxu0 %v896
      %v1050 = vpop.f32.mrb[0].mxu0
      %v1051 = vadd.f32 0.0, %v1050
      %v1052 = vpop.f32.mrb[0].mxu0
      %v1053 = vpop.f32.mrb[0].mxu0
      %v1054 = vadd.f32 0.0, %v1053
      %v1055 = vpop.f32.mrb[0].mxu0
      %1056 = vmatprep.mubr.bf16.mxu0 0
      %1057 = vmatmul.mubr.bf16.gmra.mrb[0].mxu0 %v899
      %v1058 = vpop.f32.mrb[0].mxu0
      %v1059 = vadd.f32 0.0, %v1058
      %v1060 = vpop.f32.mrb[0].mxu0
      %v1061 = vpop.f32.mrb[0].mxu0
      %v1062 = vadd.f32 0.0, %v1061
      %v1063 = vpop.f32.mrb[0].mxu0
      %1064 = vdwg.mxu0
      %v1065 = vpack.c.bf16 %v942, %v939
      %v1066 = vpack.c.bf16 %v950, %v947
      %v1067 = vpack.c.bf16 %v958, %v955
      %v1068 = vpack.c.bf16 %v966, %v963
      %v1069 = vpack.c.bf16 %v974, %v971
      %v1070 = vpack.c.bf16 %v982, %v979
      %v1071 = vpack.c.bf16 %v990, %v987
      %v1072 = vpack.c.bf16 %v998, %v995
      %v1073 = vpack.c.bf16 %v1006, %v1003
      %v1074 = vpack.c.bf16 %v1014, %v1011
      %v1075 = vpack.c.bf16 %v1022, %v1019
      %v1076 = vpack.c.bf16 %v1030, %v1027
      %v1077 = vpack.c.bf16 %v1038, %v1035
      %v1078 = vpack.c.bf16 %v1046, %v1043
      %v1079 = vpack.c.bf16 %v1054, %v1051
      %v1080 = vpack.c.bf16 %v1062, %v1059
      %v1097 = vunpack.c.l.b16 %v1065
      %v1098 = vunpack.c.h.b16 %v1065
      %v1099 = vunpack.c.l.b16 %v1066
      %v1100 = vunpack.c.h.b16 %v1066
      %v1101 = vunpack.c.l.b16 %v1067
      %v1102 = vunpack.c.h.b16 %v1067
      %v1103 = vunpack.c.l.b16 %v1068
      %v1104 = vunpack.c.h.b16 %v1068
      %v1105 = vunpack.c.l.b16 %v1069
      %v1106 = vunpack.c.h.b16 %v1069
      %v1107 = vunpack.c.l.b16 %v1070
      %v1108 = vunpack.c.h.b16 %v1070
      %v1109 = vunpack.c.l.b16 %v1071
      %v1110 = vunpack.c.h.b16 %v1071
      %v1111 = vunpack.c.l.b16 %v1072
      %v1112 = vunpack.c.h.b16 %v1072
      %v1113 = vunpack.c.l.b16 %v1073
      %v1114 = vunpack.c.h.b16 %v1073
      %v1115 = vunpack.c.l.b16 %v1074
      %v1116 = vunpack.c.h.b16 %v1074
      %v1117 = vunpack.c.l.b16 %v1075
      %v1118 = vunpack.c.h.b16 %v1075
      %v1119 = vunpack.c.l.b16 %v1076
      %v1120 = vunpack.c.h.b16 %v1076
      %v1121 = vunpack.c.l.b16 %v1077
      %v1122 = vunpack.c.h.b16 %v1077
      %v1123 = vunpack.c.l.b16 %v1078
      %v1124 = vunpack.c.h.b16 %v1078
      %v1125 = vunpack.c.l.b16 %v1079
      %v1126 = vunpack.c.h.b16 %v1079
      %v1127 = vunpack.c.l.b16 %v1080
      %v1128 = vunpack.c.h.b16 %v1080
      %v1129 = vpack.c.b16 %v1097, %v1097
      %v1130 = vpack.c.b16 %v1098, %v1098
      %v1131 = vpack.c.b16 %v1099, %v1099
      %v1132 = vpack.c.b16 %v1100, %v1100
      %v1133 = vpack.c.b16 %v1101, %v1101
      %v1134 = vpack.c.b16 %v1102, %v1102
      %v1135 = vpack.c.b16 %v1103, %v1103
      %v1136 = vpack.c.b16 %v1104, %v1104
      %v1137 = vpack.c.b16 %v1105, %v1105
      %v1138 = vpack.c.b16 %v1106, %v1106
      %v1139 = vpack.c.b16 %v1107, %v1107
      %v1140 = vpack.c.b16 %v1108, %v1108
      %v1141 = vpack.c.b16 %v1109, %v1109
      %v1142 = vpack.c.b16 %v1110, %v1110
      %v1143 = vpack.c.b16 %v1111, %v1111
      %v1144 = vpack.c.b16 %v1112, %v1112
      %v1145 = vpack.c.b16 %v1113, %v1113
      %v1146 = vpack.c.b16 %v1114, %v1114
      %v1147 = vpack.c.b16 %v1115, %v1115
      %v1148 = vpack.c.b16 %v1116, %v1116
      %v1149 = vpack.c.b16 %v1117, %v1117
      %v1150 = vpack.c.b16 %v1118, %v1118
      %v1151 = vpack.c.b16 %v1119, %v1119
      %v1152 = vpack.c.b16 %v1120, %v1120
      %v1153 = vpack.c.b16 %v1121, %v1121
      %v1154 = vpack.c.b16 %v1122, %v1122
      %v1155 = vpack.c.b16 %v1123, %v1123
      %v1156 = vpack.c.b16 %v1124, %v1124
      %v1157 = vpack.c.b16 %v1125, %v1125
      %v1158 = vpack.c.b16 %v1126, %v1126
      %v1159 = vpack.c.b16 %v1127, %v1127
      %v1160 = vpack.c.b16 %v1128, %v1128
      %vm1193 = vcmask 781312
      %1194 = vst.msk [vmem:[%s294] sm:$0xf] %vm1193, %v1129
      %1195 = vst.msk [vmem:[%s294 + $0x4] sm:$0xf] %vm1193, %v1130
      %1196 = vst.msk [vmem:[%s294 + $0x8] sm:$0xf] %vm1193, %v1131
      %1197 = vst.msk [vmem:[%s294 + $0xc] sm:$0xf] %vm1193, %v1132
      %1198 = vst.msk [vmem:[%s294 + $0x10] sm:$0xf] %vm1193, %v1133
      %1199 = vst.msk [vmem:[%s294 + $0x14] sm:$0xf] %vm1193, %v1134
      %1200 = vst.msk [vmem:[%s294 + $0x18] sm:$0xf] %vm1193, %v1135
      %1201 = vst.msk [vmem:[%s294 + $0x1c] sm:$0xf] %vm1193, %v1136
      %1202 = vst.msk [vmem:[%s294 + $0x20] sm:$0xf] %vm1193, %v1137
      %1203 = vst.msk [vmem:[%s294 + $0x24] sm:$0xf] %vm1193, %v1138
      %1204 = vst.msk [vmem:[%s294 + $0x28] sm:$0xf] %vm1193, %v1139
      %1205 = vst.msk [vmem:[%s294 + $0x2c] sm:$0xf] %vm1193, %v1140
      %1206 = vst.msk [vmem:[%s294 + $0x30] sm:$0xf] %vm1193, %v1141
      %1207 = vst.msk [vmem:[%s294 + $0x34] sm:$0xf] %vm1193, %v1142
      %1208 = vst.msk [vmem:[%s294 + $0x38] sm:$0xf] %vm1193, %v1143
      %1209 = vst.msk [vmem:[%s294 + $0x3c] sm:$0xf] %vm1193, %v1144
      %1210 = vst.msk [vmem:[%s294 + $0x40] sm:$0xf] %vm1193, %v1145
      %1211 = vst.msk [vmem:[%s294 + $0x44] sm:$0xf] %vm1193, %v1146
      %1212 = vst.msk [vmem:[%s294 + $0x48] sm:$0xf] %vm1193, %v1147
      %1213 = vst.msk [vmem:[%s294 + $0x4c] sm:$0xf] %vm1193, %v1148
      %1214 = vst.msk [vmem:[%s294 + $0x50] sm:$0xf] %vm1193, %v1149
      %1215 = vst.msk [vmem:[%s294 + $0x54] sm:$0xf] %vm1193, %v1150
      %1216 = vst.msk [vmem:[%s294 + $0x58] sm:$0xf] %vm1193, %v1151
      %1217 = vst.msk [vmem:[%s294 + $0x5c] sm:$0xf] %vm1193, %v1152
      %1218 = vst.msk [vmem:[%s294 + $0x60] sm:$0xf] %vm1193, %v1153
      %1219 = vst.msk [vmem:[%s294 + $0x64] sm:$0xf] %vm1193, %v1154
      %1220 = vst.msk [vmem:[%s294 + $0x68] sm:$0xf] %vm1193, %v1155
      %1221 = vst.msk [vmem:[%s294 + $0x6c] sm:$0xf] %vm1193, %v1156
      %1222 = vst.msk [vmem:[%s294 + $0x70] sm:$0xf] %vm1193, %v1157
      %1223 = vst.msk [vmem:[%s294 + $0x74] sm:$0xf] %vm1193, %v1158
      %1224 = vst.msk [vmem:[%s294 + $0x78] sm:$0xf] %vm1193, %v1159
      %1225 = vst.msk [vmem:[%s294 + $0x7c] sm:$0xf] %vm1193, %v1160
      %s1226 = smul.u32 32, %s19
      %p1227 = scmp.lt.s32.totalorder %s1226, 63
      %s1228 = scalar_select %p1227, %s1226, 63
      %s1229 = smul.addr %s1228, 8
      %s1230 = scalar_lea.vmem %s6, %s1229
      %s1231 = smul.u32 32, %s19
      %p1232 = scmp.lt.s32.totalorder %s1231, 63
      %s1233 = scalar_select %p1232, %s1231, 63
      %s1234 = smul.addr %s1233, 4
      %s1235 = scalar_lea.vmem %s7, %s1234
      // Predicated region
      $region45: #{bottle_block_forward.3} parent=43 // pred_check
        %p1236 = pneg %p168
      $region46: #{bottle_block_forward.3} parent=43 // pred_check_branch
        %1238 = sbr.rel (%p1236) target = $region48
      $region47: #{bottle_block_forward.3} parent=43 // pred_region
        %s1239 = smul.u32 32, %s19
      $region48: #{bottle_block_forward.3} parent=43 // pred_fallthru
        _
      // Predicated region
      $region49: #{bottle_block_forward.3} parent=43 // pred_check
        %p1240 = pneg %p194
      $region50: #{bottle_block_forward.3} parent=43 // pred_check_branch
        %1242 = sbr.rel (%p1240) target = $region52
      $region51: #{bottle_block_forward.3} parent=43 // pred_region
        %s1243 = smul.u32 32, %s19
      $region52: #{bottle_block_forward.3} parent=43 // pred_fallthru
        _
    $region44: #{bottle_block_forward.3} parent=5 // pred_fallthru
      _
    %p1244 = scmp.le.s32.totalorder 2, %s14
    // Predicated region
    $region53: #{bottle_block_forward.3} parent=5 // pred_check
      %p1245 = pneg %p1244
    $region54: #{bottle_block_forward.3} parent=5 // pred_check_branch
      %1247 = sbr.rel (%p1245) target = $region56
    $region55: #{bottle_block_forward.3} parent=5 // pred_region
      %s1248 = ssub.s32 %s14, 2
      // Predicated region
      $region57: #{bottle_block_forward.3} parent=55 // pred_check
        %p1249 = pneg %p174
      $region58: #{bottle_block_forward.3} parent=55 // pred_check_branch
        %1251 = sbr.rel (%p1249) target = $region60
      $region59: #{bottle_block_forward.3} parent=55 // pred_region
        %s1252 = smul.u32 32, %s20
        %p1253 = scmp.lt.s32.totalorder %s1252, 63
        %s1254 = scalar_select %p1253, %s1252, 63
        %s1255 = smul.addr %s1254, 8
        %s1256 = scalar_lea.vmem %s6, %s1255
      $region60: #{bottle_block_forward.3} parent=55 // pred_fallthru
        _
      // Predicated region
      $region61: #{bottle_block_forward.3} parent=55 // pred_check
        %p1257 = pneg %p200
      $region62: #{bottle_block_forward.3} parent=55 // pred_check_branch
        %1259 = sbr.rel (%p1257) target = $region64
      $region63: #{bottle_block_forward.3} parent=55 // pred_region
        %s1260 = smul.u32 32, %s20
        %p1261 = scmp.lt.s32.totalorder %s1260, 63
        %s1262 = scalar_select %p1261, %s1260, 63
        %s1263 = smul.addr %s1262, 4
        %s1264 = scalar_lea.vmem %s7, %s1263
      $region64: #{bottle_block_forward.3} parent=55 // pred_fallthru
        _
    $region56: #{bottle_block_forward.3} parent=5 // pred_fallthru
      _
  $region6: #{bottle_block_forward.3} parent=0 // loop_footer
    %s18 = sadd.s32 1, %s14
  $region7: #{bottle_block_forward.3} parent=0 // loop_footer_branch
    %13 = sbr.rel target = $region3
  $region8: #{bottle_block_forward.3} parent=0 // loop_exit
    _

// kernel: bottle_block_forward.4
$region0: #{bottle_block_forward.4}
  #allocation0 [shape = 'u32[]', space=smem, size = 0x4, offset = 0x4, fixed_abs, tag = 'smem constant byte address 0x4 - core index']
  #allocation1 [shape = 'u32[144,128]{1,0:T(1,128)}', space=vmem, size = 0x12000, scoped, tag = 'internal scratch']
  %s0 = inlined_call_operand.vmem [shape: bf16[2,256,96], index: 0, kind: input, shape index: {}]
  %s1 = inlined_call_operand.vmem [shape: f32[256,16], index: 1, kind: input, shape index: {}]
  %s2 = inlined_call_operand.vmem [shape: bf16[2,256,32], index: 2, kind: output, shape index: {}]
  %s3 = sld [smem:[#allocation0]]
  $region41: #{bottle_block_forward.4} parent=0
    _
  %s5 = ssub.s32 1, %s3
  %s6 = scalar_select 0, %s5, %s3
  loop: start=0, step=1, limit=4
  $region2: #{bottle_block_forward.4} parent=0 // loop_pre_header
    _
  $region3: #{bottle_block_forward.4} parent=0 // loop_header
    %s8 = sphi 0, %s12
    %p9 = scmp.ge.s32.totalorder %s8, 4
    %s18 = sphi 0, %s20
    %s21 = sphi 0, %s18
    %s22 = sphi 0, %s21
    %s38 = sphi 0, %s22
    %s42 = sphi 0, %s42
    %s44 = sphi 0, %s42
    %s45 = sphi 0, %s44
    %s59 = sphi 0, %s45
    %s65 = sphi 0, %s67
    %s68 = sphi 0, %s65
    %s69 = sphi 0, %s68
    %s85 = sphi 0, %s69
  $region4: #{bottle_block_forward.4} parent=0 // loop_header_branch
    %11 = sbr.rel (%p9) target = $region8
  $region5: #{bottle_block_forward.4} parent=0 // loop_body
    %s13 = ssub.s32 %s8, 1
    %s14 = ssub.s32 %s8, 2
    %s15 = sadd.s32 %s8, 1
    %s16 = ssub.s32 %s8, %s15
    %p17 = scmp.eq.s32.totalorder %s16, 0
    %s19 = sadd.s32 %s18, 1
    %s20 = scalar_select %p17, %s18, %s19
    %p23 = pneg %p17
    %p24 = scmp.eq.s32.totalorder %s8, 1
    %p25 = por %p23, %p24
    %p26 = scmp.ne.s32.totalorder %s18, %s21
    %p27 = scmp.eq.s32.totalorder %s8, 0
    %p28 = por %p26, %p27
    %p29 = scmp.ne.s32.totalorder %s18, %s21
    %p30 = scmp.eq.s32.totalorder %s13, 1
    %p31 = por %p29, %p30
    %p32 = scmp.ne.s32.totalorder %s21, %s22
    %p33 = scmp.eq.s32.totalorder %s13, 0
    %p34 = por %p32, %p33
    %p35 = scmp.ne.s32.totalorder %s21, %s22
    %p36 = scmp.eq.s32.totalorder %s14, 1
    %p37 = por %p35, %p36
    %p39 = scmp.ne.s32.totalorder %s22, %s38
    %p40 = scmp.eq.s32.totalorder %s14, 0
    %p41 = por %p39, %p40
    %s43 = sadd.s32 %s42, 1
    %p46 = scmp.eq.s32.totalorder %s8, 1
    %p47 = scmp.ne.s32.totalorder %s42, %s44
    %p48 = scmp.eq.s32.totalorder %s8, 0
    %p49 = por %p47, %p48
    %p50 = scmp.ne.s32.totalorder %s42, %s44
    %p51 = scmp.eq.s32.totalorder %s13, 1
    %p52 = por %p50, %p51
    %p53 = scmp.ne.s32.totalorder %s44, %s45
    %p54 = scmp.eq.s32.totalorder %s13, 0
    %p55 = por %p53, %p54
    %p56 = scmp.ne.s32.totalorder %s44, %s45
    %p57 = scmp.eq.s32.totalorder %s14, 1
    %p58 = por %p56, %p57
    %p60 = scmp.ne.s32.totalorder %s45, %s59
    %p61 = scmp.eq.s32.totalorder %s14, 0
    %p62 = por %p60, %p61
    %s63 = ssub.s32 %s8, %s15
    %p64 = scmp.eq.s32.totalorder %s63, 0
    %s66 = sadd.s32 %s65, 1
    %s67 = scalar_select %p64, %s65, %s66
    %p70 = pneg %p64
    %p71 = scmp.eq.s32.totalorder %s8, 1
    %p72 = por %p70, %p71
    %p73 = scmp.ne.s32.totalorder %s65, %s68
    %p74 = scmp.eq.s32.totalorder %s8, 0
    %p75 = por %p73, %p74
    %p76 = scmp.ne.s32.totalorder %s65, %s68
    %p77 = scmp.eq.s32.totalorder %s13, 1
    %p78 = por %p76, %p77
    %p79 = scmp.ne.s32.totalorder %s68, %s69
    %p80 = scmp.eq.s32.totalorder %s13, 0
    %p81 = por %p79, %p80
    %p82 = scmp.ne.s32.totalorder %s68, %s69
    %p83 = scmp.eq.s32.totalorder %s14, 1
    %p84 = por %p82, %p83
    %p86 = scmp.ne.s32.totalorder %s69, %s85
    %p87 = scmp.eq.s32.totalorder %s14, 0
    %p88 = por %p86, %p87
    %p89 = scmp.le.s32.totalorder 1, %s8
    %p90 = scmp.lt.s32.totalorder %s8, 3
    %p91 = pnand %p89, %p90
    %p92 = pneg %p91
    // Predicated region
    $region9: #{bottle_block_forward.4} parent=5 // pred_check
      _
    $region10: #{bottle_block_forward.4} parent=5 // pred_check_branch
      %94 = sbr.rel (%p91) target = $region12
    $region11: #{bottle_block_forward.4} parent=5 // pred_region
      %s95 = ssub.s32 %s8, 1
      // Predicated region
      $region13: #{bottle_block_forward.4} parent=11 // pred_check
        %p96 = pneg %p55
      $region14: #{bottle_block_forward.4} parent=11 // pred_check_branch
        %98 = sbr.rel (%p96) target = $region16
      $region15: #{bottle_block_forward.4} parent=11 // pred_region
        _
      $region16: #{bottle_block_forward.4} parent=11 // pred_fallthru
        _
    $region12: #{bottle_block_forward.4} parent=5 // pred_fallthru
      _
    %p99 = scmp.lt.s32.totalorder %s8, 2
    // Predicated region
    $region17: #{bottle_block_forward.4} parent=5 // pred_check
      %p100 = pneg %p99
    $region18: #{bottle_block_forward.4} parent=5 // pred_check_branch
      %102 = sbr.rel (%p100) target = $region20
    $region19: #{bottle_block_forward.4} parent=5 // pred_region
      // Predicated region
      $region21: #{bottle_block_forward.4} parent=19 // pred_check
        %p103 = pneg %p28
      $region22: #{bottle_block_forward.4} parent=19 // pred_check_branch
        %105 = sbr.rel (%p103) target = $region24
      $region23: #{bottle_block_forward.4} parent=19 // pred_region
        %p106 = scmp.lt.s32.totalorder %s8, 1
        %s107 = scalar_select %p106, %s8, 1
        %s108 = smul.addr %s107, 32
        %s109 = smul.addr %s108, 4
        %s110 = scalar_lea.vmem %s0, %s109
      $region24: #{bottle_block_forward.4} parent=19 // pred_fallthru
        _
    $region20: #{bottle_block_forward.4} parent=5 // pred_fallthru
      _
    %p111 = scmp.le.s32.totalorder 1, %s8
    %p112 = scmp.lt.s32.totalorder %s8, 3
    %p113 = pnand %p111, %p112
    %p114 = pneg %p113
    // Predicated region
    $region25: #{bottle_block_forward.4} parent=5 // pred_check
      _
    $region26: #{bottle_block_forward.4} parent=5 // pred_check_branch
      %116 = sbr.rel (%p113) target = $region28
    $region27: #{bottle_block_forward.4} parent=5 // pred_region
      %s117 = ssub.s32 %s8, 1
      %p118 = scmp.lt.s32.totalorder %s13, 1
      %s119 = scalar_select %p118, %s13, 1
      %s120 = smul.addr %s119, 32
      %s121 = smul.addr %s120, 4
      %s122 = scalar_lea.vmem %s0, %s121
      %p123 = pneg %p34
      %p124 = pneg %p31
      %p125 = pneg %p55
      %p126 = pneg %p52
      %p127 = pneg %p81
      %p128 = pneg %p78
      %p129 = scmp.lt.s32.totalorder %s13, 1
      %s130 = scalar_select %p129, %s13, 1
      %s131 = smul.addr %s130, 32
      %s132 = smul.addr %s131, 4
      %s133 = scalar_lea.vmem %s2, %s132
      %p134 = scmp.lt.s32.totalorder %s13, 1
      %s135 = scalar_select %p134, %s13, 1
      %s136 = smul.addr %s135, 32
      %s137 = smul.addr %s136, 4
      %s138 = scalar_lea.vmem %s0, %s137
      %p139 = scmp.lt.s32.totalorder %s13, 1
      %s140 = scalar_select %p139, %s13, 1
      %s141 = smul.addr %s140, 32
      %s142 = smul.addr %s141, 4
      %s143 = scalar_lea.vmem %s2, %s142
      %v145 = vld [vmem:[%s138] sm:$0xf]
      %v146 = vld [vmem:[%s138 + $0x4] sm:$0xf]
      %v147 = vld [vmem:[%s138 + $0x8] sm:$0xf]
      %v148 = vld [vmem:[%s138 + $0xc] sm:$0xf]
      %v149 = vld [vmem:[%s138 + $0x10] sm:$0xf]
      %v150 = vld [vmem:[%s138 + $0x14] sm:$0xf]
      %v151 = vld [vmem:[%s138 + $0x18] sm:$0xf]
      %v152 = vld [vmem:[%s138 + $0x1c] sm:$0xf]
      %v153 = vld [vmem:[%s138 + $0x20] sm:$0xf]
      %v154 = vld [vmem:[%s138 + $0x24] sm:$0xf]
      %v155 = vld [vmem:[%s138 + $0x28] sm:$0xf]
      %v156 = vld [vmem:[%s138 + $0x2c] sm:$0xf]
      %v157 = vld [vmem:[%s138 + $0x30] sm:$0xf]
      %v158 = vld [vmem:[%s138 + $0x34] sm:$0xf]
      %v159 = vld [vmem:[%s138 + $0x38] sm:$0xf]
      %v160 = vld [vmem:[%s138 + $0x3c] sm:$0xf]
      %v161 = vld [vmem:[%s138 + $0x40] sm:$0xf]
      %v162 = vld [vmem:[%s138 + $0x44] sm:$0xf]
      %v163 = vld [vmem:[%s138 + $0x48] sm:$0xf]
      %v164 = vld [vmem:[%s138 + $0x4c] sm:$0xf]
      %v165 = vld [vmem:[%s138 + $0x50] sm:$0xf]
      %v166 = vld [vmem:[%s138 + $0x54] sm:$0xf]
      %v167 = vld [vmem:[%s138 + $0x58] sm:$0xf]
      %v168 = vld [vmem:[%s138 + $0x5c] sm:$0xf]
      %v169 = vld [vmem:[%s138 + $0x60] sm:$0xf]
      %v170 = vld [vmem:[%s138 + $0x64] sm:$0xf]
      %v171 = vld [vmem:[%s138 + $0x68] sm:$0xf]
      %v172 = vld [vmem:[%s138 + $0x6c] sm:$0xf]
      %v173 = vld [vmem:[%s138 + $0x70] sm:$0xf]
      %v174 = vld [vmem:[%s138 + $0x74] sm:$0xf]
      %v175 = vld [vmem:[%s138 + $0x78] sm:$0xf]
      %v176 = vld [vmem:[%s138 + $0x7c] sm:$0xf]
      %v177 = vld [vmem:[%s1] sm:$0xff]
      %v178 = vld [vmem:[%s1 + $0x8] sm:$0xff]
      %v179 = vld [vmem:[%s1 + $0x10] sm:$0xff]
      %v180 = vld [vmem:[%s1 + $0x18] sm:$0xff]
      %v181 = vld [vmem:[%s1 + $0x20] sm:$0xff]
      %v182 = vld [vmem:[%s1 + $0x28] sm:$0xff]
      %v183 = vld [vmem:[%s1 + $0x30] sm:$0xff]
      %v184 = vld [vmem:[%s1 + $0x38] sm:$0xff]
      %v185 = vld [vmem:[%s1 + $0x40] sm:$0xff]
      %v186 = vld [vmem:[%s1 + $0x48] sm:$0xff]
      %v187 = vld [vmem:[%s1 + $0x50] sm:$0xff]
      %v188 = vld [vmem:[%s1 + $0x58] sm:$0xff]
      %v189 = vld [vmem:[%s1 + $0x60] sm:$0xff]
      %v190 = vld [vmem:[%s1 + $0x68] sm:$0xff]
      %v191 = vld [vmem:[%s1 + $0x70] sm:$0xff]
      %v192 = vld [vmem:[%s1 + $0x78] sm:$0xff]
      %v193 = vld [vmem:[%s1 + $0x80] sm:$0xff]
      %v194 = vld [vmem:[%s1 + $0x88] sm:$0xff]
      %v195 = vld [vmem:[%s1 + $0x90] sm:$0xff]
      %v196 = vld [vmem:[%s1 + $0x98] sm:$0xff]
      %v197 = vld [vmem:[%s1 + $0xa0] sm:$0xff]
      %v198 = vld [vmem:[%s1 + $0xa8] sm:$0xff]
      %v199 = vld [vmem:[%s1 + $0xb0] sm:$0xff]
      %v200 = vld [vmem:[%s1 + $0xb8] sm:$0xff]
      %v201 = vld [vmem:[%s1 + $0xc0] sm:$0xff]
      %v202 = vld [vmem:[%s1 + $0xc8] sm:$0xff]
      %v203 = vld [vmem:[%s1 + $0xd0] sm:$0xff]
      %v204 = vld [vmem:[%s1 + $0xd8] sm:$0xff]
      %v205 = vld [vmem:[%s1 + $0xe0] sm:$0xff]
      %v206 = vld [vmem:[%s1 + $0xe8] sm:$0xff]
      %v207 = vld [vmem:[%s1 + $0xf0] sm:$0xff]
      %v208 = vld [vmem:[%s1 + $0xf8] sm:$0xff]
      %v209 = vunpack.c.l.bf16 %v145
      %v210 = vunpack.c.l.bf16 %v146
      %v211 = vunpack.c.l.bf16 %v147
      %v212 = vunpack.c.l.bf16 %v148
      %v213 = vunpack.c.l.bf16 %v149
      %v214 = vunpack.c.l.bf16 %v150
      %v215 = vunpack.c.l.bf16 %v151
      %v216 = vunpack.c.l.bf16 %v152
      %v217 = vunpack.c.l.bf16 %v153
      %v218 = vunpack.c.l.bf16 %v154
      %v219 = vunpack.c.l.bf16 %v155
      %v220 = vunpack.c.l.bf16 %v156
      %v221 = vunpack.c.l.bf16 %v157
      %v222 = vunpack.c.l.bf16 %v158
      %v223 = vunpack.c.l.bf16 %v159
      %v224 = vunpack.c.l.bf16 %v160
      %v225 = vunpack.c.l.bf16 %v161
      %v226 = vunpack.c.l.bf16 %v162
      %v227 = vunpack.c.l.bf16 %v163
      %v228 = vunpack.c.l.bf16 %v164
      %v229 = vunpack.c.l.bf16 %v165
      %v230 = vunpack.c.l.bf16 %v166
      %v231 = vunpack.c.l.bf16 %v167
      %v232 = vunpack.c.l.bf16 %v168
      %v233 = vunpack.c.l.bf16 %v169
      %v234 = vunpack.c.l.bf16 %v170
      %v235 = vunpack.c.l.bf16 %v171
      %v236 = vunpack.c.l.bf16 %v172
      %v237 = vunpack.c.l.bf16 %v173
      %v238 = vunpack.c.l.bf16 %v174
      %v239 = vunpack.c.l.bf16 %v175
      %v240 = vunpack.c.l.bf16 %v176
      %v241 = vmul.f32 %v209, 0.25
      %v242 = vmul.f32 %v210, 0.25
      %v243 = vmul.f32 %v211, 0.25
      %v244 = vmul.f32 %v212, 0.25
      %v245 = vmul.f32 %v213, 0.25
      %v246 = vmul.f32 %v214, 0.25
      %v247 = vmul.f32 %v215, 0.25
      %v248 = vmul.f32 %v216, 0.25
      %v249 = vmul.f32 %v217, 0.25
      %v250 = vmul.f32 %v218, 0.25
      %v251 = vmul.f32 %v219, 0.25
      %v252 = vmul.f32 %v220, 0.25
      %v253 = vmul.f32 %v221, 0.25
      %v254 = vmul.f32 %v222, 0.25
      %v255 = vmul.f32 %v223, 0.25
      %v256 = vmul.f32 %v224, 0.25
      %v257 = vmul.f32 %v225, 0.25
      %v258 = vmul.f32 %v226, 0.25
      %v259 = vmul.f32 %v227, 0.25
      %v260 = vmul.f32 %v228, 0.25
      %v261 = vmul.f32 %v229, 0.25
      %v262 = vmul.f32 %v230, 0.25
      %v263 = vmul.f32 %v231, 0.25
      %v264 = vmul.f32 %v232, 0.25
      %v265 = vmul.f32 %v233, 0.25
      %v266 = vmul.f32 %v234, 0.25
      %v267 = vmul.f32 %v235, 0.25
      %v268 = vmul.f32 %v236, 0.25
      %v269 = vmul.f32 %v237, 0.25
      %v270 = vmul.f32 %v238, 0.25
      %v271 = vmul.f32 %v239, 0.25
      %v272 = vmul.f32 %v240, 0.25
      %305 = vrot.lane.b32.xlu0 %v177, 32
      %v306 = vpop.permute.xlu0 %305
      %307 = vrot.lane.b32.xlu0 %v178, 32
      %v308 = vpop.permute.xlu0 %307
      %309 = vrot.lane.b32.xlu0 %v179, 32
      %v310 = vpop.permute.xlu0 %309
      %311 = vrot.lane.b32.xlu0 %v180, 32
      %v312 = vpop.permute.xlu0 %311
      %313 = vrot.lane.b32.xlu0 %v181, 32
      %v314 = vpop.permute.xlu0 %313
      %315 = vrot.lane.b32.xlu0 %v182, 32
      %v316 = vpop.permute.xlu0 %315
      %317 = vrot.lane.b32.xlu0 %v183, 32
      %v318 = vpop.permute.xlu0 %317
      %319 = vrot.lane.b32.xlu0 %v184, 32
      %v320 = vpop.permute.xlu0 %319
      %321 = vrot.lane.b32.xlu0 %v185, 32
      %v322 = vpop.permute.xlu0 %321
      %323 = vrot.lane.b32.xlu0 %v186, 32
      %v324 = vpop.permute.xlu0 %323
      %325 = vrot.lane.b32.xlu0 %v187, 32
      %v326 = vpop.permute.xlu0 %325
      %327 = vrot.lane.b32.xlu0 %v188, 32
      %v328 = vpop.permute.xlu0 %327
      %329 = vrot.lane.b32.xlu0 %v189, 32
      %v330 = vpop.permute.xlu0 %329
      %331 = vrot.lane.b32.xlu0 %v190, 32
      %v332 = vpop.permute.xlu0 %331
      %333 = vrot.lane.b32.xlu0 %v191, 32
      %v334 = vpop.permute.xlu0 %333
      %335 = vrot.lane.b32.xlu0 %v192, 32
      %v336 = vpop.permute.xlu0 %335
      %337 = vrot.lane.b32.xlu0 %v193, 32
      %v338 = vpop.permute.xlu0 %337
      %339 = vrot.lane.b32.xlu0 %v194, 32
      %v340 = vpop.permute.xlu0 %339
      %341 = vrot.lane.b32.xlu0 %v195, 32
      %v342 = vpop.permute.xlu0 %341
      %343 = vrot.lane.b32.xlu0 %v196, 32
      %v344 = vpop.permute.xlu0 %343
      %345 = vrot.lane.b32.xlu0 %v197, 32
      %v346 = vpop.permute.xlu0 %345
      %347 = vrot.lane.b32.xlu0 %v198, 32
      %v348 = vpop.permute.xlu0 %347
      %349 = vrot.lane.b32.xlu0 %v199, 32
      %v350 = vpop.permute.xlu0 %349
      %351 = vrot.lane.b32.xlu0 %v200, 32
      %v352 = vpop.permute.xlu0 %351
      %353 = vrot.lane.b32.xlu0 %v201, 32
      %v354 = vpop.permute.xlu0 %353
      %355 = vrot.lane.b32.xlu0 %v202, 32
      %v356 = vpop.permute.xlu0 %355
      %357 = vrot.lane.b32.xlu0 %v203, 32
      %v358 = vpop.permute.xlu0 %357
      %359 = vrot.lane.b32.xlu0 %v204, 32
      %v360 = vpop.permute.xlu0 %359
      %361 = vrot.lane.b32.xlu0 %v205, 32
      %v362 = vpop.permute.xlu0 %361
      %363 = vrot.lane.b32.xlu0 %v206, 32
      %v364 = vpop.permute.xlu0 %363
      %365 = vrot.lane.b32.xlu0 %v207, 32
      %v366 = vpop.permute.xlu0 %365
      %367 = vrot.lane.b32.xlu0 %v208, 32
      %v368 = vpop.permute.xlu0 %367
      %v401 = vadd.f32 %v209, %v306
      %v402 = vadd.f32 %v210, %v308
      %v403 = vadd.f32 %v211, %v310
      %v404 = vadd.f32 %v212, %v312
      %v405 = vadd.f32 %v213, %v314
      %v406 = vadd.f32 %v214, %v316
      %v407 = vadd.f32 %v215, %v318
      %v408 = vadd.f32 %v216, %v320
      %v409 = vadd.f32 %v217, %v322
      %v410 = vadd.f32 %v218, %v324
      %v411 = vadd.f32 %v219, %v326
      %v412 = vadd.f32 %v220, %v328
      %v413 = vadd.f32 %v221, %v330
      %v414 = vadd.f32 %v222, %v332
      %v415 = vadd.f32 %v223, %v334
      %v416 = vadd.f32 %v224, %v336
      %v417 = vadd.f32 %v225, %v338
      %v418 = vadd.f32 %v226, %v340
      %v419 = vadd.f32 %v227, %v342
      %v420 = vadd.f32 %v228, %v344
      %v421 = vadd.f32 %v229, %v346
      %v422 = vadd.f32 %v230, %v348
      %v423 = vadd.f32 %v231, %v350
      %v424 = vadd.f32 %v232, %v352
      %v425 = vadd.f32 %v233, %v354
      %v426 = vadd.f32 %v234, %v356
      %v427 = vadd.f32 %v235, %v358
      %v428 = vadd.f32 %v236, %v360
      %v429 = vadd.f32 %v237, %v362
      %v430 = vadd.f32 %v238, %v364
      %v431 = vadd.f32 %v239, %v366
      %v432 = vadd.f32 %v240, %v368
      %v433 = vpack.c.bf16 %v402, %v401
      %v434 = vpack.c.bf16 %v404, %v403
      %v435 = vpack.c.bf16 %v406, %v405
      %v436 = vpack.c.bf16 %v408, %v407
      %v437 = vpack.c.bf16 %v410, %v409
      %v438 = vpack.c.bf16 %v412, %v411
      %v439 = vpack.c.bf16 %v414, %v413
      %v440 = vpack.c.bf16 %v416, %v415
      %v441 = vpack.c.bf16 %v418, %v417
      %v442 = vpack.c.bf16 %v420, %v419
      %v443 = vpack.c.bf16 %v422, %v421
      %v444 = vpack.c.bf16 %v424, %v423
      %v445 = vpack.c.bf16 %v426, %v425
      %v446 = vpack.c.bf16 %v428, %v427
      %v447 = vpack.c.bf16 %v430, %v429
      %v448 = vpack.c.bf16 %v432, %v431
      %v449 = vpack.c.bf16 %v242, %v241
      %v450 = vpack.c.bf16 %v244, %v243
      %v451 = vpack.c.bf16 %v246, %v245
      %v452 = vpack.c.bf16 %v248, %v247
      %v453 = vpack.c.bf16 %v250, %v249
      %v454 = vpack.c.bf16 %v252, %v251
      %v455 = vpack.c.bf16 %v254, %v253
      %v456 = vpack.c.bf16 %v256, %v255
      %v457 = vpack.c.bf16 %v258, %v257
      %v458 = vpack.c.bf16 %v260, %v259
      %v459 = vpack.c.bf16 %v262, %v261
      %v460 = vpack.c.bf16 %v264, %v263
      %v461 = vpack.c.bf16 %v266, %v265
      %v462 = vpack.c.bf16 %v268, %v267
      %v463 = vpack.c.bf16 %v270, %v269
      %v464 = vpack.c.bf16 %v272, %v271
      %481 = vrot.lane.b32.xlu0 %v433, 96
      %v482 = vpop.permute.xlu0 %481
      %483 = vrot.lane.b32.xlu0 %v434, 96
      %v484 = vpop.permute.xlu0 %483
      %485 = vrot.lane.b32.xlu0 %v435, 96
      %v486 = vpop.permute.xlu0 %485
      %487 = vrot.lane.b32.xlu0 %v436, 96
      %v488 = vpop.permute.xlu0 %487
      %489 = vrot.lane.b32.xlu0 %v437, 96
      %v490 = vpop.permute.xlu0 %489
      %491 = vrot.lane.b32.xlu0 %v438, 96
      %v492 = vpop.permute.xlu0 %491
      %493 = vrot.lane.b32.xlu0 %v439, 96
      %v494 = vpop.permute.xlu0 %493
      %495 = vrot.lane.b32.xlu0 %v440, 96
      %v496 = vpop.permute.xlu0 %495
      %497 = vrot.lane.b32.xlu0 %v441, 96
      %v498 = vpop.permute.xlu0 %497
      %499 = vrot.lane.b32.xlu0 %v442, 96
      %v500 = vpop.permute.xlu0 %499
      %501 = vrot.lane.b32.xlu0 %v443, 96
      %v502 = vpop.permute.xlu0 %501
      %503 = vrot.lane.b32.xlu0 %v444, 96
      %v504 = vpop.permute.xlu0 %503
      %505 = vrot.lane.b32.xlu0 %v445, 96
      %v506 = vpop.permute.xlu0 %505
      %507 = vrot.lane.b32.xlu0 %v446, 96
      %v508 = vpop.permute.xlu0 %507
      %509 = vrot.lane.b32.xlu0 %v447, 96
      %v510 = vpop.permute.xlu0 %509
      %511 = vrot.lane.b32.xlu0 %v448, 96
      %v512 = vpop.permute.xlu0 %511
      %vm513 = vcmask 130048
      %v515 = vsel %vm513, %v449, 0
      %v518 = vsel %vm513, %v450, 0
      %v521 = vsel %vm513, %v451, 0
      %v524 = vsel %vm513, %v452, 0
      %v527 = vsel %vm513, %v453, 0
      %v530 = vsel %vm513, %v454, 0
      %v533 = vsel %vm513, %v455, 0
      %v536 = vsel %vm513, %v456, 0
      %v539 = vsel %vm513, %v457, 0
      %v542 = vsel %vm513, %v458, 0
      %v545 = vsel %vm513, %v459, 0
      %v548 = vsel %vm513, %v460, 0
      %v551 = vsel %vm513, %v461, 0
      %v554 = vsel %vm513, %v462, 0
      %v557 = vsel %vm513, %v463, 0
      %v560 = vsel %vm513, %v464, 0
      %v563 = vsel %vm513, %v482, 0
      %v566 = vsel %vm513, %v484, 0
      %v569 = vsel %vm513, %v486, 0
      %v572 = vsel %vm513, %v488, 0
      %v575 = vsel %vm513, %v490, 0
      %v578 = vsel %vm513, %v492, 0
      %v581 = vsel %vm513, %v494, 0
      %v584 = vsel %vm513, %v496, 0
      %v587 = vsel %vm513, %v498, 0
      %v590 = vsel %vm513, %v500, 0
      %v593 = vsel %vm513, %v502, 0
      %v596 = vsel %vm513, %v504, 0
      %v599 = vsel %vm513, %v506, 0
      %v602 = vsel %vm513, %v508, 0
      %v605 = vsel %vm513, %v510, 0
      %v608 = vsel %vm513, %v512, 0
      %610 = vmatprep.subr.bf16.mxu0 0
      %611 = vmatpush1.bf16.xpose.msra.mxu0 %v563
      %612 = vmatprep.subr.bf16.mxu0 0
      %613 = vmatpush1.bf16.xpose.msra.mxu0 %v566
      %614 = vmatprep.subr.bf16.mxu0 0
      %615 = vmatpush1.bf16.xpose.msra.mxu0 %v569
      %616 = vmatprep.subr.bf16.mxu0 0
      %617 = vmatpush1.bf16.xpose.msra.mxu0 %v572
      %618 = vmatprep.subr.bf16.mxu0 0
      %619 = vmatpush1.bf16.xpose.msra.mxu0 %v575
      %620 = vmatprep.subr.bf16.mxu0 0
      %621 = vmatpush1.bf16.xpose.msra.mxu0 %v578
      %622 = vmatprep.subr.bf16.mxu0 0
      %623 = vmatpush1.bf16.xpose.msra.mxu0 %v581
      %624 = vmatprep.subr.bf16.mxu0 0
      %625 = vmatpush1.bf16.xpose.msra.mxu0 %v584
      %626 = vmatprep.subr.bf16.mxu0 0
      %627 = vmatpush1.bf16.xpose.msra.mxu0 %v587
      %628 = vmatprep.subr.bf16.mxu0 0
      %629 = vmatpush1.bf16.xpose.msra.mxu0 %v590
      %630 = vmatprep.subr.bf16.mxu0 0
      %631 = vmatpush1.bf16.xpose.msra.mxu0 %v593
      %632 = vmatprep.subr.bf16.mxu0 0
      %633 = vmatpush1.bf16.xpose.msra.mxu0 %v596
      %634 = vmatprep.subr.bf16.mxu0 0
      %635 = vmatpush1.bf16.xpose.msra.mxu0 %v599
      %636 = vmatprep.subr.bf16.mxu0 0
      %637 = vmatpush1.bf16.xpose.msra.mxu0 %v602
      %638 = vmatprep.subr.bf16.mxu0 0
      %639 = vmatpush1.bf16.xpose.msra.mxu0 %v605
      %640 = vmatprep.subr.bf16.mxu0 0
      %641 = vmatpush1.bf16.xpose.msra.mxu0 %v608
      %642 = vmatprep.mubr.bf16.mxu0 0
      %643 = vmatmul.mubr.bf16.gmra.mrb[0].mxu0 %v515
      %v644 = vpop.f32.mrb[0].mxu0
      %v645 = vadd.f32 0.0, %v644
      %v646 = vpop.f32.mrb[0].mxu0
      %v647 = vadd.f32 0.0, %v646
      %v648 = vpop.f32.mrb[0].mxu0
      %v649 = vadd.f32 0.0, %v648
      %v650 = vpop.f32.mrb[0].mxu0
      %v651 = vadd.f32 0.0, %v650
      %652 = vmatprep.mubr.bf16.mxu0 0
      %653 = vmatmul.mubr.bf16.gmra.mrb[0].mxu0 %v518
      %v654 = vpop.f32.mrb[0].mxu0
      %v655 = vadd.f32 0.0, %v654
      %v656 = vpop.f32.mrb[0].mxu0
      %v657 = vadd.f32 0.0, %v656
      %v658 = vpop.f32.mrb[0].mxu0
      %v659 = vadd.f32 0.0, %v658
      %v660 = vpop.f32.mrb[0].mxu0
      %v661 = vadd.f32 0.0, %v660
      %662 = vmatprep.mubr.bf16.mxu0 0
      %663 = vmatmul.mubr.bf16.gmra.mrb[0].mxu0 %v521
      %v664 = vpop.f32.mrb[0].mxu0
      %v665 = vadd.f32 0.0, %v664
      %v666 = vpop.f32.mrb[0].mxu0
      %v667 = vadd.f32 0.0, %v666
      %v668 = vpop.f32.mrb[0].mxu0
      %v669 = vadd.f32 0.0, %v668
      %v670 = vpop.f32.mrb[0].mxu0
      %v671 = vadd.f32 0.0, %v670
      %672 = vmatprep.mubr.bf16.mxu0 0
      %673 = vmatmul.mubr.bf16.gmra.mrb[0].mxu0 %v524
      %v674 = vpop.f32.mrb[0].mxu0
      %v675 = vadd.f32 0.0, %v674
      %v676 = vpop.f32.mrb[0].mxu0
      %v677 = vadd.f32 0.0, %v676
      %v678 = vpop.f32.mrb[0].mxu0
      %v679 = vadd.f32 0.0, %v678
      %v680 = vpop.f32.mrb[0].mxu0
      %v681 = vadd.f32 0.0, %v680
      %682 = vmatprep.mubr.bf16.mxu0 0
      %683 = vmatmul.mubr.bf16.gmra.mrb[0].mxu0 %v527
      %v684 = vpop.f32.mrb[0].mxu0
      %v685 = vadd.f32 0.0, %v684
      %v686 = vpop.f32.mrb[0].mxu0
      %v687 = vadd.f32 0.0, %v686
      %v688 = vpop.f32.mrb[0].mxu0
      %v689 = vadd.f32 0.0, %v688
      %v690 = vpop.f32.mrb[0].mxu0
      %v691 = vadd.f32 0.0, %v690
      %692 = vmatprep.mubr.bf16.mxu0 0
      %693 = vmatmul.mubr.bf16.gmra.mrb[0].mxu0 %v530
      %v694 = vpop.f32.mrb[0].mxu0
      %v695 = vadd.f32 0.0, %v694
      %v696 = vpop.f32.mrb[0].mxu0
      %v697 = vadd.f32 0.0, %v696
      %v698 = vpop.f32.mrb[0].mxu0
      %v699 = vadd.f32 0.0, %v698
      %v700 = vpop.f32.mrb[0].mxu0
      %v701 = vadd.f32 0.0, %v700
      %702 = vmatprep.mubr.bf16.mxu0 0
      %703 = vmatmul.mubr.bf16.gmra.mrb[0].mxu0 %v533
      %v704 = vpop.f32.mrb[0].mxu0
      %v705 = vadd.f32 0.0, %v704
      %v706 = vpop.f32.mrb[0].mxu0
      %v707 = vadd.f32 0.0, %v706
      %v708 = vpop.f32.mrb[0].mxu0
      %v709 = vadd.f32 0.0, %v708
      %v710 = vpop.f32.mrb[0].mxu0
      %v711 = vadd.f32 0.0, %v710
      %712 = vmatprep.mubr.bf16.mxu0 0
      %713 = vmatmul.mubr.bf16.gmra.mrb[0].mxu0 %v536
      %v714 = vpop.f32.mrb[0].mxu0
      %v715 = vadd.f32 0.0, %v714
      %v716 = vpop.f32.mrb[0].mxu0
      %v717 = vadd.f32 0.0, %v716
      %v718 = vpop.f32.mrb[0].mxu0
      %v719 = vadd.f32 0.0, %v718
      %v720 = vpop.f32.mrb[0].mxu0
      %v721 = vadd.f32 0.0, %v720
      %722 = vmatprep.mubr.bf16.mxu0 0
      %723 = vmatmul.mubr.bf16.gmra.mrb[0].mxu0 %v539
      %v724 = vpop.f32.mrb[0].mxu0
      %v725 = vadd.f32 0.0, %v724
      %v726 = vpop.f32.mrb[0].mxu0
      %v727 = vadd.f32 0.0, %v726
      %v728 = vpop.f32.mrb[0].mxu0
      %v729 = vadd.f32 0.0, %v728
      %v730 = vpop.f32.mrb[0].mxu0
      %v731 = vadd.f32 0.0, %v730
      %732 = vmatprep.mubr.bf16.mxu0 0
      %733 = vmatmul.mubr.bf16.gmra.mrb[0].mxu0 %v542
      %v734 = vpop.f32.mrb[0].mxu0
      %v735 = vadd.f32 0.0, %v734
      %v736 = vpop.f32.mrb[0].mxu0
      %v737 = vadd.f32 0.0, %v736
      %v738 = vpop.f32.mrb[0].mxu0
      %v739 = vadd.f32 0.0, %v738
      %v740 = vpop.f32.mrb[0].mxu0
      %v741 = vadd.f32 0.0, %v740
      %742 = vmatprep.mubr.bf16.mxu0 0
      %743 = vmatmul.mubr.bf16.gmra.mrb[0].mxu0 %v545
      %v744 = vpop.f32.mrb[0].mxu0
      %v745 = vadd.f32 0.0, %v744
      %v746 = vpop.f32.mrb[0].mxu0
      %v747 = vadd.f32 0.0, %v746
      %v748 = vpop.f32.mrb[0].mxu0
      %v749 = vadd.f32 0.0, %v748
      %v750 = vpop.f32.mrb[0].mxu0
      %v751 = vadd.f32 0.0, %v750
      %752 = vmatprep.mubr.bf16.mxu0 0
      %753 = vmatmul.mubr.bf16.gmra.mrb[0].mxu0 %v548
      %v754 = vpop.f32.mrb[0].mxu0
      %v755 = vadd.f32 0.0, %v754
      %v756 = vpop.f32.mrb[0].mxu0
      %v757 = vadd.f32 0.0, %v756
      %v758 = vpop.f32.mrb[0].mxu0
      %v759 = vadd.f32 0.0, %v758
      %v760 = vpop.f32.mrb[0].mxu0
      %v761 = vadd.f32 0.0, %v760
      %762 = vmatprep.mubr.bf16.mxu0 0
      %763 = vmatmul.mubr.bf16.gmra.mrb[0].mxu0 %v551
      %v764 = vpop.f32.mrb[0].mxu0
      %v765 = vadd.f32 0.0, %v764
      %v766 = vpop.f32.mrb[0].mxu0
      %v767 = vadd.f32 0.0, %v766
      %v768 = vpop.f32.mrb[0].mxu0
      %v769 = vadd.f32 0.0, %v768
      %v770 = vpop.f32.mrb[0].mxu0
      %v771 = vadd.f32 0.0, %v770
      %772 = vmatprep.mubr.bf16.mxu0 0
      %773 = vmatmul.mubr.bf16.gmra.mrb[0].mxu0 %v554
      %v774 = vpop.f32.mrb[0].mxu0
      %v775 = vadd.f32 0.0, %v774
      %v776 = vpop.f32.mrb[0].mxu0
      %v777 = vadd.f32 0.0, %v776
      %v778 = vpop.f32.mrb[0].mxu0
      %v779 = vadd.f32 0.0, %v778
      %v780 = vpop.f32.mrb[0].mxu0
      %v781 = vadd.f32 0.0, %v780
      %782 = vmatprep.mubr.bf16.mxu0 0
      %783 = vmatmul.mubr.bf16.gmra.mrb[0].mxu0 %v557
      %v784 = vpop.f32.mrb[0].mxu0
      %v785 = vadd.f32 0.0, %v784
      %v786 = vpop.f32.mrb[0].mxu0
      %v787 = vadd.f32 0.0, %v786
      %v788 = vpop.f32.mrb[0].mxu0
      %v789 = vadd.f32 0.0, %v788
      %v790 = vpop.f32.mrb[0].mxu0
      %v791 = vadd.f32 0.0, %v790
      %792 = vmatprep.mubr.bf16.mxu0 0
      %793 = vmatmul.mubr.bf16.gmra.mrb[0].mxu0 %v560
      %v794 = vpop.f32.mrb[0].mxu0
      %v795 = vadd.f32 0.0, %v794
      %v796 = vpop.f32.mrb[0].mxu0
      %v797 = vadd.f32 0.0, %v796
      %v798 = vpop.f32.mrb[0].mxu0
      %v799 = vadd.f32 0.0, %v798
      %v800 = vpop.f32.mrb[0].mxu0
      %v801 = vadd.f32 0.0, %v800
      %802 = vdwg.mxu0
      %v803 = vmax.f32 %v645, %v647
      %804 = vmax.xlane.f32.xlu0 %v803
      %v805 = vpop.xlane.xlu0 %804
      %v806 = vmax.f32 %v649, %v651
      %807 = vmax.xlane.f32.xlu0 %v806
      %v808 = vpop.xlane.xlu0 %807
      %v809 = vmax.f32 %v655, %v657
      %810 = vmax.xlane.f32.xlu0 %v809
      %v811 = vpop.xlane.xlu0 %810
      %v812 = vmax.f32 %v659, %v661
      %813 = vmax.xlane.f32.xlu0 %v812
      %v814 = vpop.xlane.xlu0 %813
      %v815 = vmax.f32 %v665, %v667
      %816 = vmax.xlane.f32.xlu0 %v815
      %v817 = vpop.xlane.xlu0 %816
      %v818 = vmax.f32 %v669, %v671
      %819 = vmax.xlane.f32.xlu0 %v818
      %v820 = vpop.xlane.xlu0 %819
      %v821 = vmax.f32 %v675, %v677
      %822 = vmax.xlane.f32.xlu0 %v821
      %v823 = vpop.xlane.xlu0 %822
      %v824 = vmax.f32 %v679, %v681
      %825 = vmax.xlane.f32.xlu0 %v824
      %v826 = vpop.xlane.xlu0 %825
      %v827 = vmax.f32 %v685, %v687
      %828 = vmax.xlane.f32.xlu0 %v827
      %v829 = vpop.xlane.xlu0 %828
      %v830 = vmax.f32 %v689, %v691
      %831 = vmax.xlane.f32.xlu0 %v830
      %v832 = vpop.xlane.xlu0 %831
      %v833 = vmax.f32 %v695, %v697
      %834 = vmax.xlane.f32.xlu0 %v833
      %v835 = vpop.xlane.xlu0 %834
      %v836 = vmax.f32 %v699, %v701
      %837 = vmax.xlane.f32.xlu0 %v836
      %v838 = vpop.xlane.xlu0 %837
      %v839 = vmax.f32 %v705, %v707
      %840 = vmax.xlane.f32.xlu0 %v839
      %v841 = vpop.xlane.xlu0 %840
      %v842 = vmax.f32 %v709, %v711
      %843 = vmax.xlane.f32.xlu0 %v842
      %v844 = vpop.xlane.xlu0 %843
      %v845 = vmax.f32 %v715, %v717
      %846 = vmax.xlane.f32.xlu0 %v845
      %v847 = vpop.xlane.xlu0 %846
      %v848 = vmax.f32 %v719, %v721
      %849 = vmax.xlane.f32.xlu0 %v848
      %v850 = vpop.xlane.xlu0 %849
      %v851 = vmax.f32 %v725, %v727
      %852 = vmax.xlane.f32.xlu0 %v851
      %v853 = vpop.xlane.xlu0 %852
      %v854 = vmax.f32 %v729, %v731
      %855 = vmax.xlane.f32.xlu0 %v854
      %v856 = vpop.xlane.xlu0 %855
      %v857 = vmax.f32 %v735, %v737
      %858 = vmax.xlane.f32.xlu0 %v857
      %v859 = vpop.xlane.xlu0 %858
      %v860 = vmax.f32 %v739, %v741
      %861 = vmax.xlane.f32.xlu0 %v860
      %v862 = vpop.xlane.xlu0 %861
      %v863 = vmax.f32 %v745, %v747
      %864 = vmax.xlane.f32.xlu0 %v863
      %v865 = vpop.xlane.xlu0 %864
      %v866 = vmax.f32 %v749, %v751
      %867 = vmax.xlane.f32.xlu0 %v866
      %v868 = vpop.xlane.xlu0 %867
      %v869 = vmax.f32 %v755, %v757
      %870 = vmax.xlane.f32.xlu0 %v869
      %v871 = vpop.xlane.xlu0 %870
      %v872 = vmax.f32 %v759, %v761
      %873 = vmax.xlane.f32.xlu0 %v872
      %v874 = vpop.xlane.xlu0 %873
      %v875 = vmax.f32 %v765, %v767
      %876 = vmax.xlane.f32.xlu0 %v875
      %v877 = vpop.xlane.xlu0 %876
      %v878 = vmax.f32 %v769, %v771
      %879 = vmax.xlane.f32.xlu0 %v878
      %v880 = vpop.xlane.xlu0 %879
      %v881 = vmax.f32 %v775, %v777
      %882 = vmax.xlane.f32.xlu0 %v881
      %v883 = vpop.xlane.xlu0 %882
      %v884 = vmax.f32 %v779, %v781
      %885 = vmax.xlane.f32.xlu0 %v884
      %v886 = vpop.xlane.xlu0 %885
      %v887 = vmax.f32 %v785, %v787
      %888 = vmax.xlane.f32.xlu0 %v887
      %v889 = vpop.xlane.xlu0 %888
      %v890 = vmax.f32 %v789, %v791
      %891 = vmax.xlane.f32.xlu0 %v890
      %v892 = vpop.xlane.xlu0 %891
      %v893 = vmax.f32 %v795, %v797
      %894 = vmax.xlane.f32.xlu0 %v893
      %v895 = vpop.xlane.xlu0 %894
      %v896 = vmax.f32 %v799, %v801
      %897 = vmax.xlane.f32.xlu0 %v896
      %v898 = vpop.xlane.xlu0 %897
      %v899 = vsub.f32 %v645, %v805
      %v900 = vsub.f32 %v647, %v805
      %v901 = vsub.f32 %v649, %v808
      %v902 = vsub.f32 %v651, %v808
      %v903 = vsub.f32 %v655, %v811
      %v904 = vsub.f32 %v657, %v811
      %v905 = vsub.f32 %v659, %v814
      %v906 = vsub.f32 %v661, %v814
      %v907 = vsub.f32 %v665, %v817
      %v908 = vsub.f32 %v667, %v817
      %v909 = vsub.f32 %v669, %v820
      %v910 = vsub.f32 %v671, %v820
      %v911 = vsub.f32 %v675, %v823
      %v912 = vsub.f32 %v677, %v823
      %v913 = vsub.f32 %v679, %v826
      %v914 = vsub.f32 %v681, %v826
      %v915 = vsub.f32 %v685, %v829
      %v916 = vsub.f32 %v687, %v829
      %v917 = vsub.f32 %v689, %v832
      %v918 = vsub.f32 %v691, %v832
      %v919 = vsub.f32 %v695, %v835
      %v920 = vsub.f32 %v697, %v835
      %v921 = vsub.f32 %v699, %v838
      %v922 = vsub.f32 %v701, %v838
      %v923 = vsub.f32 %v705, %v841
      %v924 = vsub.f32 %v707, %v841
      %v925 = vsub.f32 %v709, %v844
      %v926 = vsub.f32 %v711, %v844
      %v927 = vsub.f32 %v715, %v847
      %v928 = vsub.f32 %v717, %v847
      %v929 = vsub.f32 %v719, %v850
      %v930 = vsub.f32 %v721, %v850
      %v931 = vsub.f32 %v725, %v853
      %v932 = vsub.f32 %v727, %v853
      %v933 = vsub.f32 %v729, %v856
      %v934 = vsub.f32 %v731, %v856
      %v935 = vsub.f32 %v735, %v859
      %v936 = vsub.f32 %v737, %v859
      %v937 = vsub.f32 %v739, %v862
      %v938 = vsub.f32 %v741, %v862
      %v939 = vsub.f32 %v745, %v865
      %v940 = vsub.f32 %v747, %v865
      %v941 = vsub.f32 %v749, %v868
      %v942 = vsub.f32 %v751, %v868
      %v943 = vsub.f32 %v755, %v871
      %v944 = vsub.f32 %v757, %v871
      %v945 = vsub.f32 %v759, %v874
      %v946 = vsub.f32 %v761, %v874
      %v947 = vsub.f32 %v765, %v877
      %v948 = vsub.f32 %v767, %v877
      %v949 = vsub.f32 %v769, %v880
      %v950 = vsub.f32 %v771, %v880
      %v951 = vsub.f32 %v775, %v883
      %v952 = vsub.f32 %v777, %v883
      %v953 = vsub.f32 %v779, %v886
      %v954 = vsub.f32 %v781, %v886
      %v955 = vsub.f32 %v785, %v889
      %v956 = vsub.f32 %v787, %v889
      %v957 = vsub.f32 %v789, %v892
      %v958 = vsub.f32 %v791, %v892
      %v959 = vsub.f32 %v795, %v895
      %v960 = vsub.f32 %v797, %v895
      %v961 = vsub.f32 %v799, %v898
      %v962 = vsub.f32 %v801, %v898
      %v963 = vmul.f32 %v899, 1.442695
      %v964 = vpow.pop %v963
      %v965 = vmul.f32 %v900, 1.442695
      %v966 = vpow.pop %v965
      %v967 = vmul.f32 %v901, 1.442695
      %v968 = vpow.pop %v967
      %v969 = vmul.f32 %v902, 1.442695
      %v970 = vpow.pop %v969
      %v971 = vmul.f32 %v903, 1.442695
      %v972 = vpow.pop %v971
      %v973 = vmul.f32 %v904, 1.442695
      %v974 = vpow.pop %v973
      %v975 = vmul.f32 %v905, 1.442695
      %v976 = vpow.pop %v975
      %v977 = vmul.f32 %v906, 1.442695
      %v978 = vpow.pop %v977
      %v979 = vmul.f32 %v907, 1.442695
      %v980 = vpow.pop %v979
      %v981 = vmul.f32 %v908, 1.442695
      %v982 = vpow.pop %v981
      %v983 = vmul.f32 %v909, 1.442695
      %v984 = vpow.pop %v983
      %v985 = vmul.f32 %v910, 1.442695
      %v986 = vpow.pop %v985
      %v987 = vmul.f32 %v911, 1.442695
      %v988 = vpow.pop %v987
      %v989 = vmul.f32 %v912, 1.442695
      %v990 = vpow.pop %v989
      %v991 = vmul.f32 %v913, 1.442695
      %v992 = vpow.pop %v991
      %v993 = vmul.f32 %v914, 1.442695
      %v994 = vpow.pop %v993
      %v995 = vmul.f32 %v915, 1.442695
      %v996 = vpow.pop %v995
      %v997 = vmul.f32 %v916, 1.442695
      %v998 = vpow.pop %v997
      %v999 = vmul.f32 %v917, 1.442695
      %v1000 = vpow.pop %v999
      %v1001 = vmul.f32 %v918, 1.442695
      %v1002 = vpow.pop %v1001
      %v1003 = vmul.f32 %v919, 1.442695
      %v1004 = vpow.pop %v1003
      %v1005 = vmul.f32 %v920, 1.442695
      %v1006 = vpow.pop %v1005
      %v1007 = vmul.f32 %v921, 1.442695
      %v1008 = vpow.pop %v1007
      %v1009 = vmul.f32 %v922, 1.442695
      %v1010 = vpow.pop %v1009
      %v1011 = vmul.f32 %v923, 1.442695
      %v1012 = vpow.pop %v1011
      %v1013 = vmul.f32 %v924, 1.442695
      %v1014 = vpow.pop %v1013
      %v1015 = vmul.f32 %v925, 1.442695
      %v1016 = vpow.pop %v1015
      %v1017 = vmul.f32 %v926, 1.442695
      %v1018 = vpow.pop %v1017
      %v1019 = vmul.f32 %v927, 1.442695
      %v1020 = vpow.pop %v1019
      %v1021 = vmul.f32 %v928, 1.442695
      %v1022 = vpow.pop %v1021
      %v1023 = vmul.f32 %v929, 1.442695
      %v1024 = vpow.pop %v1023
      %v1025 = vmul.f32 %v930, 1.442695
      %v1026 = vpow.pop %v1025
      %v1027 = vmul.f32 %v931, 1.442695
      %v1028 = vpow.pop %v1027
      %v1029 = vmul.f32 %v932, 1.442695
      %v1030 = vpow.pop %v1029
      %v1031 = vmul.f32 %v933, 1.442695
      %v1032 = vpow.pop %v1031
      %v1033 = vmul.f32 %v934, 1.442695
      %v1034 = vpow.pop %v1033
      %v1035 = vmul.f32 %v935, 1.442695
      %v1036 = vpow.pop %v1035
      %v1037 = vmul.f32 %v936, 1.442695
      %v1038 = vpow.pop %v1037
      %v1039 = vmul.f32 %v937, 1.442695
      %v1040 = vpow.pop %v1039
      %v1041 = vmul.f32 %v938, 1.442695
      %v1042 = vpow.pop %v1041
      %v1043 = vmul.f32 %v939, 1.442695
      %v1044 = vpow.pop %v1043
      %v1045 = vmul.f32 %v940, 1.442695
      %v1046 = vpow.pop %v1045
      %v1047 = vmul.f32 %v941, 1.442695
      %v1048 = vpow.pop %v1047
      %v1049 = vmul.f32 %v942, 1.442695
      %v1050 = vpow.pop %v1049
      %v1051 = vmul.f32 %v943, 1.442695
      %v1052 = vpow.pop %v1051
      %v1053 = vmul.f32 %v944, 1.442695
      %v1054 = vpow.pop %v1053
      %v1055 = vmul.f32 %v945, 1.442695
      %v1056 = vpow.pop %v1055
      %v1057 = vmul.f32 %v946, 1.442695
      %v1058 = vpow.pop %v1057
      %v1059 = vmul.f32 %v947, 1.442695
      %v1060 = vpow.pop %v1059
      %v1061 = vmul.f32 %v948, 1.442695
      %v1062 = vpow.pop %v1061
      %v1063 = vmul.f32 %v949, 1.442695
      %v1064 = vpow.pop %v1063
      %v1065 = vmul.f32 %v950, 1.442695
      %v1066 = vpow.pop %v1065
      %v1067 = vmul.f32 %v951, 1.442695
      %v1068 = vpow.pop %v1067
      %v1069 = vmul.f32 %v952, 1.442695
      %v1070 = vpow.pop %v1069
      %v1071 = vmul.f32 %v953, 1.442695
      %v1072 = vpow.pop %v1071
      %v1073 = vmul.f32 %v954, 1.442695
      %v1074 = vpow.pop %v1073
      %v1075 = vmul.f32 %v955, 1.442695
      %v1076 = vpow.pop %v1075
      %v1077 = vmul.f32 %v956, 1.442695
      %v1078 = vpow.pop %v1077
      %v1079 = vmul.f32 %v957, 1.442695
      %v1080 = vpow.pop %v1079
      %v1081 = vmul.f32 %v958, 1.442695
      %v1082 = vpow.pop %v1081
      %v1083 = vmul.f32 %v959, 1.442695
      %v1084 = vpow.pop %v1083
      %v1085 = vmul.f32 %v960, 1.442695
      %v1086 = vpow.pop %v1085
      %v1087 = vmul.f32 %v961, 1.442695
      %v1088 = vpow.pop %v1087
      %v1089 = vmul.f32 %v962, 1.442695
      %v1090 = vpow.pop %v1089
      %v1091 = vadd.f32 %v964, %v966
      %1092 = vadd.xlane.f32.xlu0 %v1091
      %v1093 = vpop.xlane.xlu0 %1092
      %v1094 = vadd.f32 %v968, %v970
      %1095 = vadd.xlane.f32.xlu0 %v1094
      %v1096 = vpop.xlane.xlu0 %1095
      %v1097 = vadd.f32 %v972, %v974
      %1098 = vadd.xlane.f32.xlu0 %v1097
      %v1099 = vpop.xlane.xlu0 %1098
      %v1100 = vadd.f32 %v976, %v978
      %1101 = vadd.xlane.f32.xlu0 %v1100
      %v1102 = vpop.xlane.xlu0 %1101
      %v1103 = vadd.f32 %v980, %v982
      %1104 = vadd.xlane.f32.xlu0 %v1103
      %v1105 = vpop.xlane.xlu0 %1104
      %v1106 = vadd.f32 %v984, %v986
      %1107 = vadd.xlane.f32.xlu0 %v1106
      %v1108 = vpop.xlane.xlu0 %1107
      %v1109 = vadd.f32 %v988, %v990
      %1110 = vadd.xlane.f32.xlu0 %v1109
      %v1111 = vpop.xlane.xlu0 %1110
      %v1112 = vadd.f32 %v992, %v994
      %1113 = vadd.xlane.f32.xlu0 %v1112
      %v1114 = vpop.xlane.xlu0 %1113
      %v1115 = vadd.f32 %v996, %v998
      %1116 = vadd.xlane.f32.xlu0 %v1115
      %v1117 = vpop.xlane.xlu0 %1116
      %v1118 = vadd.f32 %v1000, %v1002
      %1119 = vadd.xlane.f32.xlu0 %v1118
      %v1120 = vpop.xlane.xlu0 %1119
      %v1121 = vadd.f32 %v1004, %v1006
      %1122 = vadd.xlane.f32.xlu0 %v1121
      %v1123 = vpop.xlane.xlu0 %1122
      %v1124 = vadd.f32 %v1008, %v1010
      %1125 = vadd.xlane.f32.xlu0 %v1124
      %v1126 = vpop.xlane.xlu0 %1125
      %v1127 = vadd.f32 %v1012, %v1014
      %1128 = vadd.xlane.f32.xlu0 %v1127
      %v1129 = vpop.xlane.xlu0 %1128
      %v1130 = vadd.f32 %v1016, %v1018
      %1131 = vadd.xlane.f32.xlu0 %v1130
      %v1132 = vpop.xlane.xlu0 %1131
      %v1133 = vadd.f32 %v1020, %v1022
      %1134 = vadd.xlane.f32.xlu0 %v1133
      %v1135 = vpop.xlane.xlu0 %1134
      %v1136 = vadd.f32 %v1024, %v1026
      %1137 = vadd.xlane.f32.xlu0 %v1136
      %v1138 = vpop.xlane.xlu0 %1137
      %v1139 = vadd.f32 %v1028, %v1030
      %1140 = vadd.xlane.f32.xlu0 %v1139
      %v1141 = vpop.xlane.xlu0 %1140
      %v1142 = vadd.f32 %v1032, %v1034
      %1143 = vadd.xlane.f32.xlu0 %v1142
      %v1144 = vpop.xlane.xlu0 %1143
      %v1145 = vadd.f32 %v1036, %v1038
      %1146 = vadd.xlane.f32.xlu0 %v1145
      %v1147 = vpop.xlane.xlu0 %1146
      %v1148 = vadd.f32 %v1040, %v1042
      %1149 = vadd.xlane.f32.xlu0 %v1148
      %v1150 = vpop.xlane.xlu0 %1149
      %v1151 = vadd.f32 %v1044, %v1046
      %1152 = vadd.xlane.f32.xlu0 %v1151
      %v1153 = vpop.xlane.xlu0 %1152
      %v1154 = vadd.f32 %v1048, %v1050
      %1155 = vadd.xlane.f32.xlu0 %v1154
      %v1156 = vpop.xlane.xlu0 %1155
      %v1157 = vadd.f32 %v1052, %v1054
      %1158 = vadd.xlane.f32.xlu0 %v1157
      %v1159 = vpop.xlane.xlu0 %1158
      %v1160 = vadd.f32 %v1056, %v1058
      %1161 = vadd.xlane.f32.xlu0 %v1160
      %v1162 = vpop.xlane.xlu0 %1161
      %v1163 = vadd.f32 %v1060, %v1062
      %1164 = vadd.xlane.f32.xlu0 %v1163
      %v1165 = vpop.xlane.xlu0 %1164
      %v1166 = vadd.f32 %v1064, %v1066
      %1167 = vadd.xlane.f32.xlu0 %v1166
      %v1168 = vpop.xlane.xlu0 %1167
      %v1169 = vadd.f32 %v1068, %v1070
      %1170 = vadd.xlane.f32.xlu0 %v1169
      %v1171 = vpop.xlane.xlu0 %1170
      %v1172 = vadd.f32 %v1072, %v1074
      %1173 = vadd.xlane.f32.xlu0 %v1172
      %v1174 = vpop.xlane.xlu0 %1173
      %v1175 = vadd.f32 %v1076, %v1078
      %1176 = vadd.xlane.f32.xlu0 %v1175
      %v1177 = vpop.xlane.xlu0 %1176
      %v1178 = vadd.f32 %v1080, %v1082
      %1179 = vadd.xlane.f32.xlu0 %v1178
      %v1180 = vpop.xlane.xlu0 %1179
      %v1181 = vadd.f32 %v1084, %v1086
      %1182 = vadd.xlane.f32.xlu0 %v1181
      %v1183 = vpop.xlane.xlu0 %1182
      %v1184 = vadd.f32 %v1088, %v1090
      %1185 = vadd.xlane.f32.xlu0 %v1184
      %v1186 = vpop.xlane.xlu0 %1185
      %v1187 = vrcp.pop %v1093
      %v1188 = vrcp.pop %v1096
      %v1189 = vrcp.pop %v1099
      %v1190 = vrcp.pop %v1102
      %v1191 = vrcp.pop %v1105
      %v1192 = vrcp.pop %v1108
      %v1193 = vrcp.pop %v1111
      %v1194 = vrcp.pop %v1114
      %v1195 = vrcp.pop %v1117
      %v1196 = vrcp.pop %v1120
      %v1197 = vrcp.pop %v1123
      %v1198 = vrcp.pop %v1126
      %v1199 = vrcp.pop %v1129
      %v1200 = vrcp.pop %v1132
      %v1201 = vrcp.pop %v1135
      %v1202 = vrcp.pop %v1138
      %v1203 = vrcp.pop %v1141
      %v1204 = vrcp.pop %v1144
      %v1205 = vrcp.pop %v1147
      %v1206 = vrcp.pop %v1150
      %v1207 = vrcp.pop %v1153
      %v1208 = vrcp.pop %v1156
      %v1209 = vrcp.pop %v1159
      %v1210 = vrcp.pop %v1162
      %v1211 = vrcp.pop %v1165
      %v1212 = vrcp.pop %v1168
      %v1213 = vrcp.pop %v1171
      %v1214 = vrcp.pop %v1174
      %v1215 = vrcp.pop %v1177
      %v1216 = vrcp.pop %v1180
      %v1217 = vrcp.pop %v1183
      %v1218 = vrcp.pop %v1186
      %v1219 = vmul.f32 %v964, %v1187
      %v1220 = vmul.f32 %v966, %v1187
      %v1221 = vmul.f32 %v968, %v1188
      %v1222 = vmul.f32 %v970, %v1188
      %v1223 = vmul.f32 %v972, %v1189
      %v1224 = vmul.f32 %v974, %v1189
      %v1225 = vmul.f32 %v976, %v1190
      %v1226 = vmul.f32 %v978, %v1190
      %v1227 = vmul.f32 %v980, %v1191
      %v1228 = vmul.f32 %v982, %v1191
      %v1229 = vmul.f32 %v984, %v1192
      %v1230 = vmul.f32 %v986, %v1192
      %v1231 = vmul.f32 %v988, %v1193
      %v1232 = vmul.f32 %v990, %v1193
      %v1233 = vmul.f32 %v992, %v1194
      %v1234 = vmul.f32 %v994, %v1194
      %v1235 = vmul.f32 %v996, %v1195
      %v1236 = vmul.f32 %v998, %v1195
      %v1237 = vmul.f32 %v1000, %v1196
      %v1238 = vmul.f32 %v1002, %v1196
      %v1239 = vmul.f32 %v1004, %v1197
      %v1240 = vmul.f32 %v1006, %v1197
      %v1241 = vmul.f32 %v1008, %v1198
      %v1242 = vmul.f32 %v1010, %v1198
      %v1243 = vmul.f32 %v1012, %v1199
      %v1244 = vmul.f32 %v1014, %v1199
      %v1245 = vmul.f32 %v1016, %v1200
      %v1246 = vmul.f32 %v1018, %v1200
      %v1247 = vmul.f32 %v1020, %v1201
      %v1248 = vmul.f32 %v1022, %v1201
      %v1249 = vmul.f32 %v1024, %v1202
      %v1250 = vmul.f32 %v1026, %v1202
      %v1251 = vmul.f32 %v1028, %v1203
      %v1252 = vmul.f32 %v1030, %v1203
      %v1253 = vmul.f32 %v1032, %v1204
      %v1254 = vmul.f32 %v1034, %v1204
      %v1255 = vmul.f32 %v1036, %v1205
      %v1256 = vmul.f32 %v1038, %v1205
      %v1257 = vmul.f32 %v1040, %v1206
      %v1258 = vmul.f32 %v1042, %v1206
      %v1259 = vmul.f32 %v1044, %v1207
      %v1260 = vmul.f32 %v1046, %v1207
      %v1261 = vmul.f32 %v1048, %v1208
      %v1262 = vmul.f32 %v1050, %v1208
      %v1263 = vmul.f32 %v1052, %v1209
      %v1264 = vmul.f32 %v1054, %v1209
      %v1265 = vmul.f32 %v1056, %v1210
      %v1266 = vmul.f32 %v1058, %v1210
      %v1267 = vmul.f32 %v1060, %v1211
      %v1268 = vmul.f32 %v1062, %v1211
      %v1269 = vmul.f32 %v1064, %v1212
      %v1270 = vmul.f32 %v1066, %v1212
      %v1271 = vmul.f32 %v1068, %v1213
      %v1272 = vmul.f32 %v1070, %v1213
      %v1273 = vmul.f32 %v1072, %v1214
      %v1274 = vmul.f32 %v1074, %v1214
      %v1275 = vmul.f32 %v1076, %v1215
      %v1276 = vmul.f32 %v1078, %v1215
      %v1277 = vmul.f32 %v1080, %v1216
      %v1278 = vmul.f32 %v1082, %v1216
      %v1279 = vmul.f32 %v1084, %v1217
      %v1280 = vmul.f32 %v1086, %v1217
      %v1281 = vmul.f32 %v1088, %v1218
      %v1282 = vmul.f32 %v1090, %v1218
      %v1283 = vpack.c.bf16 %v1221, %v1219
      %v1284 = vpack.c.bf16 %v1222, %v1220
      %v1285 = vpack.c.bf16 %v1225, %v1223
      %v1286 = vpack.c.bf16 %v1226, %v1224
      %v1287 = vpack.c.bf16 %v1229, %v1227
      %v1288 = vpack.c.bf16 %v1230, %v1228
      %v1289 = vpack.c.bf16 %v1233, %v1231
      %v1290 = vpack.c.bf16 %v1234, %v1232
      %v1291 = vpack.c.bf16 %v1237, %v1235
      %v1292 = vpack.c.bf16 %v1238, %v1236
      %v1293 = vpack.c.bf16 %v1241, %v1239
      %v1294 = vpack.c.bf16 %v1242, %v1240
      %v1295 = vpack.c.bf16 %v1245, %v1243
      %v1296 = vpack.c.bf16 %v1246, %v1244
      %v1297 = vpack.c.bf16 %v1249, %v1247
      %v1298 = vpack.c.bf16 %v1250, %v1248
      %v1299 = vpack.c.bf16 %v1253, %v1251
      %v1300 = vpack.c.bf16 %v1254, %v1252
      %v1301 = vpack.c.bf16 %v1257, %v1255
      %v1302 = vpack.c.bf16 %v1258, %v1256
      %v1303 = vpack.c.bf16 %v1261, %v1259
      %v1304 = vpack.c.bf16 %v1262, %v1260
      %v1305 = vpack.c.bf16 %v1265, %v1263
      %v1306 = vpack.c.bf16 %v1266, %v1264
      %v1307 = vpack.c.bf16 %v1269, %v1267
      %v1308 = vpack.c.bf16 %v1270, %v1268
      %v1309 = vpack.c.bf16 %v1273, %v1271
      %v1310 = vpack.c.bf16 %v1274, %v1272
      %v1311 = vpack.c.bf16 %v1277, %v1275
      %v1312 = vpack.c.bf16 %v1278, %v1276
      %v1313 = vpack.c.bf16 %v1281, %v1279
      %v1314 = vpack.c.bf16 %v1282, %v1280
      %v1347 = vunpack.c.l.b16 %v145
      %v1348 = vunpack.c.l.b16 %v146
      %v1349 = vunpack.c.l.b16 %v147
      %v1350 = vunpack.c.l.b16 %v148
      %v1351 = vunpack.c.l.b16 %v149
      %v1352 = vunpack.c.l.b16 %v150
      %v1353 = vunpack.c.l.b16 %v151
      %v1354 = vunpack.c.l.b16 %v152
      %v1355 = vunpack.c.l.b16 %v153
      %v1356 = vunpack.c.l.b16 %v154
      %v1357 = vunpack.c.l.b16 %v155
      %v1358 = vunpack.c.l.b16 %v156
      %v1359 = vunpack.c.l.b16 %v157
      %v1360 = vunpack.c.l.b16 %v158
      %v1361 = vunpack.c.l.b16 %v159
      %v1362 = vunpack.c.l.b16 %v160
      %v1363 = vunpack.c.l.b16 %v161
      %v1364 = vunpack.c.l.b16 %v162
      %v1365 = vunpack.c.l.b16 %v163
      %v1366 = vunpack.c.l.b16 %v164
      %v1367 = vunpack.c.l.b16 %v165
      %v1368 = vunpack.c.l.b16 %v166
      %v1369 = vunpack.c.l.b16 %v167
      %v1370 = vunpack.c.l.b16 %v168
      %v1371 = vunpack.c.l.b16 %v169
      %v1372 = vunpack.c.l.b16 %v170
      %v1373 = vunpack.c.l.b16 %v171
      %v1374 = vunpack.c.l.b16 %v172
      %v1375 = vunpack.c.l.b16 %v173
      %v1376 = vunpack.c.l.b16 %v174
      %v1377 = vunpack.c.l.b16 %v175
      %v1378 = vunpack.c.l.b16 %v176
      %v1379 = vpack.c.b16 %v1348, %v1347
      %v1380 = vpack.c.b16 %v1350, %v1349
      %v1381 = vpack.c.b16 %v1352, %v1351
      %v1382 = vpack.c.b16 %v1354, %v1353
      %v1383 = vpack.c.b16 %v1356, %v1355
      %v1384 = vpack.c.b16 %v1358, %v1357
      %v1385 = vpack.c.b16 %v1360, %v1359
      %v1386 = vpack.c.b16 %v1362, %v1361
      %v1387 = vpack.c.b16 %v1364, %v1363
      %v1388 = vpack.c.b16 %v1366, %v1365
      %v1389 = vpack.c.b16 %v1368, %v1367
      %v1390 = vpack.c.b16 %v1370, %v1369
      %v1391 = vpack.c.b16 %v1372, %v1371
      %v1392 = vpack.c.b16 %v1374, %v1373
      %v1393 = vpack.c.b16 %v1376, %v1375
      %v1394 = vpack.c.b16 %v1378, %v1377
      %1395 = vrot.lane.b32.xlu0 %v1379, 64
      %v1396 = vpop.permute.xlu0 %1395
      %1397 = vrot.lane.b32.xlu0 %v1380, 64
      %v1398 = vpop.permute.xlu0 %1397
      %1399 = vrot.lane.b32.xlu0 %v1381, 64
      %v1400 = vpop.permute.xlu0 %1399
      %1401 = vrot.lane.b32.xlu0 %v1382, 64
      %v1402 = vpop.permute.xlu0 %1401
      %1403 = vrot.lane.b32.xlu0 %v1383, 64
      %v1404 = vpop.permute.xlu0 %1403
      %1405 = vrot.lane.b32.xlu0 %v1384, 64
      %v1406 = vpop.permute.xlu0 %1405
      %1407 = vrot.lane.b32.xlu0 %v1385, 64
      %v1408 = vpop.permute.xlu0 %1407
      %1409 = vrot.lane.b32.xlu0 %v1386, 64
      %v1410 = vpop.permute.xlu0 %1409
      %1411 = vrot.lane.b32.xlu0 %v1387, 64
      %v1412 = vpop.permute.xlu0 %1411
      %1413 = vrot.lane.b32.xlu0 %v1388, 64
      %v1414 = vpop.permute.xlu0 %1413
      %1415 = vrot.lane.b32.xlu0 %v1389, 64
      %v1416 = vpop.permute.xlu0 %1415
      %1417 = vrot.lane.b32.xlu0 %v1390, 64
      %v1418 = vpop.permute.xlu0 %1417
      %1419 = vrot.lane.b32.xlu0 %v1391, 64
      %v1420 = vpop.permute.xlu0 %1419
      %1421 = vrot.lane.b32.xlu0 %v1392, 64
      %v1422 = vpop.permute.xlu0 %1421
      %1423 = vrot.lane.b32.xlu0 %v1393, 64
      %v1424 = vpop.permute.xlu0 %1423
      %1425 = vrot.lane.b32.xlu0 %v1394, 64
      %v1426 = vpop.permute.xlu0 %1425
      %1443 = vmatprep.subr.bf16.mxu0 0
      %1444 = vmatpush1.bf16.msra.mxu0 %v1396
      %1445 = vmatprep.subr.bf16.mxu0 0
      %1446 = vmatpush1.bf16.msra.mxu0 %v1398
      %1447 = vmatprep.subr.bf16.mxu0 0
      %1448 = vmatpush1.bf16.msra.mxu0 %v1400
      %1449 = vmatprep.subr.bf16.mxu0 0
      %1450 = vmatpush1.bf16.msra.mxu0 %v1402
      %1451 = vmatprep.subr.bf16.mxu0 0
      %1452 = vmatpush1.bf16.msra.mxu0 %v1404
      %1453 = vmatprep.subr.bf16.mxu0 0
      %1454 = vmatpush1.bf16.msra.mxu0 %v1406
      %1455 = vmatprep.subr.bf16.mxu0 0
      %1456 = vmatpush1.bf16.msra.mxu0 %v1408
      %1457 = vmatprep.subr.bf16.mxu0 0
      %1458 = vmatpush1.bf16.msra.mxu0 %v1410
      %1459 = vmatprep.subr.bf16.mxu0 0
      %1460 = vmatpush1.bf16.msra.mxu0 %v1412
      %1461 = vmatprep.subr.bf16.mxu0 0
      %1462 = vmatpush1.bf16.msra.mxu0 %v1414
      %1463 = vmatprep.subr.bf16.mxu0 0
      %1464 = vmatpush1.bf16.msra.mxu0 %v1416
      %1465 = vmatprep.subr.bf16.mxu0 0
      %1466 = vmatpush1.bf16.msra.mxu0 %v1418
      %1467 = vmatprep.subr.bf16.mxu0 0
      %1468 = vmatpush1.bf16.msra.mxu0 %v1420
      %1469 = vmatprep.subr.bf16.mxu0 0
      %1470 = vmatpush1.bf16.msra.mxu0 %v1422
      %1471 = vmatprep.subr.bf16.mxu0 0
      %1472 = vmatpush1.bf16.msra.mxu0 %v1424
      %1473 = vmatprep.subr.bf16.mxu0 0
      %1474 = vmatpush1.bf16.msra.mxu0 %v1426
      %1475 = vmatprep.mubr.bf16.mxu0 %v1284
      %1476 = vmatmul.mubr.bf16.gmra.mrb[0].mxu0 %v1283
      %v1477 = vpop.f32.mrb[0].mxu0
      %v1478 = vadd.f32 0.0, %v1477
      %v1479 = vpop.f32.mrb[0].mxu0
      %v1480 = vpop.f32.mrb[0].mxu0
      %v1481 = vadd.f32 0.0, %v1480
      %v1482 = vpop.f32.mrb[0].mxu0
      %1483 = vmatprep.mubr.bf16.mxu0 %v1286
      %1484 = vmatmul.mubr.bf16.gmra.mrb[0].mxu0 %v1285
      %v1485 = vpop.f32.mrb[0].mxu0
      %v1486 = vadd.f32 0.0, %v1485
      %v1487 = vpop.f32.mrb[0].mxu0
      %v1488 = vpop.f32.mrb[0].mxu0
      %v1489 = vadd.f32 0.0, %v1488
      %v1490 = vpop.f32.mrb[0].mxu0
      %1491 = vmatprep.mubr.bf16.mxu0 %v1288
      %1492 = vmatmul.mubr.bf16.gmra.mrb[0].mxu0 %v1287
      %v1493 = vpop.f32.mrb[0].mxu0
      %v1494 = vadd.f32 0.0, %v1493
      %v1495 = vpop.f32.mrb[0].mxu0
      %v1496 = vpop.f32.mrb[0].mxu0
      %v1497 = vadd.f32 0.0, %v1496
      %v1498 = vpop.f32.mrb[0].mxu0
      %1499 = vmatprep.mubr.bf16.mxu0 %v1290
      %1500 = vmatmul.mubr.bf16.gmra.mrb[0].mxu0 %v1289
      %v1501 = vpop.f32.mrb[0].mxu0
      %v1502 = vadd.f32 0.0, %v1501
      %v1503 = vpop.f32.mrb[0].mxu0
      %v1504 = vpop.f32.mrb[0].mxu0
      %v1505 = vadd.f32 0.0, %v1504
      %v1506 = vpop.f32.mrb[0].mxu0
      %1507 = vmatprep.mubr.bf16.mxu0 %v1292
      %1508 = vmatmul.mubr.bf16.gmra.mrb[0].mxu0 %v1291
      %v1509 = vpop.f32.mrb[0].mxu0
      %v1510 = vadd.f32 0.0, %v1509
      %v1511 = vpop.f32.mrb[0].mxu0
      %v1512 = vpop.f32.mrb[0].mxu0
      %v1513 = vadd.f32 0.0, %v1512
      %v1514 = vpop.f32.mrb[0].mxu0
      %1515 = vmatprep.mubr.bf16.mxu0 %v1294
      %1516 = vmatmul.mubr.bf16.gmra.mrb[0].mxu0 %v1293
      %v1517 = vpop.f32.mrb[0].mxu0
      %v1518 = vadd.f32 0.0, %v1517
      %v1519 = vpop.f32.mrb[0].mxu0
      %v1520 = vpop.f32.mrb[0].mxu0
      %v1521 = vadd.f32 0.0, %v1520
      %v1522 = vpop.f32.mrb[0].mxu0
      %1523 = vmatprep.mubr.bf16.mxu0 %v1296
      %1524 = vmatmul.mubr.bf16.gmra.mrb[0].mxu0 %v1295
      %v1525 = vpop.f32.mrb[0].mxu0
      %v1526 = vadd.f32 0.0, %v1525
      %v1527 = vpop.f32.mrb[0].mxu0
      %v1528 = vpop.f32.mrb[0].mxu0
      %v1529 = vadd.f32 0.0, %v1528
      %v1530 = vpop.f32.mrb[0].mxu0
      %1531 = vmatprep.mubr.bf16.mxu0 %v1298
      %1532 = vmatmul.mubr.bf16.gmra.mrb[0].mxu0 %v1297
      %v1533 = vpop.f32.mrb[0].mxu0
      %v1534 = vadd.f32 0.0, %v1533
      %v1535 = vpop.f32.mrb[0].mxu0
      %v1536 = vpop.f32.mrb[0].mxu0
      %v1537 = vadd.f32 0.0, %v1536
      %v1538 = vpop.f32.mrb[0].mxu0
      %1539 = vmatprep.mubr.bf16.mxu0 %v1300
      %1540 = vmatmul.mubr.bf16.gmra.mrb[0].mxu0 %v1299
      %v1541 = vpop.f32.mrb[0].mxu0
      %v1542 = vadd.f32 0.0, %v1541
      %v1543 = vpop.f32.mrb[0].mxu0
      %v1544 = vpop.f32.mrb[0].mxu0
      %v1545 = vadd.f32 0.0, %v1544
      %v1546 = vpop.f32.mrb[0].mxu0
      %1547 = vmatprep.mubr.bf16.mxu0 %v1302
      %1548 = vmatmul.mubr.bf16.gmra.mrb[0].mxu0 %v1301
      %v1549 = vpop.f32.mrb[0].mxu0
      %v1550 = vadd.f32 0.0, %v1549
      %v1551 = vpop.f32.mrb[0].mxu0
      %v1552 = vpop.f32.mrb[0].mxu0
      %v1553 = vadd.f32 0.0, %v1552
      %v1554 = vpop.f32.mrb[0].mxu0
      %1555 = vmatprep.mubr.bf16.mxu0 %v1304
      %1556 = vmatmul.mubr.bf16.gmra.mrb[0].mxu0 %v1303
      %v1557 = vpop.f32.mrb[0].mxu0
      %v1558 = vadd.f32 0.0, %v1557
      %v1559 = vpop.f32.mrb[0].mxu0
      %v1560 = vpop.f32.mrb[0].mxu0
      %v1561 = vadd.f32 0.0, %v1560
      %v1562 = vpop.f32.mrb[0].mxu0
      %1563 = vmatprep.mubr.bf16.mxu0 %v1306
      %1564 = vmatmul.mubr.bf16.gmra.mrb[0].mxu0 %v1305
      %v1565 = vpop.f32.mrb[0].mxu0
      %v1566 = vadd.f32 0.0, %v1565
      %v1567 = vpop.f32.mrb[0].mxu0
      %v1568 = vpop.f32.mrb[0].mxu0
      %v1569 = vadd.f32 0.0, %v1568
      %v1570 = vpop.f32.mrb[0].mxu0
      %1571 = vmatprep.mubr.bf16.mxu0 %v1308
      %1572 = vmatmul.mubr.bf16.gmra.mrb[0].mxu0 %v1307
      %v1573 = vpop.f32.mrb[0].mxu0
      %v1574 = vadd.f32 0.0, %v1573
      %v1575 = vpop.f32.mrb[0].mxu0
      %v1576 = vpop.f32.mrb[0].mxu0
      %v1577 = vadd.f32 0.0, %v1576
      %v1578 = vpop.f32.mrb[0].mxu0
      %1579 = vmatprep.mubr.bf16.mxu0 %v1310
      %1580 = vmatmul.mubr.bf16.gmra.mrb[0].mxu0 %v1309
      %v1581 = vpop.f32.mrb[0].mxu0
      %v1582 = vadd.f32 0.0, %v1581
      %v1583 = vpop.f32.mrb[0].mxu0
      %v1584 = vpop.f32.mrb[0].mxu0
      %v1585 = vadd.f32 0.0, %v1584
      %v1586 = vpop.f32.mrb[0].mxu0
      %1587 = vmatprep.mubr.bf16.mxu0 %v1312
      %1588 = vmatmul.mubr.bf16.gmra.mrb[0].mxu0 %v1311
      %v1589 = vpop.f32.mrb[0].mxu0
      %v1590 = vadd.f32 0.0, %v1589
      %v1591 = vpop.f32.mrb[0].mxu0
      %v1592 = vpop.f32.mrb[0].mxu0
      %v1593 = vadd.f32 0.0, %v1592
      %v1594 = vpop.f32.mrb[0].mxu0
      %1595 = vmatprep.mubr.bf16.mxu0 %v1314
      %1596 = vmatmul.mubr.bf16.gmra.mrb[0].mxu0 %v1313
      %v1597 = vpop.f32.mrb[0].mxu0
      %v1598 = vadd.f32 0.0, %v1597
      %v1599 = vpop.f32.mrb[0].mxu0
      %v1600 = vpop.f32.mrb[0].mxu0
      %v1601 = vadd.f32 0.0, %v1600
      %v1602 = vpop.f32.mrb[0].mxu0
      %1603 = vdwg.mxu0
      %1604 = vrot.lane.b32.xlu0 %v177, 48
      %v1605 = vpop.permute.xlu0 %1604
      %1606 = vrot.lane.b32.xlu0 %v178, 48
      %v1607 = vpop.permute.xlu0 %1606
      %1608 = vrot.lane.b32.xlu0 %v179, 48
      %v1609 = vpop.permute.xlu0 %1608
      %1610 = vrot.lane.b32.xlu0 %v180, 48
      %v1611 = vpop.permute.xlu0 %1610
      %1612 = vrot.lane.b32.xlu0 %v181, 48
      %v1613 = vpop.permute.xlu0 %1612
      %1614 = vrot.lane.b32.xlu0 %v182, 48
      %v1615 = vpop.permute.xlu0 %1614
      %1616 = vrot.lane.b32.xlu0 %v183, 48
      %v1617 = vpop.permute.xlu0 %1616
      %1618 = vrot.lane.b32.xlu0 %v184, 48
      %v1619 = vpop.permute.xlu0 %1618
      %1620 = vrot.lane.b32.xlu0 %v185, 48
      %v1621 = vpop.permute.xlu0 %1620
      %1622 = vrot.lane.b32.xlu0 %v186, 48
      %v1623 = vpop.permute.xlu0 %1622
      %1624 = vrot.lane.b32.xlu0 %v187, 48
      %v1625 = vpop.permute.xlu0 %1624
      %1626 = vrot.lane.b32.xlu0 %v188, 48
      %v1627 = vpop.permute.xlu0 %1626
      %1628 = vrot.lane.b32.xlu0 %v189, 48
      %v1629 = vpop.permute.xlu0 %1628
      %1630 = vrot.lane.b32.xlu0 %v190, 48
      %v1631 = vpop.permute.xlu0 %1630
      %1632 = vrot.lane.b32.xlu0 %v191, 48
      %v1633 = vpop.permute.xlu0 %1632
      %1634 = vrot.lane.b32.xlu0 %v192, 48
      %v1635 = vpop.permute.xlu0 %1634
      %1636 = vrot.lane.b32.xlu0 %v193, 48
      %v1637 = vpop.permute.xlu0 %1636
      %1638 = vrot.lane.b32.xlu0 %v194, 48
      %v1639 = vpop.permute.xlu0 %1638
      %1640 = vrot.lane.b32.xlu0 %v195, 48
      %v1641 = vpop.permute.xlu0 %1640
      %1642 = vrot.lane.b32.xlu0 %v196, 48
      %v1643 = vpop.permute.xlu0 %1642
      %1644 = vrot.lane.b32.xlu0 %v197, 48
      %v1645 = vpop.permute.xlu0 %1644
      %1646 = vrot.lane.b32.xlu0 %v198, 48
      %v1647 = vpop.permute.xlu0 %1646
      %1648 = vrot.lane.b32.xlu0 %v199, 48
      %v1649 = vpop.permute.xlu0 %1648
      %1650 = vrot.lane.b32.xlu0 %v200, 48
      %v1651 = vpop.permute.xlu0 %1650
      %1652 = vrot.lane.b32.xlu0 %v201, 48
      %v1653 = vpop.permute.xlu0 %1652
      %1654 = vrot.lane.b32.xlu0 %v202, 48
      %v1655 = vpop.permute.xlu0 %1654
      %1656 = vrot.lane.b32.xlu0 %v203, 48
      %v1657 = vpop.permute.xlu0 %1656
      %1658 = vrot.lane.b32.xlu0 %v204, 48
      %v1659 = vpop.permute.xlu0 %1658
      %1660 = vrot.lane.b32.xlu0 %v205, 48
      %v1661 = vpop.permute.xlu0 %1660
      %1662 = vrot.lane.b32.xlu0 %v206, 48
      %v1663 = vpop.permute.xlu0 %1662
      %1664 = vrot.lane.b32.xlu0 %v207, 48
      %v1665 = vpop.permute.xlu0 %1664
      %1666 = vrot.lane.b32.xlu0 %v208, 48
      %v1667 = vpop.permute.xlu0 %1666
      %v1700 = vadd.f32 %v209, %v1605
      %v1701 = vadd.f32 %v210, %v1607
      %v1702 = vadd.f32 %v211, %v1609
      %v1703 = vadd.f32 %v212, %v1611
      %v1704 = vadd.f32 %v213, %v1613
      %v1705 = vadd.f32 %v214, %v1615
      %v1706 = vadd.f32 %v215, %v1617
      %v1707 = vadd.f32 %v216, %v1619
      %v1708 = vadd.f32 %v217, %v1621
      %v1709 = vadd.f32 %v218, %v1623
      %v1710 = vadd.f32 %v219, %v1625
      %v1711 = vadd.f32 %v220, %v1627
      %v1712 = vadd.f32 %v221, %v1629
      %v1713 = vadd.f32 %v222, %v1631
      %v1714 = vadd.f32 %v223, %v1633
      %v1715 = vadd.f32 %v224, %v1635
      %v1716 = vadd.f32 %v225, %v1637
      %v1717 = vadd.f32 %v226, %v1639
      %v1718 = vadd.f32 %v227, %v1641
      %v1719 = vadd.f32 %v228, %v1643
      %v1720 = vadd.f32 %v229, %v1645
      %v1721 = vadd.f32 %v230, %v1647
      %v1722 = vadd.f32 %v231, %v1649
      %v1723 = vadd.f32 %v232, %v1651
      %v1724 = vadd.f32 %v233, %v1653
      %v1725 = vadd.f32 %v234, %v1655
      %v1726 = vadd.f32 %v235, %v1657
      %v1727 = vadd.f32 %v236, %v1659
      %v1728 = vadd.f32 %v237, %v1661
      %v1729 = vadd.f32 %v238, %v1663
      %v1730 = vadd.f32 %v239, %v1665
      %v1731 = vadd.f32 %v240, %v1667
      %v1732 = vpack.c.bf16 %v1701, %v1700
      %v1733 = vpack.c.bf16 %v1703, %v1702
      %v1734 = vpack.c.bf16 %v1705, %v1704
      %v1735 = vpack.c.bf16 %v1707, %v1706
      %v1736 = vpack.c.bf16 %v1709, %v1708
      %v1737 = vpack.c.bf16 %v1711, %v1710
      %v1738 = vpack.c.bf16 %v1713, %v1712
      %v1739 = vpack.c.bf16 %v1715, %v1714
      %v1740 = vpack.c.bf16 %v1717, %v1716
      %v1741 = vpack.c.bf16 %v1719, %v1718
      %v1742 = vpack.c.bf16 %v1721, %v1720
      %v1743 = vpack.c.bf16 %v1723, %v1722
      %v1744 = vpack.c.bf16 %v1725, %v1724
      %v1745 = vpack.c.bf16 %v1727, %v1726
      %v1746 = vpack.c.bf16 %v1729, %v1728
      %v1747 = vpack.c.bf16 %v1731, %v1730
      %1764 = vrot.lane.b32.xlu0 %v449, 112
      %v1765 = vpop.permute.xlu0 %1764
      %1766 = vrot.lane.b32.xlu0 %v450, 112
      %v1767 = vpop.permute.xlu0 %1766
      %1768 = vrot.lane.b32.xlu0 %v451, 112
      %v1769 = vpop.permute.xlu0 %1768
      %1770 = vrot.lane.b32.xlu0 %v452, 112
      %v1771 = vpop.permute.xlu0 %1770
      %1772 = vrot.lane.b32.xlu0 %v453, 112
      %v1773 = vpop.permute.xlu0 %1772
      %1774 = vrot.lane.b32.xlu0 %v454, 112
      %v1775 = vpop.permute.xlu0 %1774
      %1776 = vrot.lane.b32.xlu0 %v455, 112
      %v1777 = vpop.permute.xlu0 %1776
      %1778 = vrot.lane.b32.xlu0 %v456, 112
      %v1779 = vpop.permute.xlu0 %1778
      %1780 = vrot.lane.b32.xlu0 %v457, 112
      %v1781 = vpop.permute.xlu0 %1780
      %1782 = vrot.lane.b32.xlu0 %v458, 112
      %v1783 = vpop.permute.xlu0 %1782
      %1784 = vrot.lane.b32.xlu0 %v459, 112
      %v1785 = vpop.permute.xlu0 %1784
      %1786 = vrot.lane.b32.xlu0 %v460, 112
      %v1787 = vpop.permute.xlu0 %1786
      %1788 = vrot.lane.b32.xlu0 %v461, 112
      %v1789 = vpop.permute.xlu0 %1788
      %1790 = vrot.lane.b32.xlu0 %v462, 112
      %v1791 = vpop.permute.xlu0 %1790
      %1792 = vrot.lane.b32.xlu0 %v463, 112
      %v1793 = vpop.permute.xlu0 %1792
      %1794 = vrot.lane.b32.xlu0 %v464, 112
      %v1795 = vpop.permute.xlu0 %1794
      %1812 = vrot.lane.b32.xlu0 %v1732, 80
      %v1813 = vpop.permute.xlu0 %1812
      %1814 = vrot.lane.b32.xlu0 %v1733, 80
      %v1815 = vpop.permute.xlu0 %1814
      %1816 = vrot.lane.b32.xlu0 %v1734, 80
      %v1817 = vpop.permute.xlu0 %1816
      %1818 = vrot.lane.b32.xlu0 %v1735, 80
      %v1819 = vpop.permute.xlu0 %1818
      %1820 = vrot.lane.b32.xlu0 %v1736, 80
      %v1821 = vpop.permute.xlu0 %1820
      %1822 = vrot.lane.b32.xlu0 %v1737, 80
      %v1823 = vpop.permute.xlu0 %1822
      %1824 = vrot.lane.b32.xlu0 %v1738, 80
      %v1825 = vpop.permute.xlu0 %1824
      %1826 = vrot.lane.b32.xlu0 %v1739, 80
      %v1827 = vpop.permute.xlu0 %1826
      %1828 = vrot.lane.b32.xlu0 %v1740, 80
      %v1829 = vpop.permute.xlu0 %1828
      %1830 = vrot.lane.b32.xlu0 %v1741, 80
      %v1831 = vpop.permute.xlu0 %1830
      %1832 = vrot.lane.b32.xlu0 %v1742, 80
      %v1833 = vpop.permute.xlu0 %1832
      %1834 = vrot.lane.b32.xlu0 %v1743, 80
      %v1835 = vpop.permute.xlu0 %1834
      %1836 = vrot.lane.b32.xlu0 %v1744, 80
      %v1837 = vpop.permute.xlu0 %1836
      %1838 = vrot.lane.b32.xlu0 %v1745, 80
      %v1839 = vpop.permute.xlu0 %1838
      %1840 = vrot.lane.b32.xlu0 %v1746, 80
      %v1841 = vpop.permute.xlu0 %1840
      %1842 = vrot.lane.b32.xlu0 %v1747, 80
      %v1843 = vpop.permute.xlu0 %1842
      %v1845 = vsel %vm513, %v1765, 0
      %v1848 = vsel %vm513, %v1767, 0
      %v1851 = vsel %vm513, %v1769, 0
      %v1854 = vsel %vm513, %v1771, 0
      %v1857 = vsel %vm513, %v1773, 0
      %v1860 = vsel %vm513, %v1775, 0
      %v1863 = vsel %vm513, %v1777, 0
      %v1866 = vsel %vm513, %v1779, 0
      %v1869 = vsel %vm513, %v1781, 0
      %v1872 = vsel %vm513, %v1783, 0
      %v1875 = vsel %vm513, %v1785, 0
      %v1878 = vsel %vm513, %v1787, 0
      %v1881 = vsel %vm513, %v1789, 0
      %v1884 = vsel %vm513, %v1791, 0
      %v1887 = vsel %vm513, %v1793, 0
      %v1890 = vsel %vm513, %v1795, 0
      %v1893 = vsel %vm513, %v1813, 0
      %v1896 = vsel %vm513, %v1815, 0
      %v1899 = vsel %vm513, %v1817, 0
      %v1902 = vsel %vm513, %v1819, 0
      %v1905 = vsel %vm513, %v1821, 0
      %v1908 = vsel %vm513, %v1823, 0
      %v1911 = vsel %vm513, %v1825, 0
      %v1914 = vsel %vm513, %v1827, 0
      %v1917 = vsel %vm513, %v1829, 0
      %v1920 = vsel %vm513, %v1831, 0
      %v1923 = vsel %vm513, %v1833, 0
      %v1926 = vsel %vm513, %v1835, 0
      %v1929 = vsel %vm513, %v1837, 0
      %v1932 = vsel %vm513, %v1839, 0
      %v1935 = vsel %vm513, %v1841, 0
      %v1938 = vsel %vm513, %v1843, 0
      %1940 = vmatprep.subr.bf16.mxu0 0
      %1941 = vmatpush1.bf16.xpose.msra.mxu0 %v1893
      %1942 = vmatprep.subr.bf16.mxu0 0
      %1943 = vmatpush1.bf16.xpose.msra.mxu0 %v1896
      %1944 = vmatprep.subr.bf16.mxu0 0
      %1945 = vmatpush1.bf16.xpose.msra.mxu0 %v1899
      %1946 = vmatprep.subr.bf16.mxu0 0
      %1947 = vmatpush1.bf16.xpose.msra.mxu0 %v1902
      %1948 = vmatprep.subr.bf16.mxu0 0
      %1949 = vmatpush1.bf16.xpose.msra.mxu0 %v1905
      %1950 = vmatprep.subr.bf16.mxu0 0
      %1951 = vmatpush1.bf16.xpose.msra.mxu0 %v1908
      %1952 = vmatprep.subr.bf16.mxu0 0
      %1953 = vmatpush1.bf16.xpose.msra.mxu0 %v1911
      %1954 = vmatprep.subr.bf16.mxu0 0
      %1955 = vmatpush1.bf16.xpose.msra.mxu0 %v1914
      %1956 = vmatprep.subr.bf16.mxu0 0
      %1957 = vmatpush1.bf16.xpose.msra.mxu0 %v1917
      %1958 = vmatprep.subr.bf16.mxu0 0
      %1959 = vmatpush1.bf16.xpose.msra.mxu0 %v1920
      %1960 = vmatprep.subr.bf16.mxu0 0
      %1961 = vmatpush1.bf16.xpose.msra.mxu0 %v1923
      %1962 = vmatprep.subr.bf16.mxu0 0
      %1963 = vmatpush1.bf16.xpose.msra.mxu0 %v1926
      %1964 = vmatprep.subr.bf16.mxu0 0
      %1965 = vmatpush1.bf16.xpose.msra.mxu0 %v1929
      %1966 = vmatprep.subr.bf16.mxu0 0
      %1967 = vmatpush1.bf16.xpose.msra.mxu0 %v1932
      %1968 = vmatprep.subr.bf16.mxu0 0
      %1969 = vmatpush1.bf16.xpose.msra.mxu0 %v1935
      %1970 = vmatprep.subr.bf16.mxu0 0
      %1971 = vmatpush1.bf16.xpose.msra.mxu0 %v1938
      %1972 = vmatprep.mubr.bf16.mxu0 0
      %1973 = vmatmul.mubr.bf16.gmra.mrb[0].mxu0 %v1845
      %v1974 = vpop.f32.mrb[0].mxu0
      %v1975 = vadd.f32 0.0, %v1974
      %v1976 = vpop.f32.mrb[0].mxu0
      %v1977 = vadd.f32 0.0, %v1976
      %v1978 = vpop.f32.mrb[0].mxu0
      %v1979 = vadd.f32 0.0, %v1978
      %v1980 = vpop.f32.mrb[0].mxu0
      %v1981 = vadd.f32 0.0, %v1980
      %1982 = vmatprep.mubr.bf16.mxu0 0
      %1983 = vmatmul.mubr.bf16.gmra.mrb[0].mxu0 %v1848
      %v1984 = vpop.f32.mrb[0].mxu0
      %v1985 = vadd.f32 0.0, %v1984
      %v1986 = vpop.f32.mrb[0].mxu0
      %v1987 = vadd.f32 0.0, %v1986
      %v1988 = vpop.f32.mrb[0].mxu0
      %v1989 = vadd.f32 0.0, %v1988
      %v1990 = vpop.f32.mrb[0].mxu0
      %v1991 = vadd.f32 0.0, %v1990
      %1992 = vmatprep.mubr.bf16.mxu0 0
      %1993 = vmatmul.mubr.bf16.gmra.mrb[0].mxu0 %v1851
      %v1994 = vpop.f32.mrb[0].mxu0
      %v1995 = vadd.f32 0.0, %v1994
      %v1996 = vpop.f32.mrb[0].mxu0
      %v1997 = vadd.f32 0.0, %v1996
      %v1998 = vpop.f32.mrb[0].mxu0
      %v1999 = vadd.f32 0.0, %v1998
      %v2000 = vpop.f32.mrb[0].mxu0
      %v2001 = vadd.f32 0.0, %v2000
      %2002 = vmatprep.mubr.bf16.mxu0 0
      %2003 = vmatmul.mubr.bf16.gmra.mrb[0].mxu0 %v1854
      %v2004 = vpop.f32.mrb[0].mxu0
      %v2005 = vadd.f32 0.0, %v2004
      %v2006 = vpop.f32.mrb[0].mxu0
      %v2007 = vadd.f32 0.0, %v2006
      %v2008 = vpop.f32.mrb[0].mxu0
      %v2009 = vadd.f32 0.0, %v2008
      %v2010 = vpop.f32.mrb[0].mxu0
      %v2011 = vadd.f32 0.0, %v2010
      %2012 = vmatprep.mubr.bf16.mxu0 0
      %2013 = vmatmul.mubr.bf16.gmra.mrb[0].mxu0 %v1857
      %v2014 = vpop.f32.mrb[0].mxu0
      %v2015 = vadd.f32 0.0, %v2014
      %v2016 = vpop.f32.mrb[0].mxu0
      %v2017 = vadd.f32 0.0, %v2016
      %v2018 = vpop.f32.mrb[0].mxu0
      %v2019 = vadd.f32 0.0, %v2018
      %v2020 = vpop.f32.mrb[0].mxu0
      %v2021 = vadd.f32 0.0, %v2020
      %2022 = vmatprep.mubr.bf16.mxu0 0
      %2023 = vmatmul.mubr.bf16.gmra.mrb[0].mxu0 %v1860
      %v2024 = vpop.f32.mrb[0].mxu0
      %v2025 = vadd.f32 0.0, %v2024
      %v2026 = vpop.f32.mrb[0].mxu0
      %v2027 = vadd.f32 0.0, %v2026
      %v2028 = vpop.f32.mrb[0].mxu0
      %v2029 = vadd.f32 0.0, %v2028
      %v2030 = vpop.f32.mrb[0].mxu0
      %v2031 = vadd.f32 0.0, %v2030
      %2032 = vmatprep.mubr.bf16.mxu0 0
      %2033 = vmatmul.mubr.bf16.gmra.mrb[0].mxu0 %v1863
      %v2034 = vpop.f32.mrb[0].mxu0
      %v2035 = vadd.f32 0.0, %v2034
      %v2036 = vpop.f32.mrb[0].mxu0
      %v2037 = vadd.f32 0.0, %v2036
      %v2038 = vpop.f32.mrb[0].mxu0
      %v2039 = vadd.f32 0.0, %v2038
      %v2040 = vpop.f32.mrb[0].mxu0
      %v2041 = vadd.f32 0.0, %v2040
      %2042 = vmatprep.mubr.bf16.mxu0 0
      %2043 = vmatmul.mubr.bf16.gmra.mrb[0].mxu0 %v1866
      %v2044 = vpop.f32.mrb[0].mxu0
      %v2045 = vadd.f32 0.0, %v2044
      %v2046 = vpop.f32.mrb[0].mxu0
      %v2047 = vadd.f32 0.0, %v2046
      %v2048 = vpop.f32.mrb[0].mxu0
      %v2049 = vadd.f32 0.0, %v2048
      %v2050 = vpop.f32.mrb[0].mxu0
      %v2051 = vadd.f32 0.0, %v2050
      %2052 = vmatprep.mubr.bf16.mxu0 0
      %2053 = vmatmul.mubr.bf16.gmra.mrb[0].mxu0 %v1869
      %v2054 = vpop.f32.mrb[0].mxu0
      %v2055 = vadd.f32 0.0, %v2054
      %v2056 = vpop.f32.mrb[0].mxu0
      %v2057 = vadd.f32 0.0, %v2056
      %v2058 = vpop.f32.mrb[0].mxu0
      %v2059 = vadd.f32 0.0, %v2058
      %v2060 = vpop.f32.mrb[0].mxu0
      %v2061 = vadd.f32 0.0, %v2060
      %2062 = vmatprep.mubr.bf16.mxu0 0
      %2063 = vmatmul.mubr.bf16.gmra.mrb[0].mxu0 %v1872
      %v2064 = vpop.f32.mrb[0].mxu0
      %v2065 = vadd.f32 0.0, %v2064
      %v2066 = vpop.f32.mrb[0].mxu0
      %v2067 = vadd.f32 0.0, %v2066
      %v2068 = vpop.f32.mrb[0].mxu0
      %v2069 = vadd.f32 0.0, %v2068
      %v2070 = vpop.f32.mrb[0].mxu0
      %v2071 = vadd.f32 0.0, %v2070
      %2072 = vmatprep.mubr.bf16.mxu0 0
      %2073 = vmatmul.mubr.bf16.gmra.mrb[0].mxu0 %v1875
      %v2074 = vpop.f32.mrb[0].mxu0
      %v2075 = vadd.f32 0.0, %v2074
      %v2076 = vpop.f32.mrb[0].mxu0
      %v2077 = vadd.f32 0.0, %v2076
      %v2078 = vpop.f32.mrb[0].mxu0
      %v2079 = vadd.f32 0.0, %v2078
      %v2080 = vpop.f32.mrb[0].mxu0
      %v2081 = vadd.f32 0.0, %v2080
      %2082 = vmatprep.mubr.bf16.mxu0 0
      %2083 = vmatmul.mubr.bf16.gmra.mrb[0].mxu0 %v1878
      %v2084 = vpop.f32.mrb[0].mxu0
      %v2085 = vadd.f32 0.0, %v2084
      %v2086 = vpop.f32.mrb[0].mxu0
      %v2087 = vadd.f32 0.0, %v2086
      %v2088 = vpop.f32.mrb[0].mxu0
      %v2089 = vadd.f32 0.0, %v2088
      %v2090 = vpop.f32.mrb[0].mxu0
      %v2091 = vadd.f32 0.0, %v2090
      %2092 = vmatprep.mubr.bf16.mxu0 0
      %2093 = vmatmul.mubr.bf16.gmra.mrb[0].mxu0 %v1881
      %v2094 = vpop.f32.mrb[0].mxu0
      %v2095 = vadd.f32 0.0, %v2094
      %v2096 = vpop.f32.mrb[0].mxu0
      %v2097 = vadd.f32 0.0, %v2096
      %v2098 = vpop.f32.mrb[0].mxu0
      %v2099 = vadd.f32 0.0, %v2098
      %v2100 = vpop.f32.mrb[0].mxu0
      %v2101 = vadd.f32 0.0, %v2100
      %2102 = vmatprep.mubr.bf16.mxu0 0
      %2103 = vmatmul.mubr.bf16.gmra.mrb[0].mxu0 %v1884
      %v2104 = vpop.f32.mrb[0].mxu0
      %v2105 = vadd.f32 0.0, %v2104
      %v2106 = vpop.f32.mrb[0].mxu0
      %v2107 = vadd.f32 0.0, %v2106
      %v2108 = vpop.f32.mrb[0].mxu0
      %v2109 = vadd.f32 0.0, %v2108
      %v2110 = vpop.f32.mrb[0].mxu0
      %v2111 = vadd.f32 0.0, %v2110
      %2112 = vmatprep.mubr.bf16.mxu0 0
      %2113 = vmatmul.mubr.bf16.gmra.mrb[0].mxu0 %v1887
      %v2114 = vpop.f32.mrb[0].mxu0
      %v2115 = vadd.f32 0.0, %v2114
      %v2116 = vpop.f32.mrb[0].mxu0
      %v2117 = vadd.f32 0.0, %v2116
      %v2118 = vpop.f32.mrb[0].mxu0
      %v2119 = vadd.f32 0.0, %v2118
      %v2120 = vpop.f32.mrb[0].mxu0
      %v2121 = vadd.f32 0.0, %v2120
      %2122 = vmatprep.mubr.bf16.mxu0 0
      %2123 = vmatmul.mubr.bf16.gmra.mrb[0].mxu0 %v1890
      %v2124 = vpop.f32.mrb[0].mxu0
      %v2125 = vadd.f32 0.0, %v2124
      %v2126 = vpop.f32.mrb[0].mxu0
      %v2127 = vadd.f32 0.0, %v2126
      %v2128 = vpop.f32.mrb[0].mxu0
      %v2129 = vadd.f32 0.0, %v2128
      %v2130 = vpop.f32.mrb[0].mxu0
      %v2131 = vadd.f32 0.0, %v2130
      %2132 = vdwg.mxu0
      %v2133 = vmax.f32 %v1975, %v1977
      %2134 = vmax.xlane.f32.xlu0 %v2133
      %v2135 = vpop.xlane.xlu0 %2134
      %v2136 = vmax.f32 %v1979, %v1981
      %2137 = vmax.xlane.f32.xlu0 %v2136
      %v2138 = vpop.xlane.xlu0 %2137
      %v2139 = vmax.f32 %v1985, %v1987
      %2140 = vmax.xlane.f32.xlu0 %v2139
      %v2141 = vpop.xlane.xlu0 %2140
      %v2142 = vmax.f32 %v1989, %v1991
      %2143 = vmax.xlane.f32.xlu0 %v2142
      %v2144 = vpop.xlane.xlu0 %2143
      %v2145 = vmax.f32 %v1995, %v1997
      %2146 = vmax.xlane.f32.xlu0 %v2145
      %v2147 = vpop.xlane.xlu0 %2146
      %v2148 = vmax.f32 %v1999, %v2001
      %2149 = vmax.xlane.f32.xlu0 %v2148
      %v2150 = vpop.xlane.xlu0 %2149
      %v2151 = vmax.f32 %v2005, %v2007
      %2152 = vmax.xlane.f32.xlu0 %v2151
      %v2153 = vpop.xlane.xlu0 %2152
      %v2154 = vmax.f32 %v2009, %v2011
      %2155 = vmax.xlane.f32.xlu0 %v2154
      %v2156 = vpop.xlane.xlu0 %2155
      %v2157 = vmax.f32 %v2015, %v2017
      %2158 = vmax.xlane.f32.xlu0 %v2157
      %v2159 = vpop.xlane.xlu0 %2158
      %v2160 = vmax.f32 %v2019, %v2021
      %2161 = vmax.xlane.f32.xlu0 %v2160
      %v2162 = vpop.xlane.xlu0 %2161
      %v2163 = vmax.f32 %v2025, %v2027
      %2164 = vmax.xlane.f32.xlu0 %v2163
      %v2165 = vpop.xlane.xlu0 %2164
      %v2166 = vmax.f32 %v2029, %v2031
      %2167 = vmax.xlane.f32.xlu0 %v2166
      %v2168 = vpop.xlane.xlu0 %2167
      %v2169 = vmax.f32 %v2035, %v2037
      %2170 = vmax.xlane.f32.xlu0 %v2169
      %v2171 = vpop.xlane.xlu0 %2170
      %v2172 = vmax.f32 %v2039, %v2041
      %2173 = vmax.xlane.f32.xlu0 %v2172
      %v2174 = vpop.xlane.xlu0 %2173
      %v2175 = vmax.f32 %v2045, %v2047
      %2176 = vmax.xlane.f32.xlu0 %v2175
      %v2177 = vpop.xlane.xlu0 %2176
      %v2178 = vmax.f32 %v2049, %v2051
      %2179 = vmax.xlane.f32.xlu0 %v2178
      %v2180 = vpop.xlane.xlu0 %2179
      %v2181 = vmax.f32 %v2055, %v2057
      %2182 = vmax.xlane.f32.xlu0 %v2181
      %v2183 = vpop.xlane.xlu0 %2182
      %v2184 = vmax.f32 %v2059, %v2061
      %2185 = vmax.xlane.f32.xlu0 %v2184
      %v2186 = vpop.xlane.xlu0 %2185
      %v2187 = vmax.f32 %v2065, %v2067
      %2188 = vmax.xlane.f32.xlu0 %v2187
      %v2189 = vpop.xlane.xlu0 %2188
      %v2190 = vmax.f32 %v2069, %v2071
      %2191 = vmax.xlane.f32.xlu0 %v2190
      %v2192 = vpop.xlane.xlu0 %2191
      %v2193 = vmax.f32 %v2075, %v2077
      %2194 = vmax.xlane.f32.xlu0 %v2193
      %v2195 = vpop.xlane.xlu0 %2194
      %v2196 = vmax.f32 %v2079, %v2081
      %2197 = vmax.xlane.f32.xlu0 %v2196
      %v2198 = vpop.xlane.xlu0 %2197
      %v2199 = vmax.f32 %v2085, %v2087
      %2200 = vmax.xlane.f32.xlu0 %v2199
      %v2201 = vpop.xlane.xlu0 %2200
      %v2202 = vmax.f32 %v2089, %v2091
      %2203 = vmax.xlane.f32.xlu0 %v2202
      %v2204 = vpop.xlane.xlu0 %2203
      %v2205 = vmax.f32 %v2095, %v2097
      %2206 = vmax.xlane.f32.xlu0 %v2205
      %v2207 = vpop.xlane.xlu0 %2206
      %v2208 = vmax.f32 %v2099, %v2101
      %2209 = vmax.xlane.f32.xlu0 %v2208
      %v2210 = vpop.xlane.xlu0 %2209
      %v2211 = vmax.f32 %v2105, %v2107
      %2212 = vmax.xlane.f32.xlu0 %v2211
      %v2213 = vpop.xlane.xlu0 %2212
      %v2214 = vmax.f32 %v2109, %v2111
      %2215 = vmax.xlane.f32.xlu0 %v2214
      %v2216 = vpop.xlane.xlu0 %2215
      %v2217 = vmax.f32 %v2115, %v2117
      %2218 = vmax.xlane.f32.xlu0 %v2217
      %v2219 = vpop.xlane.xlu0 %2218
      %v2220 = vmax.f32 %v2119, %v2121
      %2221 = vmax.xlane.f32.xlu0 %v2220
      %v2222 = vpop.xlane.xlu0 %2221
      %v2223 = vmax.f32 %v2125, %v2127
      %2224 = vmax.xlane.f32.xlu0 %v2223
      %v2225 = vpop.xlane.xlu0 %2224
      %v2226 = vmax.f32 %v2129, %v2131
      %2227 = vmax.xlane.f32.xlu0 %v2226
      %v2228 = vpop.xlane.xlu0 %2227
      %v2229 = vsub.f32 %v1975, %v2135
      %v2230 = vsub.f32 %v1977, %v2135
      %v2231 = vsub.f32 %v1979, %v2138
      %v2232 = vsub.f32 %v1981, %v2138
      %v2233 = vsub.f32 %v1985, %v2141
      %v2234 = vsub.f32 %v1987, %v2141
      %v2235 = vsub.f32 %v1989, %v2144
      %v2236 = vsub.f32 %v1991, %v2144
      %v2237 = vsub.f32 %v1995, %v2147
      %v2238 = vsub.f32 %v1997, %v2147
      %v2239 = vsub.f32 %v1999, %v2150
      %v2240 = vsub.f32 %v2001, %v2150
      %v2241 = vsub.f32 %v2005, %v2153
      %v2242 = vsub.f32 %v2007, %v2153
      %v2243 = vsub.f32 %v2009, %v2156
      %v2244 = vsub.f32 %v2011, %v2156
      %v2245 = vsub.f32 %v2015, %v2159
      %v2246 = vsub.f32 %v2017, %v2159
      %v2247 = vsub.f32 %v2019, %v2162
      %v2248 = vsub.f32 %v2021, %v2162
      %v2249 = vsub.f32 %v2025, %v2165
      %v2250 = vsub.f32 %v2027, %v2165
      %v2251 = vsub.f32 %v2029, %v2168
      %v2252 = vsub.f32 %v2031, %v2168
      %v2253 = vsub.f32 %v2035, %v2171
      %v2254 = vsub.f32 %v2037, %v2171
      %v2255 = vsub.f32 %v2039, %v2174
      %v2256 = vsub.f32 %v2041, %v2174
      %v2257 = vsub.f32 %v2045, %v2177
      %v2258 = vsub.f32 %v2047, %v2177
      %v2259 = vsub.f32 %v2049, %v2180
      %v2260 = vsub.f32 %v2051, %v2180
      %v2261 = vsub.f32 %v2055, %v2183
      %v2262 = vsub.f32 %v2057, %v2183
      %v2263 = vsub.f32 %v2059, %v2186
      %v2264 = vsub.f32 %v2061, %v2186
      %v2265 = vsub.f32 %v2065, %v2189
      %v2266 = vsub.f32 %v2067, %v2189
      %v2267 = vsub.f32 %v2069, %v2192
      %v2268 = vsub.f32 %v2071, %v2192
      %v2269 = vsub.f32 %v2075, %v2195
      %v2270 = vsub.f32 %v2077, %v2195
      %v2271 = vsub.f32 %v2079, %v2198
      %v2272 = vsub.f32 %v2081, %v2198
      %v2273 = vsub.f32 %v2085, %v2201
      %v2274 = vsub.f32 %v2087, %v2201
      %v2275 = vsub.f32 %v2089, %v2204
      %v2276 = vsub.f32 %v2091, %v2204
      %v2277 = vsub.f32 %v2095, %v2207
      %v2278 = vsub.f32 %v2097, %v2207
      %v2279 = vsub.f32 %v2099, %v2210
      %v2280 = vsub.f32 %v2101, %v2210
      %v2281 = vsub.f32 %v2105, %v2213
      %v2282 = vsub.f32 %v2107, %v2213
      %v2283 = vsub.f32 %v2109, %v2216
      %v2284 = vsub.f32 %v2111, %v2216
      %v2285 = vsub.f32 %v2115, %v2219
      %v2286 = vsub.f32 %v2117, %v2219
      %v2287 = vsub.f32 %v2119, %v2222
      %v2288 = vsub.f32 %v2121, %v2222
      %v2289 = vsub.f32 %v2125, %v2225
      %v2290 = vsub.f32 %v2127, %v2225
      %v2291 = vsub.f32 %v2129, %v2228
      %v2292 = vsub.f32 %v2131, %v2228
      %v2293 = vmul.f32 %v2229, 1.442695
      %v2294 = vpow.pop %v2293
      %v2295 = vmul.f32 %v2230, 1.442695
      %v2296 = vpow.pop %v2295
      %v2297 = vmul.f32 %v2231, 1.442695
      %v2298 = vpow.pop %v2297
      %v2299 = vmul.f32 %v2232, 1.442695
      %v2300 = vpow.pop %v2299
      %v2301 = vmul.f32 %v2233, 1.442695
      %v2302 = vpow.pop %v2301
      %v2303 = vmul.f32 %v2234, 1.442695
      %v2304 = vpow.pop %v2303
      %v2305 = vmul.f32 %v2235, 1.442695
      %v2306 = vpow.pop %v2305
      %v2307 = vmul.f32 %v2236, 1.442695
      %v2308 = vpow.pop %v2307
      %v2309 = vmul.f32 %v2237, 1.442695
      %v2310 = vpow.pop %v2309
      %v2311 = vmul.f32 %v2238, 1.442695
      %v2312 = vpow.pop %v2311
      %v2313 = vmul.f32 %v2239, 1.442695
      %v2314 = vpow.pop %v2313
      %v2315 = vmul.f32 %v2240, 1.442695
      %v2316 = vpow.pop %v2315
      %v2317 = vmul.f32 %v2241, 1.442695
      %v2318 = vpow.pop %v2317
      %v2319 = vmul.f32 %v2242, 1.442695
      %v2320 = vpow.pop %v2319
      %v2321 = vmul.f32 %v2243, 1.442695
      %v2322 = vpow.pop %v2321
      %v2323 = vmul.f32 %v2244, 1.442695
      %v2324 = vpow.pop %v2323
      %v2325 = vmul.f32 %v2245, 1.442695
      %v2326 = vpow.pop %v2325
      %v2327 = vmul.f32 %v2246, 1.442695
      %v2328 = vpow.pop %v2327
      %v2329 = vmul.f32 %v2247, 1.442695
      %v2330 = vpow.pop %v2329
      %v2331 = vmul.f32 %v2248, 1.442695
      %v2332 = vpow.pop %v2331
      %v2333 = vmul.f32 %v2249, 1.442695
      %v2334 = vpow.pop %v2333
      %v2335 = vmul.f32 %v2250, 1.442695
      %v2336 = vpow.pop %v2335
      %v2337 = vmul.f32 %v2251, 1.442695
      %v2338 = vpow.pop %v2337
      %v2339 = vmul.f32 %v2252, 1.442695
      %v2340 = vpow.pop %v2339
      %v2341 = vmul.f32 %v2253, 1.442695
      %v2342 = vpow.pop %v2341
      %v2343 = vmul.f32 %v2254, 1.442695
      %v2344 = vpow.pop %v2343
      %v2345 = vmul.f32 %v2255, 1.442695
      %v2346 = vpow.pop %v2345
      %v2347 = vmul.f32 %v2256, 1.442695
      %v2348 = vpow.pop %v2347
      %v2349 = vmul.f32 %v2257, 1.442695
      %v2350 = vpow.pop %v2349
      %v2351 = vmul.f32 %v2258, 1.442695
      %v2352 = vpow.pop %v2351
      %v2353 = vmul.f32 %v2259, 1.442695
      %v2354 = vpow.pop %v2353
      %v2355 = vmul.f32 %v2260, 1.442695
      %v2356 = vpow.pop %v2355
      %v2357 = vmul.f32 %v2261, 1.442695
      %v2358 = vpow.pop %v2357
      %v2359 = vmul.f32 %v2262, 1.442695
      %v2360 = vpow.pop %v2359
      %v2361 = vmul.f32 %v2263, 1.442695
      %v2362 = vpow.pop %v2361
      %v2363 = vmul.f32 %v2264, 1.442695
      %v2364 = vpow.pop %v2363
      %v2365 = vmul.f32 %v2265, 1.442695
      %v2366 = vpow.pop %v2365
      %v2367 = vmul.f32 %v2266, 1.442695
      %v2368 = vpow.pop %v2367
      %v2369 = vmul.f32 %v2267, 1.442695
      %v2370 = vpow.pop %v2369
      %v2371 = vmul.f32 %v2268, 1.442695
      %v2372 = vpow.pop %v2371
      %v2373 = vmul.f32 %v2269, 1.442695
      %v2374 = vpow.pop %v2373
      %v2375 = vmul.f32 %v2270, 1.442695
      %v2376 = vpow.pop %v2375
      %v2377 = vmul.f32 %v2271, 1.442695
      %v2378 = vpow.pop %v2377
      %v2379 = vmul.f32 %v2272, 1.442695
      %v2380 = vpow.pop %v2379
      %v2381 = vmul.f32 %v2273, 1.442695
      %v2382 = vpow.pop %v2381
      %v2383 = vmul.f32 %v2274, 1.442695
      %v2384 = vpow.pop %v2383
      %v2385 = vmul.f32 %v2275, 1.442695
      %v2386 = vpow.pop %v2385
      %v2387 = vmul.f32 %v2276, 1.442695
      %v2388 = vpow.pop %v2387
      %v2389 = vmul.f32 %v2277, 1.442695
      %v2390 = vpow.pop %v2389
      %v2391 = vmul.f32 %v2278, 1.442695
      %v2392 = vpow.pop %v2391
      %v2393 = vmul.f32 %v2279, 1.442695
      %v2394 = vpow.pop %v2393
      %v2395 = vmul.f32 %v2280, 1.442695
      %v2396 = vpow.pop %v2395
      %v2397 = vmul.f32 %v2281, 1.442695
      %v2398 = vpow.pop %v2397
      %v2399 = vmul.f32 %v2282, 1.442695
      %v2400 = vpow.pop %v2399
      %v2401 = vmul.f32 %v2283, 1.442695
      %v2402 = vpow.pop %v2401
      %v2403 = vmul.f32 %v2284, 1.442695
      %v2404 = vpow.pop %v2403
      %v2405 = vmul.f32 %v2285, 1.442695
      %v2406 = vpow.pop %v2405
      %v2407 = vmul.f32 %v2286, 1.442695
      %v2408 = vpow.pop %v2407
      %v2409 = vmul.f32 %v2287, 1.442695
      %v2410 = vpow.pop %v2409
      %v2411 = vmul.f32 %v2288, 1.442695
      %v2412 = vpow.pop %v2411
      %v2413 = vmul.f32 %v2289, 1.442695
      %v2414 = vpow.pop %v2413
      %v2415 = vmul.f32 %v2290, 1.442695
      %v2416 = vpow.pop %v2415
      %v2417 = vmul.f32 %v2291, 1.442695
      %v2418 = vpow.pop %v2417
      %v2419 = vmul.f32 %v2292, 1.442695
      %v2420 = vpow.pop %v2419
      %v2421 = vadd.f32 %v2294, %v2296
      %2422 = vadd.xlane.f32.xlu0 %v2421
      %v2423 = vpop.xlane.xlu0 %2422
      %v2424 = vadd.f32 %v2298, %v2300
      %2425 = vadd.xlane.f32.xlu0 %v2424
      %v2426 = vpop.xlane.xlu0 %2425
      %v2427 = vadd.f32 %v2302, %v2304
      %2428 = vadd.xlane.f32.xlu0 %v2427
      %v2429 = vpop.xlane.xlu0 %2428
      %v2430 = vadd.f32 %v2306, %v2308
      %2431 = vadd.xlane.f32.xlu0 %v2430
      %v2432 = vpop.xlane.xlu0 %2431
      %v2433 = vadd.f32 %v2310, %v2312
      %2434 = vadd.xlane.f32.xlu0 %v2433
      %v2435 = vpop.xlane.xlu0 %2434
      %v2436 = vadd.f32 %v2314, %v2316
      %2437 = vadd.xlane.f32.xlu0 %v2436
      %v2438 = vpop.xlane.xlu0 %2437
      %v2439 = vadd.f32 %v2318, %v2320
      %2440 = vadd.xlane.f32.xlu0 %v2439
      %v2441 = vpop.xlane.xlu0 %2440
      %v2442 = vadd.f32 %v2322, %v2324
      %2443 = vadd.xlane.f32.xlu0 %v2442
      %v2444 = vpop.xlane.xlu0 %2443
      %v2445 = vadd.f32 %v2326, %v2328
      %2446 = vadd.xlane.f32.xlu0 %v2445
      %v2447 = vpop.xlane.xlu0 %2446
      %v2448 = vadd.f32 %v2330, %v2332
      %2449 = vadd.xlane.f32.xlu0 %v2448
      %v2450 = vpop.xlane.xlu0 %2449
      %v2451 = vadd.f32 %v2334, %v2336
      %2452 = vadd.xlane.f32.xlu0 %v2451
      %v2453 = vpop.xlane.xlu0 %2452
      %v2454 = vadd.f32 %v2338, %v2340
      %2455 = vadd.xlane.f32.xlu0 %v2454
      %v2456 = vpop.xlane.xlu0 %2455
      %v2457 = vadd.f32 %v2342, %v2344
      %2458 = vadd.xlane.f32.xlu0 %v2457
      %v2459 = vpop.xlane.xlu0 %2458
      %v2460 = vadd.f32 %v2346, %v2348
      %2461 = vadd.xlane.f32.xlu0 %v2460
      %v2462 = vpop.xlane.xlu0 %2461
      %v2463 = vadd.f32 %v2350, %v2352
      %2464 = vadd.xlane.f32.xlu0 %v2463
      %v2465 = vpop.xlane.xlu0 %2464
      %v2466 = vadd.f32 %v2354, %v2356
      %2467 = vadd.xlane.f32.xlu0 %v2466
      %v2468 = vpop.xlane.xlu0 %2467
      %v2469 = vadd.f32 %v2358, %v2360
      %2470 = vadd.xlane.f32.xlu0 %v2469
      %v2471 = vpop.xlane.xlu0 %2470
      %v2472 = vadd.f32 %v2362, %v2364
      %2473 = vadd.xlane.f32.xlu0 %v2472
      %v2474 = vpop.xlane.xlu0 %2473
      %v2475 = vadd.f32 %v2366, %v2368
      %2476 = vadd.xlane.f32.xlu0 %v2475
      %v2477 = vpop.xlane.xlu0 %2476
      %v2478 = vadd.f32 %v2370, %v2372
      %2479 = vadd.xlane.f32.xlu0 %v2478
      %v2480 = vpop.xlane.xlu0 %2479
      %v2481 = vadd.f32 %v2374, %v2376
      %2482 = vadd.xlane.f32.xlu0 %v2481
      %v2483 = vpop.xlane.xlu0 %2482
      %v2484 = vadd.f32 %v2378, %v2380
      %2485 = vadd.xlane.f32.xlu0 %v2484
      %v2486 = vpop.xlane.xlu0 %2485
      %v2487 = vadd.f32 %v2382, %v2384
      %2488 = vadd.xlane.f32.xlu0 %v2487
      %v2489 = vpop.xlane.xlu0 %2488
      %v2490 = vadd.f32 %v2386, %v2388
      %2491 = vadd.xlane.f32.xlu0 %v2490
      %v2492 = vpop.xlane.xlu0 %2491
      %v2493 = vadd.f32 %v2390, %v2392
      %2494 = vadd.xlane.f32.xlu0 %v2493
      %v2495 = vpop.xlane.xlu0 %2494
      %v2496 = vadd.f32 %v2394, %v2396
      %2497 = vadd.xlane.f32.xlu0 %v2496
      %v2498 = vpop.xlane.xlu0 %2497
      %v2499 = vadd.f32 %v2398, %v2400
      %2500 = vadd.xlane.f32.xlu0 %v2499
      %v2501 = vpop.xlane.xlu0 %2500
      %v2502 = vadd.f32 %v2402, %v2404
      %2503 = vadd.xlane.f32.xlu0 %v2502
      %v2504 = vpop.xlane.xlu0 %2503
      %v2505 = vadd.f32 %v2406, %v2408
      %2506 = vadd.xlane.f32.xlu0 %v2505
      %v2507 = vpop.xlane.xlu0 %2506
      %v2508 = vadd.f32 %v2410, %v2412
      %2509 = vadd.xlane.f32.xlu0 %v2508
      %v2510 = vpop.xlane.xlu0 %2509
      %v2511 = vadd.f32 %v2414, %v2416
      %2512 = vadd.xlane.f32.xlu0 %v2511
      %v2513 = vpop.xlane.xlu0 %2512
      %v2514 = vadd.f32 %v2418, %v2420
      %2515 = vadd.xlane.f32.xlu0 %v2514
      %v2516 = vpop.xlane.xlu0 %2515
      %v2517 = vrcp.pop %v2423
      %v2518 = vrcp.pop %v2426
      %v2519 = vrcp.pop %v2429
      %v2520 = vrcp.pop %v2432
      %v2521 = vrcp.pop %v2435
      %v2522 = vrcp.pop %v2438
      %v2523 = vrcp.pop %v2441
      %v2524 = vrcp.pop %v2444
      %v2525 = vrcp.pop %v2447
      %v2526 = vrcp.pop %v2450
      %v2527 = vrcp.pop %v2453
      %v2528 = vrcp.pop %v2456
      %v2529 = vrcp.pop %v2459
      %v2530 = vrcp.pop %v2462
      %v2531 = vrcp.pop %v2465
      %v2532 = vrcp.pop %v2468
      %v2533 = vrcp.pop %v2471
      %v2534 = vrcp.pop %v2474
      %v2535 = vrcp.pop %v2477
      %v2536 = vrcp.pop %v2480
      %v2537 = vrcp.pop %v2483
      %v2538 = vrcp.pop %v2486
      %v2539 = vrcp.pop %v2489
      %v2540 = vrcp.pop %v2492
      %v2541 = vrcp.pop %v2495
      %v2542 = vrcp.pop %v2498
      %v2543 = vrcp.pop %v2501
      %v2544 = vrcp.pop %v2504
      %v2545 = vrcp.pop %v2507
      %v2546 = vrcp.pop %v2510
      %v2547 = vrcp.pop %v2513
      %v2548 = vrcp.pop %v2516
      %v2549 = vmul.f32 %v2294, %v2517
      %v2550 = vmul.f32 %v2296, %v2517
      %v2551 = vmul.f32 %v2298, %v2518
      %v2552 = vmul.f32 %v2300, %v2518
      %v2553 = vmul.f32 %v2302, %v2519
      %v2554 = vmul.f32 %v2304, %v2519
      %v2555 = vmul.f32 %v2306, %v2520
      %v2556 = vmul.f32 %v2308, %v2520
      %v2557 = vmul.f32 %v2310, %v2521
      %v2558 = vmul.f32 %v2312, %v2521
      %v2559 = vmul.f32 %v2314, %v2522
      %v2560 = vmul.f32 %v2316, %v2522
      %v2561 = vmul.f32 %v2318, %v2523
      %v2562 = vmul.f32 %v2320, %v2523
      %v2563 = vmul.f32 %v2322, %v2524
      %v2564 = vmul.f32 %v2324, %v2524
      %v2565 = vmul.f32 %v2326, %v2525
      %v2566 = vmul.f32 %v2328, %v2525
      %v2567 = vmul.f32 %v2330, %v2526
      %v2568 = vmul.f32 %v2332, %v2526
      %v2569 = vmul.f32 %v2334, %v2527
      %v2570 = vmul.f32 %v2336, %v2527
      %v2571 = vmul.f32 %v2338, %v2528
      %v2572 = vmul.f32 %v2340, %v2528
      %v2573 = vmul.f32 %v2342, %v2529
      %v2574 = vmul.f32 %v2344, %v2529
      %v2575 = vmul.f32 %v2346, %v2530
      %v2576 = vmul.f32 %v2348, %v2530
      %v2577 = vmul.f32 %v2350, %v2531
      %v2578 = vmul.f32 %v2352, %v2531
      %v2579 = vmul.f32 %v2354, %v2532
      %v2580 = vmul.f32 %v2356, %v2532
      %v2581 = vmul.f32 %v2358, %v2533
      %v2582 = vmul.f32 %v2360, %v2533
      %v2583 = vmul.f32 %v2362, %v2534
      %v2584 = vmul.f32 %v2364, %v2534
      %v2585 = vmul.f32 %v2366, %v2535
      %v2586 = vmul.f32 %v2368, %v2535
      %v2587 = vmul.f32 %v2370, %v2536
      %v2588 = vmul.f32 %v2372, %v2536
      %v2589 = vmul.f32 %v2374, %v2537
      %v2590 = vmul.f32 %v2376, %v2537
      %v2591 = vmul.f32 %v2378, %v2538
      %v2592 = vmul.f32 %v2380, %v2538
      %v2593 = vmul.f32 %v2382, %v2539
      %v2594 = vmul.f32 %v2384, %v2539
      %v2595 = vmul.f32 %v2386, %v2540
      %v2596 = vmul.f32 %v2388, %v2540
      %v2597 = vmul.f32 %v2390, %v2541
      %v2598 = vmul.f32 %v2392, %v2541
      %v2599 = vmul.f32 %v2394, %v2542
      %v2600 = vmul.f32 %v2396, %v2542
      %v2601 = vmul.f32 %v2398, %v2543
      %v2602 = vmul.f32 %v2400, %v2543
      %v2603 = vmul.f32 %v2402, %v2544
      %v2604 = vmul.f32 %v2404, %v2544
      %v2605 = vmul.f32 %v2406, %v2545
      %v2606 = vmul.f32 %v2408, %v2545
      %v2607 = vmul.f32 %v2410, %v2546
      %v2608 = vmul.f32 %v2412, %v2546
      %v2609 = vmul.f32 %v2414, %v2547
      %v2610 = vmul.f32 %v2416, %v2547
      %v2611 = vmul.f32 %v2418, %v2548
      %v2612 = vmul.f32 %v2420, %v2548
      %v2613 = vpack.c.bf16 %v2551, %v2549
      %v2614 = vpack.c.bf16 %v2552, %v2550
      %v2615 = vpack.c.bf16 %v2555, %v2553
      %v2616 = vpack.c.bf16 %v2556, %v2554
      %v2617 = vpack.c.bf16 %v2559, %v2557
      %v2618 = vpack.c.bf16 %v2560, %v2558
      %v2619 = vpack.c.bf16 %v2563, %v2561
      %v2620 = vpack.c.bf16 %v2564, %v2562
      %v2621 = vpack.c.bf16 %v2567, %v2565
      %v2622 = vpack.c.bf16 %v2568, %v2566
      %v2623 = vpack.c.bf16 %v2571, %v2569
      %v2624 = vpack.c.bf16 %v2572, %v2570
      %v2625 = vpack.c.bf16 %v2575, %v2573
      %v2626 = vpack.c.bf16 %v2576, %v2574
      %v2627 = vpack.c.bf16 %v2579, %v2577
      %v2628 = vpack.c.bf16 %v2580, %v2578
      %v2629 = vpack.c.bf16 %v2583, %v2581
      %v2630 = vpack.c.bf16 %v2584, %v2582
      %v2631 = vpack.c.bf16 %v2587, %v2585
      %v2632 = vpack.c.bf16 %v2588, %v2586
      %v2633 = vpack.c.bf16 %v2591, %v2589
      %v2634 = vpack.c.bf16 %v2592, %v2590
      %v2635 = vpack.c.bf16 %v2595, %v2593
      %v2636 = vpack.c.bf16 %v2596, %v2594
      %v2637 = vpack.c.bf16 %v2599, %v2597
      %v2638 = vpack.c.bf16 %v2600, %v2598
      %v2639 = vpack.c.bf16 %v2603, %v2601
      %v2640 = vpack.c.bf16 %v2604, %v2602
      %v2641 = vpack.c.bf16 %v2607, %v2605
      %v2642 = vpack.c.bf16 %v2608, %v2606
      %v2643 = vpack.c.bf16 %v2611, %v2609
      %v2644 = vpack.c.bf16 %v2612, %v2610
      %2645 = vrot.lane.b32.xlu0 %v1379, 48
      %v2646 = vpop.permute.xlu0 %2645
      %2647 = vrot.lane.b32.xlu0 %v1380, 48
      %v2648 = vpop.permute.xlu0 %2647
      %2649 = vrot.lane.b32.xlu0 %v1381, 48
      %v2650 = vpop.permute.xlu0 %2649
      %2651 = vrot.lane.b32.xlu0 %v1382, 48
      %v2652 = vpop.permute.xlu0 %2651
      %2653 = vrot.lane.b32.xlu0 %v1383, 48
      %v2654 = vpop.permute.xlu0 %2653
      %2655 = vrot.lane.b32.xlu0 %v1384, 48
      %v2656 = vpop.permute.xlu0 %2655
      %2657 = vrot.lane.b32.xlu0 %v1385, 48
      %v2658 = vpop.permute.xlu0 %2657
      %2659 = vrot.lane.b32.xlu0 %v1386, 48
      %v2660 = vpop.permute.xlu0 %2659
      %2661 = vrot.lane.b32.xlu0 %v1387, 48
      %v2662 = vpop.permute.xlu0 %2661
      %2663 = vrot.lane.b32.xlu0 %v1388, 48
      %v2664 = vpop.permute.xlu0 %2663
      %2665 = vrot.lane.b32.xlu0 %v1389, 48
      %v2666 = vpop.permute.xlu0 %2665
      %2667 = vrot.lane.b32.xlu0 %v1390, 48
      %v2668 = vpop.permute.xlu0 %2667
      %2669 = vrot.lane.b32.xlu0 %v1391, 48
      %v2670 = vpop.permute.xlu0 %2669
      %2671 = vrot.lane.b32.xlu0 %v1392, 48
      %v2672 = vpop.permute.xlu0 %2671
      %2673 = vrot.lane.b32.xlu0 %v1393, 48
      %v2674 = vpop.permute.xlu0 %2673
      %2675 = vrot.lane.b32.xlu0 %v1394, 48
      %v2676 = vpop.permute.xlu0 %2675
      %2693 = vmatprep.subr.bf16.mxu0 0
      %2694 = vmatpush1.bf16.msra.mxu0 %v2646
      %2695 = vmatprep.subr.bf16.mxu0 0
      %2696 = vmatpush1.bf16.msra.mxu0 %v2648
      %2697 = vmatprep.subr.bf16.mxu0 0
      %2698 = vmatpush1.bf16.msra.mxu0 %v2650
      %2699 = vmatprep.subr.bf16.mxu0 0
      %2700 = vmatpush1.bf16.msra.mxu0 %v2652
      %2701 = vmatprep.subr.bf16.mxu0 0
      %2702 = vmatpush1.bf16.msra.mxu0 %v2654
      %2703 = vmatprep.subr.bf16.mxu0 0
      %2704 = vmatpush1.bf16.msra.mxu0 %v2656
      %2705 = vmatprep.subr.bf16.mxu0 0
      %2706 = vmatpush1.bf16.msra.mxu0 %v2658
      %2707 = vmatprep.subr.bf16.mxu0 0
      %2708 = vmatpush1.bf16.msra.mxu0 %v2660
      %2709 = vmatprep.subr.bf16.mxu0 0
      %2710 = vmatpush1.bf16.msra.mxu0 %v2662
      %2711 = vmatprep.subr.bf16.mxu0 0
      %2712 = vmatpush1.bf16.msra.mxu0 %v2664
      %2713 = vmatprep.subr.bf16.mxu0 0
      %2714 = vmatpush1.bf16.msra.mxu0 %v2666
      %2715 = vmatprep.subr.bf16.mxu0 0
      %2716 = vmatpush1.bf16.msra.mxu0 %v2668
      %2717 = vmatprep.subr.bf16.mxu0 0
      %2718 = vmatpush1.bf16.msra.mxu0 %v2670
      %2719 = vmatprep.subr.bf16.mxu0 0
      %2720 = vmatpush1.bf16.msra.mxu0 %v2672
      %2721 = vmatprep.subr.bf16.mxu0 0
      %2722 = vmatpush1.bf16.msra.mxu0 %v2674
      %2723 = vmatprep.subr.bf16.mxu0 0
      %2724 = vmatpush1.bf16.msra.mxu0 %v2676
      %2725 = vmatprep.mubr.bf16.mxu0 %v2614
      %2726 = vmatmul.mubr.bf16.gmra.mrb[0].mxu0 %v2613
      %v2727 = vpop.f32.mrb[0].mxu0
      %v2728 = vadd.f32 0.0, %v2727
      %v2729 = vpop.f32.mrb[0].mxu0
      %v2730 = vpop.f32.mrb[0].mxu0
      %v2731 = vadd.f32 0.0, %v2730
      %v2732 = vpop.f32.mrb[0].mxu0
      %2733 = vmatprep.mubr.bf16.mxu0 %v2616
      %2734 = vmatmul.mubr.bf16.gmra.mrb[0].mxu0 %v2615
      %v2735 = vpop.f32.mrb[0].mxu0
      %v2736 = vadd.f32 0.0, %v2735
      %v2737 = vpop.f32.mrb[0].mxu0
      %v2738 = vpop.f32.mrb[0].mxu0
      %v2739 = vadd.f32 0.0, %v2738
      %v2740 = vpop.f32.mrb[0].mxu0
      %2741 = vmatprep.mubr.bf16.mxu0 %v2618
      %2742 = vmatmul.mubr.bf16.gmra.mrb[0].mxu0 %v2617
      %v2743 = vpop.f32.mrb[0].mxu0
      %v2744 = vadd.f32 0.0, %v2743
      %v2745 = vpop.f32.mrb[0].mxu0
      %v2746 = vpop.f32.mrb[0].mxu0
      %v2747 = vadd.f32 0.0, %v2746
      %v2748 = vpop.f32.mrb[0].mxu0
      %2749 = vmatprep.mubr.bf16.mxu0 %v2620
      %2750 = vmatmul.mubr.bf16.gmra.mrb[0].mxu0 %v2619
      %v2751 = vpop.f32.mrb[0].mxu0
      %v2752 = vadd.f32 0.0, %v2751
      %v2753 = vpop.f32.mrb[0].mxu0
      %v2754 = vpop.f32.mrb[0].mxu0
      %v2755 = vadd.f32 0.0, %v2754
      %v2756 = vpop.f32.mrb[0].mxu0
      %2757 = vmatprep.mubr.bf16.mxu0 %v2622
      %2758 = vmatmul.mubr.bf16.gmra.mrb[0].mxu0 %v2621
      %v2759 = vpop.f32.mrb[0].mxu0
      %v2760 = vadd.f32 0.0, %v2759
      %v2761 = vpop.f32.mrb[0].mxu0
      %v2762 = vpop.f32.mrb[0].mxu0
      %v2763 = vadd.f32 0.0, %v2762
      %v2764 = vpop.f32.mrb[0].mxu0
      %2765 = vmatprep.mubr.bf16.mxu0 %v2624
      %2766 = vmatmul.mubr.bf16.gmra.mrb[0].mxu0 %v2623
      %v2767 = vpop.f32.mrb[0].mxu0
      %v2768 = vadd.f32 0.0, %v2767
      %v2769 = vpop.f32.mrb[0].mxu0
      %v2770 = vpop.f32.mrb[0].mxu0
      %v2771 = vadd.f32 0.0, %v2770
      %v2772 = vpop.f32.mrb[0].mxu0
      %2773 = vmatprep.mubr.bf16.mxu0 %v2626
      %2774 = vmatmul.mubr.bf16.gmra.mrb[0].mxu0 %v2625
      %v2775 = vpop.f32.mrb[0].mxu0
      %v2776 = vadd.f32 0.0, %v2775
      %v2777 = vpop.f32.mrb[0].mxu0
      %v2778 = vpop.f32.mrb[0].mxu0
      %v2779 = vadd.f32 0.0, %v2778
      %v2780 = vpop.f32.mrb[0].mxu0
      %2781 = vmatprep.mubr.bf16.mxu0 %v2628
      %2782 = vmatmul.mubr.bf16.gmra.mrb[0].mxu0 %v2627
      %v2783 = vpop.f32.mrb[0].mxu0
      %v2784 = vadd.f32 0.0, %v2783
      %v2785 = vpop.f32.mrb[0].mxu0
      %v2786 = vpop.f32.mrb[0].mxu0
      %v2787 = vadd.f32 0.0, %v2786
      %v2788 = vpop.f32.mrb[0].mxu0
      %2789 = vmatprep.mubr.bf16.mxu0 %v2630
      %2790 = vmatmul.mubr.bf16.gmra.mrb[0].mxu0 %v2629
      %v2791 = vpop.f32.mrb[0].mxu0
      %v2792 = vadd.f32 0.0, %v2791
      %v2793 = vpop.f32.mrb[0].mxu0
      %v2794 = vpop.f32.mrb[0].mxu0
      %v2795 = vadd.f32 0.0, %v2794
      %v2796 = vpop.f32.mrb[0].mxu0
      %2797 = vmatprep.mubr.bf16.mxu0 %v2632
      %2798 = vmatmul.mubr.bf16.gmra.mrb[0].mxu0 %v2631
      %v2799 = vpop.f32.mrb[0].mxu0
      %v2800 = vadd.f32 0.0, %v2799
      %v2801 = vpop.f32.mrb[0].mxu0
      %v2802 = vpop.f32.mrb[0].mxu0
      %v2803 = vadd.f32 0.0, %v2802
      %v2804 = vpop.f32.mrb[0].mxu0
      %2805 = vmatprep.mubr.bf16.mxu0 %v2634
      %2806 = vmatmul.mubr.bf16.gmra.mrb[0].mxu0 %v2633
      %v2807 = vpop.f32.mrb[0].mxu0
      %v2808 = vadd.f32 0.0, %v2807
      %v2809 = vpop.f32.mrb[0].mxu0
      %v2810 = vpop.f32.mrb[0].mxu0
      %v2811 = vadd.f32 0.0, %v2810
      %v2812 = vpop.f32.mrb[0].mxu0
      %2813 = vmatprep.mubr.bf16.mxu0 %v2636
      %2814 = vmatmul.mubr.bf16.gmra.mrb[0].mxu0 %v2635
      %v2815 = vpop.f32.mrb[0].mxu0
      %v2816 = vadd.f32 0.0, %v2815
      %v2817 = vpop.f32.mrb[0].mxu0
      %v2818 = vpop.f32.mrb[0].mxu0
      %v2819 = vadd.f32 0.0, %v2818
      %v2820 = vpop.f32.mrb[0].mxu0
      %2821 = vmatprep.mubr.bf16.mxu0 %v2638
      %2822 = vmatmul.mubr.bf16.gmra.mrb[0].mxu0 %v2637
      %v2823 = vpop.f32.mrb[0].mxu0
      %v2824 = vadd.f32 0.0, %v2823
      %v2825 = vpop.f32.mrb[0].mxu0
      %v2826 = vpop.f32.mrb[0].mxu0
      %v2827 = vadd.f32 0.0, %v2826
      %v2828 = vpop.f32.mrb[0].mxu0
      %2829 = vmatprep.mubr.bf16.mxu0 %v2640
      %2830 = vmatmul.mubr.bf16.gmra.mrb[0].mxu0 %v2639
      %v2831 = vpop.f32.mrb[0].mxu0
      %v2832 = vadd.f32 0.0, %v2831
      %v2833 = vpop.f32.mrb[0].mxu0
      %v2834 = vpop.f32.mrb[0].mxu0
      %v2835 = vadd.f32 0.0, %v2834
      %v2836 = vpop.f32.mrb[0].mxu0
      %2837 = vmatprep.mubr.bf16.mxu0 %v2642
      %2838 = vmatmul.mubr.bf16.gmra.mrb[0].mxu0 %v2641
      %v2839 = vpop.f32.mrb[0].mxu0
      %v2840 = vadd.f32 0.0, %v2839
      %v2841 = vpop.f32.mrb[0].mxu0
      %v2842 = vpop.f32.mrb[0].mxu0
      %v2843 = vadd.f32 0.0, %v2842
      %v2844 = vpop.f32.mrb[0].mxu0
      %2845 = vmatprep.mubr.bf16.mxu0 %v2644
      %2846 = vmatmul.mubr.bf16.gmra.mrb[0].mxu0 %v2643
      %v2847 = vpop.f32.mrb[0].mxu0
      %v2848 = vadd.f32 0.0, %v2847
      %v2849 = vpop.f32.mrb[0].mxu0
      %v2850 = vpop.f32.mrb[0].mxu0
      %v2851 = vadd.f32 0.0, %v2850
      %v2852 = vpop.f32.mrb[0].mxu0
      %2853 = vdwg.mxu0
      %2886 = vrot.lane.b32.xlu0 %v2728, 16
      %v2887 = vpop.permute.xlu0 %2886
      %2888 = vrot.lane.b32.xlu0 %v2731, 16
      %v2889 = vpop.permute.xlu0 %2888
      %2890 = vrot.lane.b32.xlu0 %v2736, 16
      %v2891 = vpop.permute.xlu0 %2890
      %2892 = vrot.lane.b32.xlu0 %v2739, 16
      %v2893 = vpop.permute.xlu0 %2892
      %2894 = vrot.lane.b32.xlu0 %v2744, 16
      %v2895 = vpop.permute.xlu0 %2894
      %2896 = vrot.lane.b32.xlu0 %v2747, 16
      %v2897 = vpop.permute.xlu0 %2896
      %2898 = vrot.lane.b32.xlu0 %v2752, 16
      %v2899 = vpop.permute.xlu0 %2898
      %2900 = vrot.lane.b32.xlu0 %v2755, 16
      %v2901 = vpop.permute.xlu0 %2900
      %2902 = vrot.lane.b32.xlu0 %v2760, 16
      %v2903 = vpop.permute.xlu0 %2902
      %2904 = vrot.lane.b32.xlu0 %v2763, 16
      %v2905 = vpop.permute.xlu0 %2904
      %2906 = vrot.lane.b32.xlu0 %v2768, 16
      %v2907 = vpop.permute.xlu0 %2906
      %2908 = vrot.lane.b32.xlu0 %v2771, 16
      %v2909 = vpop.permute.xlu0 %2908
      %2910 = vrot.lane.b32.xlu0 %v2776, 16
      %v2911 = vpop.permute.xlu0 %2910
      %2912 = vrot.lane.b32.xlu0 %v2779, 16
      %v2913 = vpop.permute.xlu0 %2912
      %2914 = vrot.lane.b32.xlu0 %v2784, 16
      %v2915 = vpop.permute.xlu0 %2914
      %2916 = vrot.lane.b32.xlu0 %v2787, 16
      %v2917 = vpop.permute.xlu0 %2916
      %2918 = vrot.lane.b32.xlu0 %v2792, 16
      %v2919 = vpop.permute.xlu0 %2918
      %2920 = vrot.lane.b32.xlu0 %v2795, 16
      %v2921 = vpop.permute.xlu0 %2920
      %2922 = vrot.lane.b32.xlu0 %v2800, 16
      %v2923 = vpop.permute.xlu0 %2922
      %2924 = vrot.lane.b32.xlu0 %v2803, 16
      %v2925 = vpop.permute.xlu0 %2924
      %2926 = vrot.lane.b32.xlu0 %v2808, 16
      %v2927 = vpop.permute.xlu0 %2926
      %2928 = vrot.lane.b32.xlu0 %v2811, 16
      %v2929 = vpop.permute.xlu0 %2928
      %2930 = vrot.lane.b32.xlu0 %v2816, 16
      %v2931 = vpop.permute.xlu0 %2930
      %2932 = vrot.lane.b32.xlu0 %v2819, 16
      %v2933 = vpop.permute.xlu0 %2932
      %2934 = vrot.lane.b32.xlu0 %v2824, 16
      %v2935 = vpop.permute.xlu0 %2934
      %2936 = vrot.lane.b32.xlu0 %v2827, 16
      %v2937 = vpop.permute.xlu0 %2936
      %2938 = vrot.lane.b32.xlu0 %v2832, 16
      %v2939 = vpop.permute.xlu0 %2938
      %2940 = vrot.lane.b32.xlu0 %v2835, 16
      %v2941 = vpop.permute.xlu0 %2940
      %2942 = vrot.lane.b32.xlu0 %v2840, 16
      %v2943 = vpop.permute.xlu0 %2942
      %2944 = vrot.lane.b32.xlu0 %v2843, 16
      %v2945 = vpop.permute.xlu0 %2944
      %2946 = vrot.lane.b32.xlu0 %v2848, 16
      %v2947 = vpop.permute.xlu0 %2946
      %2948 = vrot.lane.b32.xlu0 %v2851, 16
      %v2949 = vpop.permute.xlu0 %2948
      %v2982 = vsel %vm513, %v1478, %v2887
      %v2983 = vsel %vm513, %v1481, %v2889
      %v2984 = vsel %vm513, %v1486, %v2891
      %v2985 = vsel %vm513, %v1489, %v2893
      %v2986 = vsel %vm513, %v1494, %v2895
      %v2987 = vsel %vm513, %v1497, %v2897
      %v2988 = vsel %vm513, %v1502, %v2899
      %v2989 = vsel %vm513, %v1505, %v2901
      %v2990 = vsel %vm513, %v1510, %v2903
      %v2991 = vsel %vm513, %v1513, %v2905
      %v2992 = vsel %vm513, %v1518, %v2907
      %v2993 = vsel %vm513, %v1521, %v2909
      %v2994 = vsel %vm513, %v1526, %v2911
      %v2995 = vsel %vm513, %v1529, %v2913
      %v2996 = vsel %vm513, %v1534, %v2915
      %v2997 = vsel %vm513, %v1537, %v2917
      %v2998 = vsel %vm513, %v1542, %v2919
      %v2999 = vsel %vm513, %v1545, %v2921
      %v3000 = vsel %vm513, %v1550, %v2923
      %v3001 = vsel %vm513, %v1553, %v2925
      %v3002 = vsel %vm513, %v1558, %v2927
      %v3003 = vsel %vm513, %v1561, %v2929
      %v3004 = vsel %vm513, %v1566, %v2931
      %v3005 = vsel %vm513, %v1569, %v2933
      %v3006 = vsel %vm513, %v1574, %v2935
      %v3007 = vsel %vm513, %v1577, %v2937
      %v3008 = vsel %vm513, %v1582, %v2939
      %v3009 = vsel %vm513, %v1585, %v2941
      %v3010 = vsel %vm513, %v1590, %v2943
      %v3011 = vsel %vm513, %v1593, %v2945
      %v3012 = vsel %vm513, %v1598, %v2947
      %v3013 = vsel %vm513, %v1601, %v2949
      %v3014 = vpack.c.bf16 %v2983, %v2982
      %v3015 = vpack.c.bf16 %v2985, %v2984
      %v3016 = vpack.c.bf16 %v2987, %v2986
      %v3017 = vpack.c.bf16 %v2989, %v2988
      %v3018 = vpack.c.bf16 %v2991, %v2990
      %v3019 = vpack.c.bf16 %v2993, %v2992
      %v3020 = vpack.c.bf16 %v2995, %v2994
      %v3021 = vpack.c.bf16 %v2997, %v2996
      %v3022 = vpack.c.bf16 %v2999, %v2998
      %v3023 = vpack.c.bf16 %v3001, %v3000
      %v3024 = vpack.c.bf16 %v3003, %v3002
      %v3025 = vpack.c.bf16 %v3005, %v3004
      %v3026 = vpack.c.bf16 %v3007, %v3006
      %v3027 = vpack.c.bf16 %v3009, %v3008
      %v3028 = vpack.c.bf16 %v3011, %v3010
      %v3029 = vpack.c.bf16 %v3013, %v3012
      %v3046 = vunpack.c.l.b16 %v3014
      %v3047 = vunpack.c.h.b16 %v3014
      %v3048 = vunpack.c.l.b16 %v3015
      %v3049 = vunpack.c.h.b16 %v3015
      %v3050 = vunpack.c.l.b16 %v3016
      %v3051 = vunpack.c.h.b16 %v3016
      %v3052 = vunpack.c.l.b16 %v3017
      %v3053 = vunpack.c.h.b16 %v3017
      %v3054 = vunpack.c.l.b16 %v3018
      %v3055 = vunpack.c.h.b16 %v3018
      %v3056 = vunpack.c.l.b16 %v3019
      %v3057 = vunpack.c.h.b16 %v3019
      %v3058 = vunpack.c.l.b16 %v3020
      %v3059 = vunpack.c.h.b16 %v3020
      %v3060 = vunpack.c.l.b16 %v3021
      %v3061 = vunpack.c.h.b16 %v3021
      %v3062 = vunpack.c.l.b16 %v3022
      %v3063 = vunpack.c.h.b16 %v3022
      %v3064 = vunpack.c.l.b16 %v3023
      %v3065 = vunpack.c.h.b16 %v3023
      %v3066 = vunpack.c.l.b16 %v3024
      %v3067 = vunpack.c.h.b16 %v3024
      %v3068 = vunpack.c.l.b16 %v3025
      %v3069 = vunpack.c.h.b16 %v3025
      %v3070 = vunpack.c.l.b16 %v3026
      %v3071 = vunpack.c.h.b16 %v3026
      %v3072 = vunpack.c.l.b16 %v3027
      %v3073 = vunpack.c.h.b16 %v3027
      %v3074 = vunpack.c.l.b16 %v3028
      %v3075 = vunpack.c.h.b16 %v3028
      %v3076 = vunpack.c.l.b16 %v3029
      %v3077 = vunpack.c.h.b16 %v3029
      %v3078 = vpack.c.b16 %v3046, %v3046
      %v3079 = vpack.c.b16 %v3047, %v3047
      %v3080 = vpack.c.b16 %v3048, %v3048
      %v3081 = vpack.c.b16 %v3049, %v3049
      %v3082 = vpack.c.b16 %v3050, %v3050
      %v3083 = vpack.c.b16 %v3051, %v3051
      %v3084 = vpack.c.b16 %v3052, %v3052
      %v3085 = vpack.c.b16 %v3053, %v3053
      %v3086 = vpack.c.b16 %v3054, %v3054
      %v3087 = vpack.c.b16 %v3055, %v3055
      %v3088 = vpack.c.b16 %v3056, %v3056
      %v3089 = vpack.c.b16 %v3057, %v3057
      %v3090 = vpack.c.b16 %v3058, %v3058
      %v3091 = vpack.c.b16 %v3059, %v3059
      %v3092 = vpack.c.b16 %v3060, %v3060
      %v3093 = vpack.c.b16 %v3061, %v3061
      %v3094 = vpack.c.b16 %v3062, %v3062
      %v3095 = vpack.c.b16 %v3063, %v3063
      %v3096 = vpack.c.b16 %v3064, %v3064
      %v3097 = vpack.c.b16 %v3065, %v3065
      %v3098 = vpack.c.b16 %v3066, %v3066
      %v3099 = vpack.c.b16 %v3067, %v3067
      %v3100 = vpack.c.b16 %v3068, %v3068
      %v3101 = vpack.c.b16 %v3069, %v3069
      %v3102 = vpack.c.b16 %v3070, %v3070
      %v3103 = vpack.c.b16 %v3071, %v3071
      %v3104 = vpack.c.b16 %v3072, %v3072
      %v3105 = vpack.c.b16 %v3073, %v3073
      %v3106 = vpack.c.b16 %v3074, %v3074
      %v3107 = vpack.c.b16 %v3075, %v3075
      %v3108 = vpack.c.b16 %v3076, %v3076
      %v3109 = vpack.c.b16 %v3077, %v3077
      %vm3142 = vcmask 257024
      %3143 = vst.msk [vmem:[%s143] sm:$0xf] %vm3142, %v3078
      %3144 = vst.msk [vmem:[%s143 + $0x4] sm:$0xf] %vm3142, %v3079
      %3145 = vst.msk [vmem:[%s143 + $0x8] sm:$0xf] %vm3142, %v3080
      %3146 = vst.msk [vmem:[%s143 + $0xc] sm:$0xf] %vm3142, %v3081
      %3147 = vst.msk [vmem:[%s143 + $0x10] sm:$0xf] %vm3142, %v3082
      %3148 = vst.msk [vmem:[%s143 + $0x14] sm:$0xf] %vm3142, %v3083
      %3149 = vst.msk [vmem:[%s143 + $0x18] sm:$0xf] %vm3142, %v3084
      %3150 = vst.msk [vmem:[%s143 + $0x1c] sm:$0xf] %vm3142, %v3085
      %3151 = vst.msk [vmem:[%s143 + $0x20] sm:$0xf] %vm3142, %v3086
      %3152 = vst.msk [vmem:[%s143 + $0x24] sm:$0xf] %vm3142, %v3087
      %3153 = vst.msk [vmem:[%s143 + $0x28] sm:$0xf] %vm3142, %v3088
      %3154 = vst.msk [vmem:[%s143 + $0x2c] sm:$0xf] %vm3142, %v3089
      %3155 = vst.msk [vmem:[%s143 + $0x30] sm:$0xf] %vm3142, %v3090
      %3156 = vst.msk [vmem:[%s143 + $0x34] sm:$0xf] %vm3142, %v3091
      %3157 = vst.msk [vmem:[%s143 + $0x38] sm:$0xf] %vm3142, %v3092
      %3158 = vst.msk [vmem:[%s143 + $0x3c] sm:$0xf] %vm3142, %v3093
      %3159 = vst.msk [vmem:[%s143 + $0x40] sm:$0xf] %vm3142, %v3094
      %3160 = vst.msk [vmem:[%s143 + $0x44] sm:$0xf] %vm3142, %v3095
      %3161 = vst.msk [vmem:[%s143 + $0x48] sm:$0xf] %vm3142, %v3096
      %3162 = vst.msk [vmem:[%s143 + $0x4c] sm:$0xf] %vm3142, %v3097
      %3163 = vst.msk [vmem:[%s143 + $0x50] sm:$0xf] %vm3142, %v3098
      %3164 = vst.msk [vmem:[%s143 + $0x54] sm:$0xf] %vm3142, %v3099
      %3165 = vst.msk [vmem:[%s143 + $0x58] sm:$0xf] %vm3142, %v3100
      %3166 = vst.msk [vmem:[%s143 + $0x5c] sm:$0xf] %vm3142, %v3101
      %3167 = vst.msk [vmem:[%s143 + $0x60] sm:$0xf] %vm3142, %v3102
      %3168 = vst.msk [vmem:[%s143 + $0x64] sm:$0xf] %vm3142, %v3103
      %3169 = vst.msk [vmem:[%s143 + $0x68] sm:$0xf] %vm3142, %v3104
      %3170 = vst.msk [vmem:[%s143 + $0x6c] sm:$0xf] %vm3142, %v3105
      %3171 = vst.msk [vmem:[%s143 + $0x70] sm:$0xf] %vm3142, %v3106
      %3172 = vst.msk [vmem:[%s143 + $0x74] sm:$0xf] %vm3142, %v3107
      %3173 = vst.msk [vmem:[%s143 + $0x78] sm:$0xf] %vm3142, %v3108
      %3174 = vst.msk [vmem:[%s143 + $0x7c] sm:$0xf] %vm3142, %v3109
      %p3175 = scmp.lt.s32.totalorder %s13, 1
      %s3176 = scalar_select %p3175, %s13, 1
      %s3177 = smul.addr %s3176, 32
      %s3178 = smul.addr %s3177, 4
      %s3179 = scalar_lea.vmem %s2, %s3178
      // Predicated region
      $region29: #{bottle_block_forward.4} parent=27 // pred_check
        %p3180 = pneg %p78
      $region30: #{bottle_block_forward.4} parent=27 // pred_check_branch
        %3182 = sbr.rel (%p3180) target = $region32
      $region31: #{bottle_block_forward.4} parent=27 // pred_region
        _
      $region32: #{bottle_block_forward.4} parent=27 // pred_fallthru
        _
    $region28: #{bottle_block_forward.4} parent=5 // pred_fallthru
      _
    %p3183 = scmp.le.s32.totalorder 2, %s8
    // Predicated region
    $region33: #{bottle_block_forward.4} parent=5 // pred_check
      %p3184 = pneg %p3183
    $region34: #{bottle_block_forward.4} parent=5 // pred_check_branch
      %3186 = sbr.rel (%p3184) target = $region36
    $region35: #{bottle_block_forward.4} parent=5 // pred_region
      %s3187 = ssub.s32 %s8, 2
      // Predicated region
      $region37: #{bottle_block_forward.4} parent=35 // pred_check
        %p3188 = pneg %p84
      $region38: #{bottle_block_forward.4} parent=35 // pred_check_branch
        %3190 = sbr.rel (%p3188) target = $region40
      $region39: #{bottle_block_forward.4} parent=35 // pred_region
        %p3191 = scmp.lt.s32.totalorder %s14, 1
        %s3192 = scalar_select %p3191, %s14, 1
        %s3193 = smul.addr %s3192, 32
        %s3194 = smul.addr %s3193, 4
        %s3195 = scalar_lea.vmem %s2, %s3194
      $region40: #{bottle_block_forward.4} parent=35 // pred_fallthru
        _
    $region36: #{bottle_block_forward.4} parent=5 // pred_fallthru
      _
  $region6: #{bottle_block_forward.4} parent=0 // loop_footer
    %s12 = sadd.s32 1, %s8
  $region7: #{bottle_block_forward.4} parent=0 // loop_footer_branch
    %7 = sbr.rel target = $region3
  $region8: #{bottle_block_forward.4} parent=0 // loop_exit
    _

</llo_original>
